<compile_context>
chip_gen: v7x
topology: tpu7x:2x2x1
jax: 0.10.0
libtpu: 0.0.40
codegen_flags: <defaults>
</compile_context>

<pallas_src>
import functools
import jax
import jax.numpy as jnp
from jax.experimental import pallas as pl
from jax.experimental.pallas import tpu as pltpu

# ------------------------- model hyper-params (small, synthetic) -------------------------
DIM = 32                    # embedding dim
HEADS = 8                   # num_heads
HD = DIM // HEADS           # head_dim = 4
SCALE = HD ** -0.5          # qk_scale default
MLP_HIDDEN = int(DIM * 4.0) # mlp_ratio = 4.0
EPS = 1e-5                  # nn.LayerNorm default eps

B = 2
T = 8
W = 4
H = 4                       # time_only branch implicitly assumes H == W (repeat(1, W*W, 1))

# MXU operand dtype.  Flip to jnp.bfloat16 on v6e/v7x for single-pass MXU feeds.
MXU_DTYPE = jnp.float32


# ======================= single fused kernel =======================
def fused_block_ca_kernel(x_ref, xc_ref, g1_ref, b1_ref, wq_ref, wkv_ref, wp_ref, bp_ref,
                          g2_ref, b2_ref, w1_ref, bb1_ref, w2_ref, bb2_ref,
                          bh_ref, seg_ref, qsel_ref, gsel_ref, gmean_ref,
                          o_ref, *, mxu_dtype):
    f32 = jnp.float32

    def layer_norm(z, g, b):
        mu = jnp.mean(z, axis=-1, keepdims=True)
        var = jnp.mean(jnp.square(z - mu), axis=-1, keepdims=True)
        return (z - mu) * jax.lax.rsqrt(var + EPS) * g + b

    g1 = g1_ref[...].astype(f32)
    b1 = b1_ref[...].astype(f32)
    wq = wq_ref[...]        # (C, 2C)      = [Wq^T * scale | 0]
    wkv = wkv_ref[...]      # (C, 2C)      = [Wk^T | Wv^T]
    wp = wp_ref[...]        # (2C, C)      = [0 ; Wp^T]
    bp = bp_ref[...].astype(f32)           # (1, C)
    bh = bh_ref[...]        # (2C, 2C)     head block-diagonal (k-channels only)
    seg = seg_ref[...]      # (B*G, B*G*T) per-group segment-sum
    qsel = qsel_ref[...]    # (B*G*T, B)   token-row -> batch one-hot
    gsel = gsel_ref[...]    # (B*G, B)     group-row -> batch one-hot
    gmean = gmean_ref[...]  # (B, B*G)     per-batch group mean (1/G entries)

    # ---- LayerNorm1 on the stacked token matrix and the per-batch cls rows ----
    ln_x = layer_norm(x_ref[...].astype(f32), g1, b1)            # (B*G*T, C)
    xc = xc_ref[...].astype(f32)                                  # (B, C)
    ln_c = layer_norm(xc, g1, b1)                                 # (B, C)

    # ---- q / k / v projections (flat MXU matmuls; q pre-scaled, zero-padded) ----
    q64 = jnp.dot(ln_c.astype(mxu_dtype), wq, preferred_element_type=f32)    # (B, 2C) = [q*scale | 0]
    kv_c = jnp.dot(ln_c.astype(mxu_dtype), wkv, preferred_element_type=f32)  # (B, 2C) = [k_cls | v_cls]
    kv_x = jnp.dot(ln_x.astype(mxu_dtype), wkv, preferred_element_type=f32)  # (B*G*T, 2C)

    # Broadcast each batch's q row to all its G*T token rows (one-hot matmul).
    qb = jnp.dot(qsel, q64.astype(mxu_dtype), preferred_element_type=f32)    # (B*G*T, 2C)

    # ---- per-head logits via the block-diagonal matrix (replicated over 2C lanes) ----
    lg_x = jnp.dot((qb * kv_x).astype(mxu_dtype), bh, preferred_element_type=f32)   # (B*G*T, 2C)
    lg_c = jnp.dot((q64 * kv_c).astype(mxu_dtype), bh, preferred_element_type=f32)  # (B, 2C)

    # ---- softmax over (T temporal + 1 cls) tokens of each group ----
    # One global per-column max is a column-constant shift -> identical softmax, stable exp.
    m = jnp.maximum(jnp.max(lg_x, axis=0, keepdims=True),
                    jnp.max(lg_c, axis=0, keepdims=True))          # (1, 2C)
    e_x = jnp.exp(lg_x - m)                                        # (B*G*T, 2C)
    e_c = jnp.exp(lg_c - m)                                        # (B, 2C)

    # ---- fused segment reduction: one lane-dense 4C-wide matmul gives the softmax
    #      denominator (sum e) and the weighted-value numerator (sum e*kv) per group;
    #      the cls-token contribution is folded in with a tiny one-hot matmul ----
    cat_x = jnp.concatenate([e_x, e_x * kv_x], axis=-1)            # (B*G*T, 4C)
    cat_c = jnp.concatenate([e_c, e_c * kv_c], axis=-1)            # (B, 4C)
    total = (jnp.dot(seg, cat_x.astype(mxu_dtype), preferred_element_type=f32)
             + jnp.dot(gsel, cat_c.astype(mxu_dtype), preferred_element_type=f32))  # (B*G, 4C)

    C2 = bh.shape[0]
    sum_e = total[:, :C2]                                          # (B*G, 2C)
    sum_ev = total[:, C2:]                                         # (B*G, 2C)
    # k-half of ctx is intentionally garbage; the zero block of wp drops it below.
    ctx = sum_ev * pl.reciprocal(sum_e, approx=True)               # (B*G, 2C)

    # ---- mean over the W*W spatial groups of each batch (commutes with the proj) ----
    ctx_mean = jnp.dot(gmean, ctx.astype(mxu_dtype), preferred_element_type=f32)    # (B, 2C)

    # ---- proj (zero block drops the k-half) + residual ----
    res = jnp.dot(ctx_mean.astype(mxu_dtype), wp, preferred_element_type=f32) + bp  # (B, C)
    xc1 = xc + res

    # ---- norm2 + MLP (exact GELU) + residual ----
    ln2 = layer_norm(xc1, g2_ref[...].astype(f32), b2_ref[...].astype(f32))
    hh = jnp.dot(ln2.astype(mxu_dtype), w1_ref[...], preferred_element_type=f32) \
        + bb1_ref[...].astype(f32)
    hh = 0.5 * hh * (1.0 + jax.lax.erf(hh * jnp.float32(0.7071067811865476)))
    y = jnp.dot(hh.astype(mxu_dtype), w2_ref[...], preferred_element_type=f32) \
        + bb2_ref[...].astype(f32)

    o_ref[...] = (xc1 + y).astype(o_ref.dtype)


# ======================= wrapper (single pallas_call, grid=(1,)) =======================
def layerscale_block_ca_forward(x, x_cls, Bv, Tv, Wv, kp):
    Ntok, C = x.shape[1], x.shape[2]
    Hv = (Ntok // Tv) // Wv
    assert Hv == Wv, "time_only branch (repeat(1, W*W, 1)) assumes H == W"
    G = Hv * Wv

    # Row order of the flat reshape is (b, h, w, t) -> matches the host-built seg/qsel matrices.
    x_flat = x.reshape(Bv * G * Tv, C)
    xc2 = x_cls.reshape(Bv, C)

    kernel = functools.partial(fused_block_ca_kernel, mxu_dtype=MXU_DTYPE)

    def fullspec(a):
        return pl.BlockSpec(a.shape, lambda i, nd=a.ndim: (0,) * nd)

    inputs = (x_flat, xc2, kp['g1'], kp['b1'], kp['wq64_t'], kp['wkv_t'], kp['wp64_t'], kp['bp'],
              kp['g2'], kp['b2'], kp['w1_t'], kp['bb1'], kp['w2_t'], kp['bb2'],
              kp['bh'], kp['seg'], kp['qsel'], kp['gsel'], kp['gmean'])

    out = pl.pallas_call(
        kernel,
        out_shape=jax.ShapeDtypeStruct((Bv, C), jnp.float32),
        grid=(1,),
        in_specs=[fullspec(a) for a in inputs],
        out_specs=pl.BlockSpec((Bv, C), lambda i: (0, 0)),
        compiler_params=pltpu.CompilerParams(dimension_semantics=("arbitrary",)),
    )(*inputs)
    return out.reshape(Bv, 1, C)


# ======================= parameter init (raw, PyTorch layout) =======================
def init_params(key):
    ks = jax.random.split(key, 10)
    n = lambda k, s: (0.02 * jax.random.normal(k, s, jnp.float32))
    return {
        'g1': jnp.ones((1, DIM), jnp.float32),
        'b1': jnp.zeros((1, DIM), jnp.float32),
        'wq': n(ks[0], (DIM, DIM)),
        'wk': n(ks[1], (DIM, DIM)),
        'wv': n(ks[2], (DIM, DIM)),
        'wp': n(ks[3], (DIM, DIM)),
        'bp': n(ks[4], (1, DIM)),
        'g2': jnp.ones((1, DIM), jnp.float32),
        'b2': jnp.zeros((1, DIM), jnp.float32),
        'w1': n(ks[5], (MLP_HIDDEN, DIM)),
        'bb1': n(ks[6], (1, MLP_HIDDEN)),
        'w2': n(ks[7], (DIM, MLP_HIDDEN)),
        'bb2': n(ks[8], (1, DIM)),
    }


# ======================= kernel-layout prep (host-side, one time) =======================
def build_constants(Bv, G, Tv, C, dtype):
    C2 = 2 * C
    hd = C // HEADS
    rows = jnp.arange(C2)
    cols = jnp.arange(C2)
    # bh: only k-channels (c < C) contribute; logits replicated across both halves per head.
    bh = ((rows[:, None] < C) &
          ((rows[:, None] % C) // hd == (cols[None, :] % C) // hd)).astype(dtype)   # (2C, 2C)
    n = jnp.arange(Bv * G * Tv)
    g = jnp.arange(Bv * G)
    b = jnp.arange(Bv)
    seg = (n[None, :] // Tv == g[:, None]).astype(dtype)            # (B*G, B*G*T)
    qsel = (n[:, None] // (G * Tv) == b[None, :]).astype(dtype)     # (B*G*T, B)
    gsel = (g[:, None] // G == b[None, :]).astype(dtype)            # (B*G, B)
    gmean = ((g[None, :] // G == b[:, None]).astype(jnp.float32) / G).astype(dtype)  # (B, B*G)
    return bh, seg, qsel, gsel, gmean


def prepare_params(p, Bv, G, Tv):
    """One-time conversion to kernel-ready layouts (pre-transposed / fused / zero-padded)."""
    C = p['wq'].shape[0]
    md = MXU_DTYPE
    zeros = jnp.zeros((C, C), jnp.float32)
    bh, seg, qsel, gsel, gmean = build_constants(Bv, G, Tv, C, md)
    return {
        'g1': p['g1'], 'b1': p['b1'],
        'wq64_t': jnp.concatenate([p['wq'].T * jnp.float32(SCALE), zeros], axis=1).astype(md),
        'wkv_t': jnp.concatenate([p['wk'].T, p['wv'].T], axis=1).astype(md),
        'wp64_t': jnp.concatenate([zeros, p['wp'].T], axis=0).astype(md),
        'bp': p['bp'],
        'g2': p['g2'], 'b2': p['b2'],
        'w1_t': p['w1'].T.astype(md),      # (C, HID)
        'bb1': p['bb1'],                   # (1, HID)
        'w2_t': p['w2'].T.astype(md),      # (HID, C)
        'bb2': p['bb2'],                   # (1, C)
        'bh': bh, 'seg': seg, 'qsel': qsel, 'gsel': gsel, 'gmean': gmean,
    }


# ======================= pure-JAX reference (mirrors the PyTorch code) =======================
def ref_forward(x, x_cls, Bv, Tv, Wv, p):
    C = x.shape[-1]
    Hv = (x.shape[1] // Tv) // Wv

    def ln(z, g, b):
        mu = z.mean(-1, keepdims=True)
        var = ((z - mu) ** 2).mean(-1, keepdims=True)
        return (z - mu) / jnp.sqrt(var + EPS) * g.reshape(-1) + b.reshape(-1)

    x_r = x.reshape(Bv, Hv, Wv, Tv, C).reshape(Bv * Hv * Wv, Tv, C)
    cls_rep = jnp.broadcast_to(x_cls, (Bv, Hv * Wv, C)).reshape(Bv * Hv * Wv, 1, C)
    u = jnp.concatenate([cls_rep, x_r], axis=1)
    lnu = ln(u, p['g1'], p['b1'])
    Bp, Nn, _ = lnu.shape

    q = (lnu[:, 0] @ p['wq'].T).reshape(Bp, HEADS, 1, HD) * SCALE
    k = (lnu @ p['wk'].T).reshape(Bp, Nn, HEADS, HD).transpose(0, 2, 1, 3)
    v = (lnu @ p['wv'].T).reshape(Bp, Nn, HEADS, HD).transpose(0, 2, 1, 3)
    attn = jax.nn.softmax(jnp.einsum('bhqd,bhkd->bhqk', q, k), axis=-1)
    ctx = jnp.einsum('bhqk,bhkd->bhqd', attn, v).transpose(0, 2, 1, 3).reshape(Bp, C)
    out = ctx @ p['wp'].T + p['bp'].reshape(-1)

    res = out.reshape(Bv, Hv * Wv, C).mean(axis=1, keepdims=True)
    x_cls1 = x_cls + res
    ln2 = ln(x_cls1, p['g2'], p['b2'])
    h = ln2 @ p['w1'].T + p['bb1'].reshape(-1)
    h = 0.5 * h * (1.0 + jax.lax.erf(h / jnp.sqrt(2.0)))
    y = h @ p['w2'].T + p['bb2'].reshape(-1)
    return x_cls1 + y


if __name__ == "__main__":
    key = jax.random.PRNGKey(0)
    kx, kc, kp = jax.random.split(key, 3)
    x = jax.random.normal(kx, (B, H * W * T, DIM), jnp.float32)    # (2, 128, 32)
    x_cls = jax.random.normal(kc, (B, 1, DIM), jnp.float32)        # (2, 1, 32)
    params = init_params(kp)
    kparams = prepare_params(params, B, H * W, T)

    out = layerscale_block_ca_forward(x, x_cls, B, T, W, kparams)
    out = jax.block_until_ready(out)

    ref = ref_forward(x, x_cls, B, T, W, params)
    assert out.shape == (B, 1, DIM)
    assert jnp.allclose(out, ref, atol=1e-3, rtol=1e-3), "mismatch vs pure-JAX reference"

    print("KERNEL_OK")
</pallas_src>

<mosaic_0001>
module attributes {stable_mosaic.version = 11 : i64} {
  func.func @fused_block_ca_kernel(%arg0: i32, %arg1: memref<256x32xf32, #tpu.memory_space<vmem>>, %arg2: memref<2x32xf32, #tpu.memory_space<vmem>>, %arg3: memref<1x32xf32, #tpu.memory_space<vmem>>, %arg4: memref<1x32xf32, #tpu.memory_space<vmem>>, %arg5: memref<32x64xf32, #tpu.memory_space<vmem>>, %arg6: memref<32x64xf32, #tpu.memory_space<vmem>>, %arg7: memref<64x32xf32, #tpu.memory_space<vmem>>, %arg8: memref<1x32xf32, #tpu.memory_space<vmem>>, %arg9: memref<1x32xf32, #tpu.memory_space<vmem>>, %arg10: memref<1x32xf32, #tpu.memory_space<vmem>>, %arg11: memref<32x128xf32, #tpu.memory_space<vmem>>, %arg12: memref<1x128xf32, #tpu.memory_space<vmem>>, %arg13: memref<128x32xf32, #tpu.memory_space<vmem>>, %arg14: memref<1x32xf32, #tpu.memory_space<vmem>>, %arg15: memref<64x64xf32, #tpu.memory_space<vmem>>, %arg16: memref<32x256xf32, #tpu.memory_space<vmem>>, %arg17: memref<256x2xf32, #tpu.memory_space<vmem>>, %arg18: memref<32x2xf32, #tpu.memory_space<vmem>>, %arg19: memref<2x32xf32, #tpu.memory_space<vmem>>, %arg20: memref<2x32xf32, #tpu.memory_space<vmem>>) attributes {dimension_semantics = [#tpu.dimension_semantics<arbitrary>], iteration_bounds = array<i64: 1>, scalar_prefetch = 0 : i64, scratch_operands = 0 : i64, tpu.core_type = #tpu.core_type<tc>, window_params = [{pipeline_mode = #tpu.pipeline_mode<synchronous>, transform_indices = @transform_0, window_bounds = array<i64: 256, 32>}, {pipeline_mode = #tpu.pipeline_mode<synchronous>, transform_indices = @transform_1, window_bounds = array<i64: 2, 32>}, {pipeline_mode = #tpu.pipeline_mode<synchronous>, transform_indices = @transform_2, window_bounds = array<i64: 1, 32>}, {pipeline_mode = #tpu.pipeline_mode<synchronous>, transform_indices = @transform_3, window_bounds = array<i64: 1, 32>}, {pipeline_mode = #tpu.pipeline_mode<synchronous>, transform_indices = @transform_4, window_bounds = array<i64: 32, 64>}, {pipeline_mode = #tpu.pipeline_mode<synchronous>, transform_indices = @transform_5, window_bounds = array<i64: 32, 64>}, {pipeline_mode = #tpu.pipeline_mode<synchronous>, transform_indices = @transform_6, window_bounds = array<i64: 64, 32>}, {pipeline_mode = #tpu.pipeline_mode<synchronous>, transform_indices = @transform_7, window_bounds = array<i64: 1, 32>}, {pipeline_mode = #tpu.pipeline_mode<synchronous>, transform_indices = @transform_8, window_bounds = array<i64: 1, 32>}, {pipeline_mode = #tpu.pipeline_mode<synchronous>, transform_indices = @transform_9, window_bounds = array<i64: 1, 32>}, {pipeline_mode = #tpu.pipeline_mode<synchronous>, transform_indices = @transform_10, window_bounds = array<i64: 32, 128>}, {pipeline_mode = #tpu.pipeline_mode<synchronous>, transform_indices = @transform_11, window_bounds = array<i64: 1, 128>}, {pipeline_mode = #tpu.pipeline_mode<synchronous>, transform_indices = @transform_12, window_bounds = array<i64: 128, 32>}, {pipeline_mode = #tpu.pipeline_mode<synchronous>, transform_indices = @transform_13, window_bounds = array<i64: 1, 32>}, {pipeline_mode = #tpu.pipeline_mode<synchronous>, transform_indices = @transform_14, window_bounds = array<i64: 64, 64>}, {pipeline_mode = #tpu.pipeline_mode<synchronous>, transform_indices = @transform_15, window_bounds = array<i64: 32, 256>}, {pipeline_mode = #tpu.pipeline_mode<synchronous>, transform_indices = @transform_16, window_bounds = array<i64: 256, 2>}, {pipeline_mode = #tpu.pipeline_mode<synchronous>, transform_indices = @transform_17, window_bounds = array<i64: 32, 2>}, {pipeline_mode = #tpu.pipeline_mode<synchronous>, transform_indices = @transform_18, window_bounds = array<i64: 2, 32>}, {pipeline_mode = #tpu.pipeline_mode<synchronous>, transform_indices = @transform_19, window_bounds = array<i64: 2, 32>}]} {
    %c0 = arith.constant 0 : index
    %c0_0 = arith.constant 0 : index
    %0 = vector.load %arg3[%c0, %c0_0] : memref<1x32xf32, #tpu.memory_space<vmem>>, vector<1x32xf32>
    %c0_1 = arith.constant 0 : index
    %c0_2 = arith.constant 0 : index
    %1 = vector.load %arg4[%c0_1, %c0_2] : memref<1x32xf32, #tpu.memory_space<vmem>>, vector<1x32xf32>
    %c0_3 = arith.constant 0 : index
    %c0_4 = arith.constant 0 : index
    %2 = vector.load %arg5[%c0_3, %c0_4] : memref<32x64xf32, #tpu.memory_space<vmem>>, vector<32x64xf32>
    %c0_5 = arith.constant 0 : index
    %c0_6 = arith.constant 0 : index
    %3 = vector.load %arg6[%c0_5, %c0_6] : memref<32x64xf32, #tpu.memory_space<vmem>>, vector<32x64xf32>
    %c0_7 = arith.constant 0 : index
    %c0_8 = arith.constant 0 : index
    %4 = vector.load %arg7[%c0_7, %c0_8] : memref<64x32xf32, #tpu.memory_space<vmem>>, vector<64x32xf32>
    %c0_9 = arith.constant 0 : index
    %c0_10 = arith.constant 0 : index
    %5 = vector.load %arg8[%c0_9, %c0_10] : memref<1x32xf32, #tpu.memory_space<vmem>>, vector<1x32xf32>
    %c0_11 = arith.constant 0 : index
    %c0_12 = arith.constant 0 : index
    %6 = vector.load %arg15[%c0_11, %c0_12] : memref<64x64xf32, #tpu.memory_space<vmem>>, vector<64x64xf32>
    %c0_13 = arith.constant 0 : index
    %c0_14 = arith.constant 0 : index
    %7 = vector.load %arg16[%c0_13, %c0_14] : memref<32x256xf32, #tpu.memory_space<vmem>>, vector<32x256xf32>
    %c0_15 = arith.constant 0 : index
    %c0_16 = arith.constant 0 : index
    %8 = vector.load %arg17[%c0_15, %c0_16] : memref<256x2xf32, #tpu.memory_space<vmem>>, vector<256x2xf32>
    %c0_17 = arith.constant 0 : index
    %c0_18 = arith.constant 0 : index
    %9 = vector.load %arg18[%c0_17, %c0_18] : memref<32x2xf32, #tpu.memory_space<vmem>>, vector<32x2xf32>
    %c0_19 = arith.constant 0 : index
    %c0_20 = arith.constant 0 : index
    %10 = vector.load %arg19[%c0_19, %c0_20] : memref<2x32xf32, #tpu.memory_space<vmem>>, vector<2x32xf32>
    %c0_21 = arith.constant 0 : index
    %c0_22 = arith.constant 0 : index
    %11 = vector.load %arg1[%c0_21, %c0_22] : memref<256x32xf32, #tpu.memory_space<vmem>>, vector<256x32xf32>
    %cst = arith.constant dense<0.000000e+00> : vector<256xf32>
    %12 = vector.multi_reduction <add>, %11, %cst [1] : vector<256x32xf32> to vector<256xf32>
    %13 = vector.shape_cast %12 : vector<256xf32> to vector<256x1xf32>
    %cst_23 = arith.constant 3.200000e+01 : f32
    %14 = vector.broadcast %cst_23 : f32 to vector<256x1xf32>
    %15 = arith.divf %13, %14 : vector<256x1xf32>
    %16 = vector.broadcast %15 : vector<256x1xf32> to vector<256x32xf32>
    %17 = arith.subf %11, %16 : vector<256x32xf32>
    %18 = arith.mulf %17, %17 : vector<256x32xf32>
    %cst_24 = arith.constant dense<0.000000e+00> : vector<256xf32>
    %19 = vector.multi_reduction <add>, %18, %cst_24 [1] : vector<256x32xf32> to vector<256xf32>
    %20 = vector.shape_cast %19 : vector<256xf32> to vector<256x1xf32>
    %cst_25 = arith.constant 3.200000e+01 : f32
    %21 = vector.broadcast %cst_25 : f32 to vector<256x1xf32>
    %22 = arith.divf %20, %21 : vector<256x1xf32>
    %23 = vector.broadcast %15 : vector<256x1xf32> to vector<256x32xf32>
    %24 = arith.subf %11, %23 : vector<256x32xf32>
    %cst_26 = arith.constant 9.99999974E-6 : f32
    %25 = vector.broadcast %cst_26 : f32 to vector<256x1xf32>
    %26 = arith.addf %22, %25 : vector<256x1xf32>
    %27 = math.rsqrt %26 : vector<256x1xf32>
    %28 = vector.broadcast %27 : vector<256x1xf32> to vector<256x32xf32>
    %29 = arith.mulf %24, %28 : vector<256x32xf32>
    %30 = vector.broadcast %0 : vector<1x32xf32> to vector<256x32xf32>
    %31 = arith.mulf %29, %30 : vector<256x32xf32>
    %32 = vector.broadcast %1 : vector<1x32xf32> to vector<256x32xf32>
    %33 = arith.addf %31, %32 : vector<256x32xf32>
    %c0_27 = arith.constant 0 : index
    %c0_28 = arith.constant 0 : index
    %34 = vector.load %arg2[%c0_27, %c0_28] : memref<2x32xf32, #tpu.memory_space<vmem>>, vector<2x32xf32>
    %cst_29 = arith.constant dense<0.000000e+00> : vector<2xf32>
    %35 = vector.multi_reduction <add>, %34, %cst_29 [1] : vector<2x32xf32> to vector<2xf32>
    %36 = vector.shape_cast %35 : vector<2xf32> to vector<2x1xf32>
    %cst_30 = arith.constant 3.200000e+01 : f32
    %37 = vector.broadcast %cst_30 : f32 to vector<2x1xf32>
    %38 = arith.divf %36, %37 : vector<2x1xf32>
    %39 = vector.broadcast %38 : vector<2x1xf32> to vector<2x32xf32>
    %40 = arith.subf %34, %39 : vector<2x32xf32>
    %41 = arith.mulf %40, %40 : vector<2x32xf32>
    %cst_31 = arith.constant dense<0.000000e+00> : vector<2xf32>
    %42 = vector.multi_reduction <add>, %41, %cst_31 [1] : vector<2x32xf32> to vector<2xf32>
    %43 = vector.shape_cast %42 : vector<2xf32> to vector<2x1xf32>
    %cst_32 = arith.constant 3.200000e+01 : f32
    %44 = vector.broadcast %cst_32 : f32 to vector<2x1xf32>
    %45 = arith.divf %43, %44 : vector<2x1xf32>
    %46 = vector.broadcast %38 : vector<2x1xf32> to vector<2x32xf32>
    %47 = arith.subf %34, %46 : vector<2x32xf32>
    %cst_33 = arith.constant 9.99999974E-6 : f32
    %48 = vector.broadcast %cst_33 : f32 to vector<2x1xf32>
    %49 = arith.addf %45, %48 : vector<2x1xf32>
    %50 = math.rsqrt %49 : vector<2x1xf32>
    %51 = vector.broadcast %50 : vector<2x1xf32> to vector<2x32xf32>
    %52 = arith.mulf %47, %51 : vector<2x32xf32>
    %53 = vector.broadcast %0 : vector<1x32xf32> to vector<2x32xf32>
    %54 = arith.mulf %52, %53 : vector<2x32xf32>
    %55 = vector.broadcast %1 : vector<1x32xf32> to vector<2x32xf32>
    %56 = arith.addf %54, %55 : vector<2x32xf32>
    %cst_34 = arith.constant dense<0.000000e+00> : vector<2x64xf32>
    %57 = tpu.matmul %56, %2, %cst_34 {dimension_numbers = #tpu.dot_dimension_numbers<[1], [0], [0], [1], [0, 0, 1, 1], [], []>} : vector<2x32xf32>, vector<32x64xf32>, vector<2x64xf32> -> vector<2x64xf32>
    %cst_35 = arith.constant dense<0.000000e+00> : vector<2x64xf32>
    %58 = tpu.matmul %56, %3, %cst_35 {dimension_numbers = #tpu.dot_dimension_numbers<[1], [0], [0], [1], [0, 0, 1, 1], [], []>} : vector<2x32xf32>, vector<32x64xf32>, vector<2x64xf32> -> vector<2x64xf32>
    %cst_36 = arith.constant dense<0.000000e+00> : vector<256x64xf32>
    %59 = tpu.matmul %33, %3, %cst_36 {dimension_numbers = #tpu.dot_dimension_numbers<[1], [0], [0], [1], [0, 0, 1, 1], [], []>} : vector<256x32xf32>, vector<32x64xf32>, vector<256x64xf32> -> vector<256x64xf32>
    %cst_37 = arith.constant dense<0.000000e+00> : vector<256x64xf32>
    %60 = tpu.matmul %8, %57, %cst_37 {dimension_numbers = #tpu.dot_dimension_numbers<[1], [0], [0], [1], [0, 0, 1, 1], [], []>} : vector<256x2xf32>, vector<2x64xf32>, vector<256x64xf32> -> vector<256x64xf32>
    %61 = arith.mulf %60, %59 : vector<256x64xf32>
    %cst_38 = arith.constant dense<0.000000e+00> : vector<256x64xf32>
    %62 = tpu.matmul %61, %6, %cst_38 {dimension_numbers = #tpu.dot_dimension_numbers<[1], [0], [0], [1], [0, 0, 1, 1], [], []>} : vector<256x64xf32>, vector<64x64xf32>, vector<256x64xf32> -> vector<256x64xf32>
    %63 = arith.mulf %57, %58 : vector<2x64xf32>
    %cst_39 = arith.constant dense<0.000000e+00> : vector<2x64xf32>
    %64 = tpu.matmul %63, %6, %cst_39 {dimension_numbers = #tpu.dot_dimension_numbers<[1], [0], [0], [1], [0, 0, 1, 1], [], []>} : vector<2x64xf32>, vector<64x64xf32>, vector<2x64xf32> -> vector<2x64xf32>
    %cst_40 = arith.constant dense<0xFF800000> : vector<64xf32>
    %65 = vector.multi_reduction <maximumf>, %62, %cst_40 [0] : vector<256x64xf32> to vector<64xf32>
    %66 = vector.shape_cast %65 : vector<64xf32> to vector<1x64xf32>
    %cst_41 = arith.constant dense<0xFF800000> : vector<64xf32>
    %67 = vector.multi_reduction <maximumf>, %64, %cst_41 [0] : vector<2x64xf32> to vector<64xf32>
    %68 = vector.shape_cast %67 : vector<64xf32> to vector<1x64xf32>
    %69 = arith.maximumf %66, %68 : vector<1x64xf32>
    %70 = vector.broadcast %69 : vector<1x64xf32> to vector<256x64xf32>
    %71 = arith.subf %62, %70 : vector<256x64xf32>
    %72 = math.exp %71 : vector<256x64xf32>
    %73 = vector.broadcast %69 : vector<1x64xf32> to vector<2x64xf32>
    %74 = arith.subf %64, %73 : vector<2x64xf32>
    %75 = math.exp %74 : vector<2x64xf32>
    %76 = arith.mulf %72, %59 : vector<256x64xf32>
    %77 = tpu.concatenate %72, %76 in 1 : vector<256x64xf32>, vector<256x64xf32> -> vector<256x128xf32>
    %78 = arith.mulf %75, %58 : vector<2x64xf32>
    %79 = tpu.concatenate %75, %78 in 1 : vector<2x64xf32>, vector<2x64xf32> -> vector<2x128xf32>
    %cst_42 = arith.constant dense<0.000000e+00> : vector<32x128xf32>
    %80 = tpu.matmul %7, %77, %cst_42 {dimension_numbers = #tpu.dot_dimension_numbers<[1], [0], [0], [1], [0, 0, 1, 1], [], []>} : vector<32x256xf32>, vector<256x128xf32>, vector<32x128xf32> -> vector<32x128xf32>
    %cst_43 = arith.constant dense<0.000000e+00> : vector<32x128xf32>
    %81 = tpu.matmul %9, %79, %cst_43 {dimension_numbers = #tpu.dot_dimension_numbers<[1], [0], [0], [1], [0, 0, 1, 1], [], []>} : vector<32x2xf32>, vector<2x128xf32>, vector<32x128xf32> -> vector<32x128xf32>
    %82 = arith.addf %80, %81 : vector<32x128xf32>
    %83 = vector.extract_strided_slice %82 {offsets = [0, 0], sizes = [32, 64], strides = [1, 1]} : vector<32x128xf32> to vector<32x64xf32>
    %84 = vector.extract_strided_slice %82 {offsets = [0, 64], sizes = [32, 64], strides = [1, 1]} : vector<32x128xf32> to vector<32x64xf32>
    %85 = tpu.reciprocal %83 {approx = true} : vector<32x64xf32> -> vector<32x64xf32>
    %86 = arith.mulf %84, %85 : vector<32x64xf32>
    %cst_44 = arith.constant dense<0.000000e+00> : vector<2x64xf32>
    %87 = tpu.matmul %10, %86, %cst_44 {dimension_numbers = #tpu.dot_dimension_numbers<[1], [0], [0], [1], [0, 0, 1, 1], [], []>} : vector<2x32xf32>, vector<32x64xf32>, vector<2x64xf32> -> vector<2x64xf32>
    %cst_45 = arith.constant dense<0.000000e+00> : vector<2x32xf32>
    %88 = tpu.matmul %87, %4, %cst_45 {dimension_numbers = #tpu.dot_dimension_numbers<[1], [0], [0], [1], [0, 0, 1, 1], [], []>} : vector<2x64xf32>, vector<64x32xf32>, vector<2x32xf32> -> vector<2x32xf32>
    %89 = vector.broadcast %5 : vector<1x32xf32> to vector<2x32xf32>
    %90 = arith.addf %88, %89 : vector<2x32xf32>
    %91 = arith.addf %34, %90 : vector<2x32xf32>
    %c0_46 = arith.constant 0 : index
    %c0_47 = arith.constant 0 : index
    %92 = vector.load %arg9[%c0_46, %c0_47] : memref<1x32xf32, #tpu.memory_space<vmem>>, vector<1x32xf32>
    %c0_48 = arith.constant 0 : index
    %c0_49 = arith.constant 0 : index
    %93 = vector.load %arg10[%c0_48, %c0_49] : memref<1x32xf32, #tpu.memory_space<vmem>>, vector<1x32xf32>
    %cst_50 = arith.constant dense<0.000000e+00> : vector<2xf32>
    %94 = vector.multi_reduction <add>, %91, %cst_50 [1] : vector<2x32xf32> to vector<2xf32>
    %95 = vector.shape_cast %94 : vector<2xf32> to vector<2x1xf32>
    %cst_51 = arith.constant 3.200000e+01 : f32
    %96 = vector.broadcast %cst_51 : f32 to vector<2x1xf32>
    %97 = arith.divf %95, %96 : vector<2x1xf32>
    %98 = vector.broadcast %97 : vector<2x1xf32> to vector<2x32xf32>
    %99 = arith.subf %91, %98 : vector<2x32xf32>
    %100 = arith.mulf %99, %99 : vector<2x32xf32>
    %cst_52 = arith.constant dense<0.000000e+00> : vector<2xf32>
    %101 = vector.multi_reduction <add>, %100, %cst_52 [1] : vector<2x32xf32> to vector<2xf32>
    %102 = vector.shape_cast %101 : vector<2xf32> to vector<2x1xf32>
    %cst_53 = arith.constant 3.200000e+01 : f32
    %103 = vector.broadcast %cst_53 : f32 to vector<2x1xf32>
    %104 = arith.divf %102, %103 : vector<2x1xf32>
    %105 = vector.broadcast %97 : vector<2x1xf32> to vector<2x32xf32>
    %106 = arith.subf %91, %105 : vector<2x32xf32>
    %cst_54 = arith.constant 9.99999974E-6 : f32
    %107 = vector.broadcast %cst_54 : f32 to vector<2x1xf32>
    %108 = arith.addf %104, %107 : vector<2x1xf32>
    %109 = math.rsqrt %108 : vector<2x1xf32>
    %110 = vector.broadcast %109 : vector<2x1xf32> to vector<2x32xf32>
    %111 = arith.mulf %106, %110 : vector<2x32xf32>
    %112 = vector.broadcast %92 : vector<1x32xf32> to vector<2x32xf32>
    %113 = arith.mulf %111, %112 : vector<2x32xf32>
    %114 = vector.broadcast %93 : vector<1x32xf32> to vector<2x32xf32>
    %115 = arith.addf %113, %114 : vector<2x32xf32>
    %c0_55 = arith.constant 0 : index
    %c0_56 = arith.constant 0 : index
    %116 = vector.load %arg11[%c0_55, %c0_56] : memref<32x128xf32, #tpu.memory_space<vmem>>, vector<32x128xf32>
    %cst_57 = arith.constant dense<0.000000e+00> : vector<2x128xf32>
    %117 = tpu.matmul %115, %116, %cst_57 {dimension_numbers = #tpu.dot_dimension_numbers<[1], [0], [0], [1], [0, 0, 1, 1], [], []>} : vector<2x32xf32>, vector<32x128xf32>, vector<2x128xf32> -> vector<2x128xf32>
    %c0_58 = arith.constant 0 : index
    %c0_59 = arith.constant 0 : index
    %118 = vector.load %arg12[%c0_58, %c0_59] : memref<1x128xf32, #tpu.memory_space<vmem>>, vector<1x128xf32>
    %119 = vector.broadcast %118 : vector<1x128xf32> to vector<2x128xf32>
    %120 = arith.addf %117, %119 : vector<2x128xf32>
    %cst_60 = arith.constant 5.000000e-01 : f32
    %121 = vector.broadcast %cst_60 : f32 to vector<2x128xf32>
    %122 = arith.mulf %121, %120 : vector<2x128xf32>
    %cst_61 = arith.constant 0.707106769 : f32
    %123 = vector.broadcast %cst_61 : f32 to vector<2x128xf32>
    %124 = arith.mulf %120, %123 : vector<2x128xf32>
    %125 = math.erf %124 : vector<2x128xf32>
    %cst_62 = arith.constant 1.000000e+00 : f32
    %126 = vector.broadcast %cst_62 : f32 to vector<2x128xf32>
    %127 = arith.addf %126, %125 : vector<2x128xf32>
    %128 = arith.mulf %122, %127 : vector<2x128xf32>
    %c0_63 = arith.constant 0 : index
    %c0_64 = arith.constant 0 : index
    %129 = vector.load %arg13[%c0_63, %c0_64] : memref<128x32xf32, #tpu.memory_space<vmem>>, vector<128x32xf32>
    %cst_65 = arith.constant dense<0.000000e+00> : vector<2x32xf32>
    %130 = tpu.matmul %128, %129, %cst_65 {dimension_numbers = #tpu.dot_dimension_numbers<[1], [0], [0], [1], [0, 0, 1, 1], [], []>} : vector<2x128xf32>, vector<128x32xf32>, vector<2x32xf32> -> vector<2x32xf32>
    %c0_66 = arith.constant 0 : index
    %c0_67 = arith.constant 0 : index
    %131 = vector.load %arg14[%c0_66, %c0_67] : memref<1x32xf32, #tpu.memory_space<vmem>>, vector<1x32xf32>
    %132 = vector.broadcast %131 : vector<1x32xf32> to vector<2x32xf32>
    %133 = arith.addf %130, %132 : vector<2x32xf32>
    %134 = arith.addf %91, %133 : vector<2x32xf32>
    %c0_68 = arith.constant 0 : index
    %c0_69 = arith.constant 0 : index
    %135 = vector.load %arg20[%c0_68, %c0_69] : memref<2x32xf32, #tpu.memory_space<vmem>>, vector<2x32xf32>
    tpu.vector_store %arg20[%c0_68, %c0_69], %134 {strides = array<i32>} : memref<2x32xf32, #tpu.memory_space<vmem>>, vector<2x32xf32>,
    return
  }
  func.func @transform_0(%arg0: i32) -> (i32, i32) {
    %c0_i32 = arith.constant 0 : i32
    %c0_i32_0 = arith.constant 0 : i32
    %c0_i32_1 = arith.constant 0 : i32
    return %c0_i32, %c0_i32_0 : i32, i32
  }
  func.func @transform_1(%arg0: i32) -> (i32, i32) {
    %c0_i32 = arith.constant 0 : i32
    %c0_i32_0 = arith.constant 0 : i32
    %c0_i32_1 = arith.constant 0 : i32
    return %c0_i32, %c0_i32_0 : i32, i32
  }
  func.func @transform_2(%arg0: i32) -> (i32, i32) {
    %c0_i32 = arith.constant 0 : i32
    %c0_i32_0 = arith.constant 0 : i32
    %c0_i32_1 = arith.constant 0 : i32
    return %c0_i32, %c0_i32_0 : i32, i32
  }
  func.func @transform_3(%arg0: i32) -> (i32, i32) {
    %c0_i32 = arith.constant 0 : i32
    %c0_i32_0 = arith.constant 0 : i32
    %c0_i32_1 = arith.constant 0 : i32
    return %c0_i32, %c0_i32_0 : i32, i32
  }
  func.func @transform_4(%arg0: i32) -> (i32, i32) {
    %c0_i32 = arith.constant 0 : i32
    %c0_i32_0 = arith.constant 0 : i32
    %c0_i32_1 = arith.constant 0 : i32
    return %c0_i32, %c0_i32_0 : i32, i32
  }
  func.func @transform_5(%arg0: i32) -> (i32, i32) {
    %c0_i32 = arith.constant 0 : i32
    %c0_i32_0 = arith.constant 0 : i32
    %c0_i32_1 = arith.constant 0 : i32
    return %c0_i32, %c0_i32_0 : i32, i32
  }
  func.func @transform_6(%arg0: i32) -> (i32, i32) {
    %c0_i32 = arith.constant 0 : i32
    %c0_i32_0 = arith.constant 0 : i32
    %c0_i32_1 = arith.constant 0 : i32
    return %c0_i32, %c0_i32_0 : i32, i32
  }
  func.func @transform_7(%arg0: i32) -> (i32, i32) {
    %c0_i32 = arith.constant 0 : i32
    %c0_i32_0 = arith.constant 0 : i32
    %c0_i32_1 = arith.constant 0 : i32
    return %c0_i32, %c0_i32_0 : i32, i32
  }
  func.func @transform_8(%arg0: i32) -> (i32, i32) {
    %c0_i32 = arith.constant 0 : i32
    %c0_i32_0 = arith.constant 0 : i32
    %c0_i32_1 = arith.constant 0 : i32
    return %c0_i32, %c0_i32_0 : i32, i32
  }
  func.func @transform_9(%arg0: i32) -> (i32, i32) {
    %c0_i32 = arith.constant 0 : i32
    %c0_i32_0 = arith.constant 0 : i32
    %c0_i32_1 = arith.constant 0 : i32
    return %c0_i32, %c0_i32_0 : i32, i32
  }
  func.func @transform_10(%arg0: i32) -> (i32, i32) {
    %c0_i32 = arith.constant 0 : i32
    %c0_i32_0 = arith.constant 0 : i32
    %c0_i32_1 = arith.constant 0 : i32
    return %c0_i32, %c0_i32_0 : i32, i32
  }
  func.func @transform_11(%arg0: i32) -> (i32, i32) {
    %c0_i32 = arith.constant 0 : i32
    %c0_i32_0 = arith.constant 0 : i32
    %c0_i32_1 = arith.constant 0 : i32
    return %c0_i32, %c0_i32_0 : i32, i32
  }
  func.func @transform_12(%arg0: i32) -> (i32, i32) {
    %c0_i32 = arith.constant 0 : i32
    %c0_i32_0 = arith.constant 0 : i32
    %c0_i32_1 = arith.constant 0 : i32
    return %c0_i32, %c0_i32_0 : i32, i32
  }
  func.func @transform_13(%arg0: i32) -> (i32, i32) {
    %c0_i32 = arith.constant 0 : i32
    %c0_i32_0 = arith.constant 0 : i32
    %c0_i32_1 = arith.constant 0 : i32
    return %c0_i32, %c0_i32_0 : i32, i32
  }
  func.func @transform_14(%arg0: i32) -> (i32, i32) {
    %c0_i32 = arith.constant 0 : i32
    %c0_i32_0 = arith.constant 0 : i32
    %c0_i32_1 = arith.constant 0 : i32
    return %c0_i32, %c0_i32_0 : i32, i32
  }
  func.func @transform_15(%arg0: i32) -> (i32, i32) {
    %c0_i32 = arith.constant 0 : i32
    %c0_i32_0 = arith.constant 0 : i32
    %c0_i32_1 = arith.constant 0 : i32
    return %c0_i32, %c0_i32_0 : i32, i32
  }
  func.func @transform_16(%arg0: i32) -> (i32, i32) {
    %c0_i32 = arith.constant 0 : i32
    %c0_i32_0 = arith.constant 0 : i32
    %c0_i32_1 = arith.constant 0 : i32
    return %c0_i32, %c0_i32_0 : i32, i32
  }
  func.func @transform_17(%arg0: i32) -> (i32, i32) {
    %c0_i32 = arith.constant 0 : i32
    %c0_i32_0 = arith.constant 0 : i32
    %c0_i32_1 = arith.constant 0 : i32
    return %c0_i32, %c0_i32_0 : i32, i32
  }
  func.func @transform_18(%arg0: i32) -> (i32, i32) {
    %c0_i32 = arith.constant 0 : i32
    %c0_i32_0 = arith.constant 0 : i32
    %c0_i32_1 = arith.constant 0 : i32
    return %c0_i32, %c0_i32_0 : i32, i32
  }
  func.func @transform_19(%arg0: i32) -> (i32, i32) {
    %c0_i32 = arith.constant 0 : i32
    %c0_i32_0 = arith.constant 0 : i32
    %c0_i32_1 = arith.constant 0 : i32
    return %c0_i32, %c0_i32_0 : i32, i32
  }
}

</mosaic_0001>

<llo_original>
// kernel: tpu_custom_call.1
$region0: #{tpu_custom_call.1}
  #allocation0 [shape = 'u32[]', space=smem, size = 0x4, offset = 0x4, fixed_abs, tag = 'smem constant byte address 0x4 - core index']
  #allocation1 [shape = 'u32[144,128]{1,0:T(1,128)}', space=vmem, size = 0x12000, scoped, tag = 'internal scratch']
  %s0 = inlined_call_operand.vmem [shape: f32[256,32], index: 0, kind: input, shape index: {}]
  %s1 = inlined_call_operand.vmem [shape: f32[2,32], index: 1, kind: input, shape index: {}]
  %s2 = inlined_call_operand.vmem [shape: f32[1,32], index: 2, kind: input, shape index: {}]
  %s3 = inlined_call_operand.vmem [shape: f32[1,32], index: 3, kind: input, shape index: {}]
  %s4 = inlined_call_operand.vmem [shape: f32[32,64], index: 4, kind: input, shape index: {}]
  %s5 = inlined_call_operand.vmem [shape: f32[32,64], index: 5, kind: input, shape index: {}]
  %s6 = inlined_call_operand.vmem [shape: f32[64,32], index: 6, kind: input, shape index: {}]
  %s7 = inlined_call_operand.vmem [shape: f32[1,32], index: 7, kind: input, shape index: {}]
  %s8 = inlined_call_operand.vmem [shape: f32[1,32], index: 8, kind: input, shape index: {}]
  %s9 = inlined_call_operand.vmem [shape: f32[1,32], index: 9, kind: input, shape index: {}]
  %s10 = inlined_call_operand.vmem [shape: f32[32,128], index: 10, kind: input, shape index: {}]
  %s11 = inlined_call_operand.vmem [shape: f32[1,128], index: 11, kind: input, shape index: {}]
  %s12 = inlined_call_operand.vmem [shape: f32[128,32], index: 12, kind: input, shape index: {}]
  %s13 = inlined_call_operand.vmem [shape: f32[1,32], index: 13, kind: input, shape index: {}]
  %s14 = inlined_call_operand.vmem [shape: f32[64,64], index: 14, kind: input, shape index: {}]
  %s15 = inlined_call_operand.vmem [shape: f32[32,256], index: 15, kind: input, shape index: {}]
  %s16 = inlined_call_operand.vmem [shape: f32[256,2], index: 16, kind: input, shape index: {}]
  %s17 = inlined_call_operand.vmem [shape: f32[32,2], index: 17, kind: input, shape index: {}]
  %s18 = inlined_call_operand.vmem [shape: f32[2,32], index: 18, kind: input, shape index: {}]
  %s19 = inlined_call_operand.hbm [shape: f32[2,32], index: 19, kind: output, shape index: {}]
  %s20 = sld [smem:[#allocation0]]
  $region86: #{tpu_custom_call.1} parent=0
    _
  %s22 = ssub.s32 1, %s20
  %s23 = scalar_select 0, %s22, %s20
  $region1: #{tpu_custom_call.1} parent=0
    #allocation2 [shape = 'u8[1024]{0}', space=vmem, size = 0x400, scoped, tag = 'output window, operand 0, single buffered']
    #allocation3 [shape = 's32[1]{0}', space=sflag, size = 0x4, scoped, tag = 'scoped memory for tpu_custom_call.1']
    %24 = vsyncpa [#allocation3], 0
    // Predicated region
    $region2: #{tpu_custom_call.1} parent=1 // pred_check
      _
    $region3: #{tpu_custom_call.1} parent=1 // pred_check_branch
      %26 = sbr.rel (0) target = $region5
    $region4: #{tpu_custom_call.1} parent=1 // pred_region
      _
    $region5: #{tpu_custom_call.1} parent=1 // pred_fallthru
      _
    // Predicated region
    $region6: #{tpu_custom_call.1} parent=1 // pred_check
      _
    $region7: #{tpu_custom_call.1} parent=1 // pred_check_branch
      %28 = sbr.rel (0) target = $region9
    $region8: #{tpu_custom_call.1} parent=1 // pred_region
      _
    $region9: #{tpu_custom_call.1} parent=1 // pred_fallthru
      _
    // Predicated region
    $region10: #{tpu_custom_call.1} parent=1 // pred_check
      _
    $region11: #{tpu_custom_call.1} parent=1 // pred_check_branch
      %30 = sbr.rel (0) target = $region13
    $region12: #{tpu_custom_call.1} parent=1 // pred_region
      _
    $region13: #{tpu_custom_call.1} parent=1 // pred_fallthru
      _
    // Predicated region
    $region14: #{tpu_custom_call.1} parent=1 // pred_check
      _
    $region15: #{tpu_custom_call.1} parent=1 // pred_check_branch
      %32 = sbr.rel (0) target = $region17
    $region16: #{tpu_custom_call.1} parent=1 // pred_region
      _
    $region17: #{tpu_custom_call.1} parent=1 // pred_fallthru
      _
    // Predicated region
    $region18: #{tpu_custom_call.1} parent=1 // pred_check
      _
    $region19: #{tpu_custom_call.1} parent=1 // pred_check_branch
      %34 = sbr.rel (0) target = $region21
    $region20: #{tpu_custom_call.1} parent=1 // pred_region
      _
    $region21: #{tpu_custom_call.1} parent=1 // pred_fallthru
      _
    // Predicated region
    $region22: #{tpu_custom_call.1} parent=1 // pred_check
      _
    $region23: #{tpu_custom_call.1} parent=1 // pred_check_branch
      %36 = sbr.rel (0) target = $region25
    $region24: #{tpu_custom_call.1} parent=1 // pred_region
      _
    $region25: #{tpu_custom_call.1} parent=1 // pred_fallthru
      _
    // Predicated region
    $region26: #{tpu_custom_call.1} parent=1 // pred_check
      _
    $region27: #{tpu_custom_call.1} parent=1 // pred_check_branch
      %38 = sbr.rel (0) target = $region29
    $region28: #{tpu_custom_call.1} parent=1 // pred_region
      _
    $region29: #{tpu_custom_call.1} parent=1 // pred_fallthru
      _
    // Predicated region
    $region30: #{tpu_custom_call.1} parent=1 // pred_check
      _
    $region31: #{tpu_custom_call.1} parent=1 // pred_check_branch
      %40 = sbr.rel (0) target = $region33
    $region32: #{tpu_custom_call.1} parent=1 // pred_region
      _
    $region33: #{tpu_custom_call.1} parent=1 // pred_fallthru
      _
    // Predicated region
    $region34: #{tpu_custom_call.1} parent=1 // pred_check
      _
    $region35: #{tpu_custom_call.1} parent=1 // pred_check_branch
      %42 = sbr.rel (0) target = $region37
    $region36: #{tpu_custom_call.1} parent=1 // pred_region
      _
    $region37: #{tpu_custom_call.1} parent=1 // pred_fallthru
      _
    // Predicated region
    $region38: #{tpu_custom_call.1} parent=1 // pred_check
      _
    $region39: #{tpu_custom_call.1} parent=1 // pred_check_branch
      %44 = sbr.rel (0) target = $region41
    $region40: #{tpu_custom_call.1} parent=1 // pred_region
      _
    $region41: #{tpu_custom_call.1} parent=1 // pred_fallthru
      _
    // Predicated region
    $region42: #{tpu_custom_call.1} parent=1 // pred_check
      _
    $region43: #{tpu_custom_call.1} parent=1 // pred_check_branch
      %46 = sbr.rel (0) target = $region45
    $region44: #{tpu_custom_call.1} parent=1 // pred_region
      _
    $region45: #{tpu_custom_call.1} parent=1 // pred_fallthru
      _
    // Predicated region
    $region46: #{tpu_custom_call.1} parent=1 // pred_check
      _
    $region47: #{tpu_custom_call.1} parent=1 // pred_check_branch
      %48 = sbr.rel (0) target = $region49
    $region48: #{tpu_custom_call.1} parent=1 // pred_region
      _
    $region49: #{tpu_custom_call.1} parent=1 // pred_fallthru
      _
    // Predicated region
    $region50: #{tpu_custom_call.1} parent=1 // pred_check
      _
    $region51: #{tpu_custom_call.1} parent=1 // pred_check_branch
      %50 = sbr.rel (0) target = $region53
    $region52: #{tpu_custom_call.1} parent=1 // pred_region
      _
    $region53: #{tpu_custom_call.1} parent=1 // pred_fallthru
      _
    // Predicated region
    $region54: #{tpu_custom_call.1} parent=1 // pred_check
      _
    $region55: #{tpu_custom_call.1} parent=1 // pred_check_branch
      %52 = sbr.rel (0) target = $region57
    $region56: #{tpu_custom_call.1} parent=1 // pred_region
      _
    $region57: #{tpu_custom_call.1} parent=1 // pred_fallthru
      _
    // Predicated region
    $region58: #{tpu_custom_call.1} parent=1 // pred_check
      _
    $region59: #{tpu_custom_call.1} parent=1 // pred_check_branch
      %54 = sbr.rel (0) target = $region61
    $region60: #{tpu_custom_call.1} parent=1 // pred_region
      _
    $region61: #{tpu_custom_call.1} parent=1 // pred_fallthru
      _
    // Predicated region
    $region62: #{tpu_custom_call.1} parent=1 // pred_check
      _
    $region63: #{tpu_custom_call.1} parent=1 // pred_check_branch
      %56 = sbr.rel (0) target = $region65
    $region64: #{tpu_custom_call.1} parent=1 // pred_region
      _
    $region65: #{tpu_custom_call.1} parent=1 // pred_fallthru
      _
    // Predicated region
    $region66: #{tpu_custom_call.1} parent=1 // pred_check
      _
    $region67: #{tpu_custom_call.1} parent=1 // pred_check_branch
      %58 = sbr.rel (0) target = $region69
    $region68: #{tpu_custom_call.1} parent=1 // pred_region
      _
    $region69: #{tpu_custom_call.1} parent=1 // pred_fallthru
      _
    // Predicated region
    $region70: #{tpu_custom_call.1} parent=1 // pred_check
      _
    $region71: #{tpu_custom_call.1} parent=1 // pred_check_branch
      %60 = sbr.rel (0) target = $region73
    $region72: #{tpu_custom_call.1} parent=1 // pred_region
      _
    $region73: #{tpu_custom_call.1} parent=1 // pred_fallthru
      _
    // Predicated region
    $region74: #{tpu_custom_call.1} parent=1 // pred_check
      _
    $region75: #{tpu_custom_call.1} parent=1 // pred_check_branch
      %62 = sbr.rel (0) target = $region77
    $region76: #{tpu_custom_call.1} parent=1 // pred_region
      _
    $region77: #{tpu_custom_call.1} parent=1 // pred_fallthru
      _
    %v63 = vld [vmem:[%s2] sm:$0x1]
    %v64 = vld [vmem:[%s3] sm:$0x1]
    %v65 = vld [vmem:[%s4] sm:$0xff]
    %v66 = vld [vmem:[%s4 + $0x8] sm:$0xff]
    %v67 = vld [vmem:[%s4 + $0x10] sm:$0xff]
    %v68 = vld [vmem:[%s4 + $0x18] sm:$0xff]
    %v69 = vld [vmem:[%s5] sm:$0xff]
    %v70 = vld [vmem:[%s5 + $0x8] sm:$0xff]
    %v71 = vld [vmem:[%s5 + $0x10] sm:$0xff]
    %v72 = vld [vmem:[%s5 + $0x18] sm:$0xff]
    %v73 = vld [vmem:[%s6] sm:$0xff]
    %v74 = vld [vmem:[%s6 + $0x8] sm:$0xff]
    %v75 = vld [vmem:[%s6 + $0x10] sm:$0xff]
    %v76 = vld [vmem:[%s6 + $0x18] sm:$0xff]
    %v77 = vld [vmem:[%s6 + $0x20] sm:$0xff]
    %v78 = vld [vmem:[%s6 + $0x28] sm:$0xff]
    %v79 = vld [vmem:[%s6 + $0x30] sm:$0xff]
    %v80 = vld [vmem:[%s6 + $0x38] sm:$0xff]
    %v81 = vld [vmem:[%s7] sm:$0x1]
    %v82 = vld [vmem:[%s14] sm:$0xff]
    %v83 = vld [vmem:[%s14 + $0x8] sm:$0xff]
    %v84 = vld [vmem:[%s14 + $0x10] sm:$0xff]
    %v85 = vld [vmem:[%s14 + $0x18] sm:$0xff]
    %v86 = vld [vmem:[%s14 + $0x20] sm:$0xff]
    %v87 = vld [vmem:[%s14 + $0x28] sm:$0xff]
    %v88 = vld [vmem:[%s14 + $0x30] sm:$0xff]
    %v89 = vld [vmem:[%s14 + $0x38] sm:$0xff]
    %v90 = vld [vmem:[%s15] sm:$0xff]
    %v91 = vld [vmem:[%s15 + $0x8] sm:$0xff]
    %v92 = vld [vmem:[%s15 + $0x10] sm:$0xff]
    %v93 = vld [vmem:[%s15 + $0x18] sm:$0xff]
    %v94 = vld [vmem:[%s15 + $0x20] sm:$0xff]
    %v95 = vld [vmem:[%s15 + $0x28] sm:$0xff]
    %v96 = vld [vmem:[%s15 + $0x30] sm:$0xff]
    %v97 = vld [vmem:[%s15 + $0x38] sm:$0xff]
    %v98 = vld [vmem:[%s16] sm:$0xff]
    %v99 = vld [vmem:[%s16 + $0x8] sm:$0xff]
    %v100 = vld [vmem:[%s16 + $0x10] sm:$0xff]
    %v101 = vld [vmem:[%s16 + $0x18] sm:$0xff]
    %v102 = vld [vmem:[%s16 + $0x20] sm:$0xff]
    %v103 = vld [vmem:[%s16 + $0x28] sm:$0xff]
    %v104 = vld [vmem:[%s16 + $0x30] sm:$0xff]
    %v105 = vld [vmem:[%s16 + $0x38] sm:$0xff]
    %v106 = vld [vmem:[%s16 + $0x40] sm:$0xff]
    %v107 = vld [vmem:[%s16 + $0x48] sm:$0xff]
    %v108 = vld [vmem:[%s16 + $0x50] sm:$0xff]
    %v109 = vld [vmem:[%s16 + $0x58] sm:$0xff]
    %v110 = vld [vmem:[%s16 + $0x60] sm:$0xff]
    %v111 = vld [vmem:[%s16 + $0x68] sm:$0xff]
    %v112 = vld [vmem:[%s16 + $0x70] sm:$0xff]
    %v113 = vld [vmem:[%s16 + $0x78] sm:$0xff]
    %v114 = vld [vmem:[%s16 + $0x80] sm:$0xff]
    %v115 = vld [vmem:[%s16 + $0x88] sm:$0xff]
    %v116 = vld [vmem:[%s16 + $0x90] sm:$0xff]
    %v117 = vld [vmem:[%s16 + $0x98] sm:$0xff]
    %v118 = vld [vmem:[%s16 + $0xa0] sm:$0xff]
    %v119 = vld [vmem:[%s16 + $0xa8] sm:$0xff]
    %v120 = vld [vmem:[%s16 + $0xb0] sm:$0xff]
    %v121 = vld [vmem:[%s16 + $0xb8] sm:$0xff]
    %v122 = vld [vmem:[%s16 + $0xc0] sm:$0xff]
    %v123 = vld [vmem:[%s16 + $0xc8] sm:$0xff]
    %v124 = vld [vmem:[%s16 + $0xd0] sm:$0xff]
    %v125 = vld [vmem:[%s16 + $0xd8] sm:$0xff]
    %v126 = vld [vmem:[%s16 + $0xe0] sm:$0xff]
    %v127 = vld [vmem:[%s16 + $0xe8] sm:$0xff]
    %v128 = vld [vmem:[%s16 + $0xf0] sm:$0xff]
    %v129 = vld [vmem:[%s16 + $0xf8] sm:$0xff]
    %v130 = vld [vmem:[%s17] sm:$0xff]
    %v131 = vld [vmem:[%s17 + $0x8] sm:$0xff]
    %v132 = vld [vmem:[%s17 + $0x10] sm:$0xff]
    %v133 = vld [vmem:[%s17 + $0x18] sm:$0xff]
    %v134 = vld [vmem:[%s18] sm:$0x3]
    %v135 = vld [vmem:[%s0] sm:$0xff]
    %v136 = vld [vmem:[%s0 + $0x8] sm:$0xff]
    %v137 = vld [vmem:[%s0 + $0x10] sm:$0xff]
    %v138 = vld [vmem:[%s0 + $0x18] sm:$0xff]
    %v139 = vld [vmem:[%s0 + $0x20] sm:$0xff]
    %v140 = vld [vmem:[%s0 + $0x28] sm:$0xff]
    %v141 = vld [vmem:[%s0 + $0x30] sm:$0xff]
    %v142 = vld [vmem:[%s0 + $0x38] sm:$0xff]
    %v143 = vld [vmem:[%s0 + $0x40] sm:$0xff]
    %v144 = vld [vmem:[%s0 + $0x48] sm:$0xff]
    %v145 = vld [vmem:[%s0 + $0x50] sm:$0xff]
    %v146 = vld [vmem:[%s0 + $0x58] sm:$0xff]
    %v147 = vld [vmem:[%s0 + $0x60] sm:$0xff]
    %v148 = vld [vmem:[%s0 + $0x68] sm:$0xff]
    %v149 = vld [vmem:[%s0 + $0x70] sm:$0xff]
    %v150 = vld [vmem:[%s0 + $0x78] sm:$0xff]
    %v151 = vld [vmem:[%s0 + $0x80] sm:$0xff]
    %v152 = vld [vmem:[%s0 + $0x88] sm:$0xff]
    %v153 = vld [vmem:[%s0 + $0x90] sm:$0xff]
    %v154 = vld [vmem:[%s0 + $0x98] sm:$0xff]
    %v155 = vld [vmem:[%s0 + $0xa0] sm:$0xff]
    %v156 = vld [vmem:[%s0 + $0xa8] sm:$0xff]
    %v157 = vld [vmem:[%s0 + $0xb0] sm:$0xff]
    %v158 = vld [vmem:[%s0 + $0xb8] sm:$0xff]
    %v159 = vld [vmem:[%s0 + $0xc0] sm:$0xff]
    %v160 = vld [vmem:[%s0 + $0xc8] sm:$0xff]
    %v161 = vld [vmem:[%s0 + $0xd0] sm:$0xff]
    %v162 = vld [vmem:[%s0 + $0xd8] sm:$0xff]
    %v163 = vld [vmem:[%s0 + $0xe0] sm:$0xff]
    %v164 = vld [vmem:[%s0 + $0xe8] sm:$0xff]
    %v165 = vld [vmem:[%s0 + $0xf0] sm:$0xff]
    %v166 = vld [vmem:[%s0 + $0xf8] sm:$0xff]
    %vm167 = vcmask 261120
    %v168 = vsel %vm167, %v135, 0.0
    %169 = vadd.xlane.f32.xlu0 %v168
    %v170 = vpop.xlane.xlu0 %169
    %v171 = vsel %vm167, %v136, 0.0
    %172 = vadd.xlane.f32.xlu0 %v171
    %v173 = vpop.xlane.xlu0 %172
    %v174 = vsel %vm167, %v137, 0.0
    %175 = vadd.xlane.f32.xlu0 %v174
    %v176 = vpop.xlane.xlu0 %175
    %v177 = vsel %vm167, %v138, 0.0
    %178 = vadd.xlane.f32.xlu0 %v177
    %v179 = vpop.xlane.xlu0 %178
    %v180 = vsel %vm167, %v139, 0.0
    %181 = vadd.xlane.f32.xlu0 %v180
    %v182 = vpop.xlane.xlu0 %181
    %v183 = vsel %vm167, %v140, 0.0
    %184 = vadd.xlane.f32.xlu0 %v183
    %v185 = vpop.xlane.xlu0 %184
    %v186 = vsel %vm167, %v141, 0.0
    %187 = vadd.xlane.f32.xlu0 %v186
    %v188 = vpop.xlane.xlu0 %187
    %v189 = vsel %vm167, %v142, 0.0
    %190 = vadd.xlane.f32.xlu0 %v189
    %v191 = vpop.xlane.xlu0 %190
    %v192 = vsel %vm167, %v143, 0.0
    %193 = vadd.xlane.f32.xlu0 %v192
    %v194 = vpop.xlane.xlu0 %193
    %v195 = vsel %vm167, %v144, 0.0
    %196 = vadd.xlane.f32.xlu0 %v195
    %v197 = vpop.xlane.xlu0 %196
    %v198 = vsel %vm167, %v145, 0.0
    %199 = vadd.xlane.f32.xlu0 %v198
    %v200 = vpop.xlane.xlu0 %199
    %v201 = vsel %vm167, %v146, 0.0
    %202 = vadd.xlane.f32.xlu0 %v201
    %v203 = vpop.xlane.xlu0 %202
    %v204 = vsel %vm167, %v147, 0.0
    %205 = vadd.xlane.f32.xlu0 %v204
    %v206 = vpop.xlane.xlu0 %205
    %v207 = vsel %vm167, %v148, 0.0
    %208 = vadd.xlane.f32.xlu0 %v207
    %v209 = vpop.xlane.xlu0 %208
    %v210 = vsel %vm167, %v149, 0.0
    %211 = vadd.xlane.f32.xlu0 %v210
    %v212 = vpop.xlane.xlu0 %211
    %v213 = vsel %vm167, %v150, 0.0
    %214 = vadd.xlane.f32.xlu0 %v213
    %v215 = vpop.xlane.xlu0 %214
    %v216 = vsel %vm167, %v151, 0.0
    %217 = vadd.xlane.f32.xlu0 %v216
    %v218 = vpop.xlane.xlu0 %217
    %v219 = vsel %vm167, %v152, 0.0
    %220 = vadd.xlane.f32.xlu0 %v219
    %v221 = vpop.xlane.xlu0 %220
    %v222 = vsel %vm167, %v153, 0.0
    %223 = vadd.xlane.f32.xlu0 %v222
    %v224 = vpop.xlane.xlu0 %223
    %v225 = vsel %vm167, %v154, 0.0
    %226 = vadd.xlane.f32.xlu0 %v225
    %v227 = vpop.xlane.xlu0 %226
    %v228 = vsel %vm167, %v155, 0.0
    %229 = vadd.xlane.f32.xlu0 %v228
    %v230 = vpop.xlane.xlu0 %229
    %v231 = vsel %vm167, %v156, 0.0
    %232 = vadd.xlane.f32.xlu0 %v231
    %v233 = vpop.xlane.xlu0 %232
    %v234 = vsel %vm167, %v157, 0.0
    %235 = vadd.xlane.f32.xlu0 %v234
    %v236 = vpop.xlane.xlu0 %235
    %v237 = vsel %vm167, %v158, 0.0
    %238 = vadd.xlane.f32.xlu0 %v237
    %v239 = vpop.xlane.xlu0 %238
    %v240 = vsel %vm167, %v159, 0.0
    %241 = vadd.xlane.f32.xlu0 %v240
    %v242 = vpop.xlane.xlu0 %241
    %v243 = vsel %vm167, %v160, 0.0
    %244 = vadd.xlane.f32.xlu0 %v243
    %v245 = vpop.xlane.xlu0 %244
    %v246 = vsel %vm167, %v161, 0.0
    %247 = vadd.xlane.f32.xlu0 %v246
    %v248 = vpop.xlane.xlu0 %247
    %v249 = vsel %vm167, %v162, 0.0
    %250 = vadd.xlane.f32.xlu0 %v249
    %v251 = vpop.xlane.xlu0 %250
    %v252 = vsel %vm167, %v163, 0.0
    %253 = vadd.xlane.f32.xlu0 %v252
    %v254 = vpop.xlane.xlu0 %253
    %v255 = vsel %vm167, %v164, 0.0
    %256 = vadd.xlane.f32.xlu0 %v255
    %v257 = vpop.xlane.xlu0 %256
    %v258 = vsel %vm167, %v165, 0.0
    %259 = vadd.xlane.f32.xlu0 %v258
    %v260 = vpop.xlane.xlu0 %259
    %v261 = vsel %vm167, %v166, 0.0
    %262 = vadd.xlane.f32.xlu0 %v261
    %v263 = vpop.xlane.xlu0 %262
    %v264 = vrcp.pop 32.0
    %v265 = vmul.f32 %v170, %v264
    %v266 = vmul.f32 %v173, %v264
    %v267 = vmul.f32 %v176, %v264
    %v268 = vmul.f32 %v179, %v264
    %v269 = vmul.f32 %v182, %v264
    %v270 = vmul.f32 %v185, %v264
    %v271 = vmul.f32 %v188, %v264
    %v272 = vmul.f32 %v191, %v264
    %v273 = vmul.f32 %v194, %v264
    %v274 = vmul.f32 %v197, %v264
    %v275 = vmul.f32 %v200, %v264
    %v276 = vmul.f32 %v203, %v264
    %v277 = vmul.f32 %v206, %v264
    %v278 = vmul.f32 %v209, %v264
    %v279 = vmul.f32 %v212, %v264
    %v280 = vmul.f32 %v215, %v264
    %v281 = vmul.f32 %v218, %v264
    %v282 = vmul.f32 %v221, %v264
    %v283 = vmul.f32 %v224, %v264
    %v284 = vmul.f32 %v227, %v264
    %v285 = vmul.f32 %v230, %v264
    %v286 = vmul.f32 %v233, %v264
    %v287 = vmul.f32 %v236, %v264
    %v288 = vmul.f32 %v239, %v264
    %v289 = vmul.f32 %v242, %v264
    %v290 = vmul.f32 %v245, %v264
    %v291 = vmul.f32 %v248, %v264
    %v292 = vmul.f32 %v251, %v264
    %v293 = vmul.f32 %v254, %v264
    %v294 = vmul.f32 %v257, %v264
    %v295 = vmul.f32 %v260, %v264
    %v296 = vmul.f32 %v263, %v264
    %v297 = vsub.f32 %v135, %v265
    %v298 = vsub.f32 %v136, %v266
    %v299 = vsub.f32 %v137, %v267
    %v300 = vsub.f32 %v138, %v268
    %v301 = vsub.f32 %v139, %v269
    %v302 = vsub.f32 %v140, %v270
    %v303 = vsub.f32 %v141, %v271
    %v304 = vsub.f32 %v142, %v272
    %v305 = vsub.f32 %v143, %v273
    %v306 = vsub.f32 %v144, %v274
    %v307 = vsub.f32 %v145, %v275
    %v308 = vsub.f32 %v146, %v276
    %v309 = vsub.f32 %v147, %v277
    %v310 = vsub.f32 %v148, %v278
    %v311 = vsub.f32 %v149, %v279
    %v312 = vsub.f32 %v150, %v280
    %v313 = vsub.f32 %v151, %v281
    %v314 = vsub.f32 %v152, %v282
    %v315 = vsub.f32 %v153, %v283
    %v316 = vsub.f32 %v154, %v284
    %v317 = vsub.f32 %v155, %v285
    %v318 = vsub.f32 %v156, %v286
    %v319 = vsub.f32 %v157, %v287
    %v320 = vsub.f32 %v158, %v288
    %v321 = vsub.f32 %v159, %v289
    %v322 = vsub.f32 %v160, %v290
    %v323 = vsub.f32 %v161, %v291
    %v324 = vsub.f32 %v162, %v292
    %v325 = vsub.f32 %v163, %v293
    %v326 = vsub.f32 %v164, %v294
    %v327 = vsub.f32 %v165, %v295
    %v328 = vsub.f32 %v166, %v296
    %v329 = vmul.f32 %v297, %v297
    %v330 = vmul.f32 %v298, %v298
    %v331 = vmul.f32 %v299, %v299
    %v332 = vmul.f32 %v300, %v300
    %v333 = vmul.f32 %v301, %v301
    %v334 = vmul.f32 %v302, %v302
    %v335 = vmul.f32 %v303, %v303
    %v336 = vmul.f32 %v304, %v304
    %v337 = vmul.f32 %v305, %v305
    %v338 = vmul.f32 %v306, %v306
    %v339 = vmul.f32 %v307, %v307
    %v340 = vmul.f32 %v308, %v308
    %v341 = vmul.f32 %v309, %v309
    %v342 = vmul.f32 %v310, %v310
    %v343 = vmul.f32 %v311, %v311
    %v344 = vmul.f32 %v312, %v312
    %v345 = vmul.f32 %v313, %v313
    %v346 = vmul.f32 %v314, %v314
    %v347 = vmul.f32 %v315, %v315
    %v348 = vmul.f32 %v316, %v316
    %v349 = vmul.f32 %v317, %v317
    %v350 = vmul.f32 %v318, %v318
    %v351 = vmul.f32 %v319, %v319
    %v352 = vmul.f32 %v320, %v320
    %v353 = vmul.f32 %v321, %v321
    %v354 = vmul.f32 %v322, %v322
    %v355 = vmul.f32 %v323, %v323
    %v356 = vmul.f32 %v324, %v324
    %v357 = vmul.f32 %v325, %v325
    %v358 = vmul.f32 %v326, %v326
    %v359 = vmul.f32 %v327, %v327
    %v360 = vmul.f32 %v328, %v328
    %v361 = vsel %vm167, %v329, 0.0
    %362 = vadd.xlane.f32.xlu0 %v361
    %v363 = vpop.xlane.xlu0 %362
    %v364 = vsel %vm167, %v330, 0.0
    %365 = vadd.xlane.f32.xlu0 %v364
    %v366 = vpop.xlane.xlu0 %365
    %v367 = vsel %vm167, %v331, 0.0
    %368 = vadd.xlane.f32.xlu0 %v367
    %v369 = vpop.xlane.xlu0 %368
    %v370 = vsel %vm167, %v332, 0.0
    %371 = vadd.xlane.f32.xlu0 %v370
    %v372 = vpop.xlane.xlu0 %371
    %v373 = vsel %vm167, %v333, 0.0
    %374 = vadd.xlane.f32.xlu0 %v373
    %v375 = vpop.xlane.xlu0 %374
    %v376 = vsel %vm167, %v334, 0.0
    %377 = vadd.xlane.f32.xlu0 %v376
    %v378 = vpop.xlane.xlu0 %377
    %v379 = vsel %vm167, %v335, 0.0
    %380 = vadd.xlane.f32.xlu0 %v379
    %v381 = vpop.xlane.xlu0 %380
    %v382 = vsel %vm167, %v336, 0.0
    %383 = vadd.xlane.f32.xlu0 %v382
    %v384 = vpop.xlane.xlu0 %383
    %v385 = vsel %vm167, %v337, 0.0
    %386 = vadd.xlane.f32.xlu0 %v385
    %v387 = vpop.xlane.xlu0 %386
    %v388 = vsel %vm167, %v338, 0.0
    %389 = vadd.xlane.f32.xlu0 %v388
    %v390 = vpop.xlane.xlu0 %389
    %v391 = vsel %vm167, %v339, 0.0
    %392 = vadd.xlane.f32.xlu0 %v391
    %v393 = vpop.xlane.xlu0 %392
    %v394 = vsel %vm167, %v340, 0.0
    %395 = vadd.xlane.f32.xlu0 %v394
    %v396 = vpop.xlane.xlu0 %395
    %v397 = vsel %vm167, %v341, 0.0
    %398 = vadd.xlane.f32.xlu0 %v397
    %v399 = vpop.xlane.xlu0 %398
    %v400 = vsel %vm167, %v342, 0.0
    %401 = vadd.xlane.f32.xlu0 %v400
    %v402 = vpop.xlane.xlu0 %401
    %v403 = vsel %vm167, %v343, 0.0
    %404 = vadd.xlane.f32.xlu0 %v403
    %v405 = vpop.xlane.xlu0 %404
    %v406 = vsel %vm167, %v344, 0.0
    %407 = vadd.xlane.f32.xlu0 %v406
    %v408 = vpop.xlane.xlu0 %407
    %v409 = vsel %vm167, %v345, 0.0
    %410 = vadd.xlane.f32.xlu0 %v409
    %v411 = vpop.xlane.xlu0 %410
    %v412 = vsel %vm167, %v346, 0.0
    %413 = vadd.xlane.f32.xlu0 %v412
    %v414 = vpop.xlane.xlu0 %413
    %v415 = vsel %vm167, %v347, 0.0
    %416 = vadd.xlane.f32.xlu0 %v415
    %v417 = vpop.xlane.xlu0 %416
    %v418 = vsel %vm167, %v348, 0.0
    %419 = vadd.xlane.f32.xlu0 %v418
    %v420 = vpop.xlane.xlu0 %419
    %v421 = vsel %vm167, %v349, 0.0
    %422 = vadd.xlane.f32.xlu0 %v421
    %v423 = vpop.xlane.xlu0 %422
    %v424 = vsel %vm167, %v350, 0.0
    %425 = vadd.xlane.f32.xlu0 %v424
    %v426 = vpop.xlane.xlu0 %425
    %v427 = vsel %vm167, %v351, 0.0
    %428 = vadd.xlane.f32.xlu0 %v427
    %v429 = vpop.xlane.xlu0 %428
    %v430 = vsel %vm167, %v352, 0.0
    %431 = vadd.xlane.f32.xlu0 %v430
    %v432 = vpop.xlane.xlu0 %431
    %v433 = vsel %vm167, %v353, 0.0
    %434 = vadd.xlane.f32.xlu0 %v433
    %v435 = vpop.xlane.xlu0 %434
    %v436 = vsel %vm167, %v354, 0.0
    %437 = vadd.xlane.f32.xlu0 %v436
    %v438 = vpop.xlane.xlu0 %437
    %v439 = vsel %vm167, %v355, 0.0
    %440 = vadd.xlane.f32.xlu0 %v439
    %v441 = vpop.xlane.xlu0 %440
    %v442 = vsel %vm167, %v356, 0.0
    %443 = vadd.xlane.f32.xlu0 %v442
    %v444 = vpop.xlane.xlu0 %443
    %v445 = vsel %vm167, %v357, 0.0
    %446 = vadd.xlane.f32.xlu0 %v445
    %v447 = vpop.xlane.xlu0 %446
    %v448 = vsel %vm167, %v358, 0.0
    %449 = vadd.xlane.f32.xlu0 %v448
    %v450 = vpop.xlane.xlu0 %449
    %v451 = vsel %vm167, %v359, 0.0
    %452 = vadd.xlane.f32.xlu0 %v451
    %v453 = vpop.xlane.xlu0 %452
    %v454 = vsel %vm167, %v360, 0.0
    %455 = vadd.xlane.f32.xlu0 %v454
    %v456 = vpop.xlane.xlu0 %455
    %v457 = vmul.f32 %v363, %v264
    %v458 = vmul.f32 %v366, %v264
    %v459 = vmul.f32 %v369, %v264
    %v460 = vmul.f32 %v372, %v264
    %v461 = vmul.f32 %v375, %v264
    %v462 = vmul.f32 %v378, %v264
    %v463 = vmul.f32 %v381, %v264
    %v464 = vmul.f32 %v384, %v264
    %v465 = vmul.f32 %v387, %v264
    %v466 = vmul.f32 %v390, %v264
    %v467 = vmul.f32 %v393, %v264
    %v468 = vmul.f32 %v396, %v264
    %v469 = vmul.f32 %v399, %v264
    %v470 = vmul.f32 %v402, %v264
    %v471 = vmul.f32 %v405, %v264
    %v472 = vmul.f32 %v408, %v264
    %v473 = vmul.f32 %v411, %v264
    %v474 = vmul.f32 %v414, %v264
    %v475 = vmul.f32 %v417, %v264
    %v476 = vmul.f32 %v420, %v264
    %v477 = vmul.f32 %v423, %v264
    %v478 = vmul.f32 %v426, %v264
    %v479 = vmul.f32 %v429, %v264
    %v480 = vmul.f32 %v432, %v264
    %v481 = vmul.f32 %v435, %v264
    %v482 = vmul.f32 %v438, %v264
    %v483 = vmul.f32 %v441, %v264
    %v484 = vmul.f32 %v444, %v264
    %v485 = vmul.f32 %v447, %v264
    %v486 = vmul.f32 %v450, %v264
    %v487 = vmul.f32 %v453, %v264
    %v488 = vmul.f32 %v456, %v264
    %v489 = vadd.f32 %v457, 1e-05
    %v490 = vadd.f32 %v458, 1e-05
    %v491 = vadd.f32 %v459, 1e-05
    %v492 = vadd.f32 %v460, 1e-05
    %v493 = vadd.f32 %v461, 1e-05
    %v494 = vadd.f32 %v462, 1e-05
    %v495 = vadd.f32 %v463, 1e-05
    %v496 = vadd.f32 %v464, 1e-05
    %v497 = vadd.f32 %v465, 1e-05
    %v498 = vadd.f32 %v466, 1e-05
    %v499 = vadd.f32 %v467, 1e-05
    %v500 = vadd.f32 %v468, 1e-05
    %v501 = vadd.f32 %v469, 1e-05
    %v502 = vadd.f32 %v470, 1e-05
    %v503 = vadd.f32 %v471, 1e-05
    %v504 = vadd.f32 %v472, 1e-05
    %v505 = vadd.f32 %v473, 1e-05
    %v506 = vadd.f32 %v474, 1e-05
    %v507 = vadd.f32 %v475, 1e-05
    %v508 = vadd.f32 %v476, 1e-05
    %v509 = vadd.f32 %v477, 1e-05
    %v510 = vadd.f32 %v478, 1e-05
    %v511 = vadd.f32 %v479, 1e-05
    %v512 = vadd.f32 %v480, 1e-05
    %v513 = vadd.f32 %v481, 1e-05
    %v514 = vadd.f32 %v482, 1e-05
    %v515 = vadd.f32 %v483, 1e-05
    %v516 = vadd.f32 %v484, 1e-05
    %v517 = vadd.f32 %v485, 1e-05
    %v518 = vadd.f32 %v486, 1e-05
    %v519 = vadd.f32 %v487, 1e-05
    %v520 = vadd.f32 %v488, 1e-05
    %v521 = vrsqrt.pop %v489
    %v522 = vrsqrt.pop %v490
    %v523 = vrsqrt.pop %v491
    %v524 = vrsqrt.pop %v492
    %v525 = vrsqrt.pop %v493
    %v526 = vrsqrt.pop %v494
    %v527 = vrsqrt.pop %v495
    %v528 = vrsqrt.pop %v496
    %v529 = vrsqrt.pop %v497
    %v530 = vrsqrt.pop %v498
    %v531 = vrsqrt.pop %v499
    %v532 = vrsqrt.pop %v500
    %v533 = vrsqrt.pop %v501
    %v534 = vrsqrt.pop %v502
    %v535 = vrsqrt.pop %v503
    %v536 = vrsqrt.pop %v504
    %v537 = vrsqrt.pop %v505
    %v538 = vrsqrt.pop %v506
    %v539 = vrsqrt.pop %v507
    %v540 = vrsqrt.pop %v508
    %v541 = vrsqrt.pop %v509
    %v542 = vrsqrt.pop %v510
    %v543 = vrsqrt.pop %v511
    %v544 = vrsqrt.pop %v512
    %v545 = vrsqrt.pop %v513
    %v546 = vrsqrt.pop %v514
    %v547 = vrsqrt.pop %v515
    %v548 = vrsqrt.pop %v516
    %v549 = vrsqrt.pop %v517
    %v550 = vrsqrt.pop %v518
    %v551 = vrsqrt.pop %v519
    %v552 = vrsqrt.pop %v520
    %v553 = vmul.f32 %v297, %v521
    %v554 = vmul.f32 %v298, %v522
    %v555 = vmul.f32 %v299, %v523
    %v556 = vmul.f32 %v300, %v524
    %v557 = vmul.f32 %v301, %v525
    %v558 = vmul.f32 %v302, %v526
    %v559 = vmul.f32 %v303, %v527
    %v560 = vmul.f32 %v304, %v528
    %v561 = vmul.f32 %v305, %v529
    %v562 = vmul.f32 %v306, %v530
    %v563 = vmul.f32 %v307, %v531
    %v564 = vmul.f32 %v308, %v532
    %v565 = vmul.f32 %v309, %v533
    %v566 = vmul.f32 %v310, %v534
    %v567 = vmul.f32 %v311, %v535
    %v568 = vmul.f32 %v312, %v536
    %v569 = vmul.f32 %v313, %v537
    %v570 = vmul.f32 %v314, %v538
    %v571 = vmul.f32 %v315, %v539
    %v572 = vmul.f32 %v316, %v540
    %v573 = vmul.f32 %v317, %v541
    %v574 = vmul.f32 %v318, %v542
    %v575 = vmul.f32 %v319, %v543
    %v576 = vmul.f32 %v320, %v544
    %v577 = vmul.f32 %v321, %v545
    %v578 = vmul.f32 %v322, %v546
    %v579 = vmul.f32 %v323, %v547
    %v580 = vmul.f32 %v324, %v548
    %v581 = vmul.f32 %v325, %v549
    %v582 = vmul.f32 %v326, %v550
    %v583 = vmul.f32 %v327, %v551
    %v584 = vmul.f32 %v328, %v552
    %v586 = vlaneseq
    %v587 = vshrl.u32 %v586, 7
    %v588 = vsub.s32 0, %v587
    %v589 = vrot.slane %v63, %v588
    %v591 = vmul.f32 %v553, %v589
    %v592 = vmul.f32 %v554, %v589
    %v593 = vmul.f32 %v555, %v589
    %v594 = vmul.f32 %v556, %v589
    %v595 = vmul.f32 %v557, %v589
    %v596 = vmul.f32 %v558, %v589
    %v597 = vmul.f32 %v559, %v589
    %v598 = vmul.f32 %v560, %v589
    %v599 = vmul.f32 %v561, %v589
    %v600 = vmul.f32 %v562, %v589
    %v601 = vmul.f32 %v563, %v589
    %v602 = vmul.f32 %v564, %v589
    %v603 = vmul.f32 %v565, %v589
    %v604 = vmul.f32 %v566, %v589
    %v605 = vmul.f32 %v567, %v589
    %v606 = vmul.f32 %v568, %v589
    %v607 = vmul.f32 %v569, %v589
    %v608 = vmul.f32 %v570, %v589
    %v609 = vmul.f32 %v571, %v589
    %v610 = vmul.f32 %v572, %v589
    %v611 = vmul.f32 %v573, %v589
    %v612 = vmul.f32 %v574, %v589
    %v613 = vmul.f32 %v575, %v589
    %v614 = vmul.f32 %v576, %v589
    %v615 = vmul.f32 %v577, %v589
    %v616 = vmul.f32 %v578, %v589
    %v617 = vmul.f32 %v579, %v589
    %v618 = vmul.f32 %v580, %v589
    %v619 = vmul.f32 %v581, %v589
    %v620 = vmul.f32 %v582, %v589
    %v621 = vmul.f32 %v583, %v589
    %v622 = vmul.f32 %v584, %v589
    %v624 = vlaneseq
    %v625 = vshrl.u32 %v624, 7
    %v626 = vsub.s32 0, %v625
    %v627 = vrot.slane %v64, %v626
    %v629 = vadd.f32 %v591, %v627
    %v630 = vadd.f32 %v592, %v627
    %v631 = vadd.f32 %v593, %v627
    %v632 = vadd.f32 %v594, %v627
    %v633 = vadd.f32 %v595, %v627
    %v634 = vadd.f32 %v596, %v627
    %v635 = vadd.f32 %v597, %v627
    %v636 = vadd.f32 %v598, %v627
    %v637 = vadd.f32 %v599, %v627
    %v638 = vadd.f32 %v600, %v627
    %v639 = vadd.f32 %v601, %v627
    %v640 = vadd.f32 %v602, %v627
    %v641 = vadd.f32 %v603, %v627
    %v642 = vadd.f32 %v604, %v627
    %v643 = vadd.f32 %v605, %v627
    %v644 = vadd.f32 %v606, %v627
    %v645 = vadd.f32 %v607, %v627
    %v646 = vadd.f32 %v608, %v627
    %v647 = vadd.f32 %v609, %v627
    %v648 = vadd.f32 %v610, %v627
    %v649 = vadd.f32 %v611, %v627
    %v650 = vadd.f32 %v612, %v627
    %v651 = vadd.f32 %v613, %v627
    %v652 = vadd.f32 %v614, %v627
    %v653 = vadd.f32 %v615, %v627
    %v654 = vadd.f32 %v616, %v627
    %v655 = vadd.f32 %v617, %v627
    %v656 = vadd.f32 %v618, %v627
    %v657 = vadd.f32 %v619, %v627
    %v658 = vadd.f32 %v620, %v627
    %v659 = vadd.f32 %v621, %v627
    %v660 = vadd.f32 %v622, %v627
    %v661 = vld [vmem:[%s1] sm:$0x3]
    %vm662 = vcmask 254976
    %v663 = vsel %vm662, %v661, 0.0
    %664 = vadd.xlane.f32.xlu0 %v663
    %v665 = vpop.xlane.xlu0 %664
    %v666 = vmul.f32 %v665, %v264
    %v667 = vsub.f32 %v661, %v666
    %v668 = vmul.f32 %v667, %v667
    %v669 = vsel %vm662, %v668, 0.0
    %670 = vadd.xlane.f32.xlu0 %v669
    %v671 = vpop.xlane.xlu0 %670
    %v672 = vmul.f32 %v671, %v264
    %v673 = vadd.f32 %v672, 1e-05
    %v674 = vrsqrt.pop %v673
    %v675 = vmul.f32 %v667, %v674
    %v676 = vmul.f32 %v675, %v589
    %v677 = vadd.f32 %v676, %v627
    %v679 = vsel %vm167, %v677, 0
    %681 = vmatprep.subr.mxu0 0.0
    %682 = vmatpush1.msra.mxu0 %v65
    %683 = vmatprep.subr.mxu0 0.0
    %684 = vmatpush1.msra.mxu0 %v66
    %685 = vmatprep.subr.mxu0 0.0
    %686 = vmatpush1.msra.mxu0 %v67
    %687 = vmatprep.subr.mxu0 0.0
    %688 = vmatpush1.msra.mxu0 %v68
    %689 = vmatprep.subr.mxu0 0.0
    %690 = vmatpush1.msra.mxu0 0.0
    %691 = vmatprep.subr.mxu0 0.0
    %692 = vmatpush1.msra.mxu0 0.0
    %693 = vmatprep.subr.mxu0 0.0
    %694 = vmatpush1.msra.mxu0 0.0
    %695 = vmatprep.subr.mxu0 0.0
    %696 = vmatpush1.msra.mxu0 0.0
    %697 = vmatprep.subr.mxu0 0.0
    %698 = vmatpush1.msra.mxu0 0.0
    %699 = vmatprep.subr.mxu0 0.0
    %700 = vmatpush1.msra.mxu0 0.0
    %701 = vmatprep.subr.mxu0 0.0
    %702 = vmatpush1.msra.mxu0 0.0
    %703 = vmatprep.subr.mxu0 0.0
    %704 = vmatpush1.msra.mxu0 0.0
    %705 = vmatprep.subr.mxu0 0.0
    %706 = vmatpush1.msra.mxu0 0.0
    %707 = vmatprep.subr.mxu0 0.0
    %708 = vmatpush1.msra.mxu0 0.0
    %709 = vmatprep.subr.mxu0 0.0
    %710 = vmatpush1.msra.mxu0 0.0
    %711 = vmatprep.subr.mxu0 0.0
    %712 = vmatpush1.msra.mxu0 0.0
    %713 = vmatprep.subr.mxu0 0.0
    %714 = vmatpush1.msra.mxu0 0.0
    %715 = vmatprep.subr.mxu0 0.0
    %716 = vmatpush1.msra.mxu0 0.0
    %717 = vmatprep.subr.mxu0 0.0
    %718 = vmatpush1.msra.mxu0 0.0
    %719 = vmatprep.subr.mxu0 0.0
    %720 = vmatpush1.msra.mxu0 0.0
    %721 = vmatprep.subr.mxu0 0.0
    %722 = vmatpush1.msra.mxu0 0.0
    %723 = vmatprep.subr.mxu0 0.0
    %724 = vmatpush1.msra.mxu0 0.0
    %725 = vmatprep.subr.mxu0 0.0
    %726 = vmatpush1.msra.mxu0 0.0
    %727 = vmatprep.subr.mxu0 0.0
    %728 = vmatpush1.msra.mxu0 0.0
    %729 = vmatprep.subr.mxu0 0.0
    %730 = vmatpush1.msra.mxu0 0.0
    %731 = vmatprep.subr.mxu0 0.0
    %732 = vmatpush1.msra.mxu0 0.0
    %733 = vmatprep.subr.mxu0 0.0
    %734 = vmatpush1.msra.mxu0 0.0
    %735 = vmatprep.subr.mxu0 0.0
    %736 = vmatpush1.msra.mxu0 0.0
    %737 = vmatprep.subr.mxu0 0.0
    %738 = vmatpush1.msra.mxu0 0.0
    %739 = vmatprep.subr.mxu0 0.0
    %740 = vmatpush1.msra.mxu0 0.0
    %741 = vmatprep.subr.mxu0 0.0
    %742 = vmatpush1.msra.mxu0 0.0
    %743 = vmatprep.subr.mxu0 0.0
    %744 = vmatpush1.msra.mxu0 0.0
    %745 = vmatprep.mubr.f32.mxu0 0.0
    %746 = vmatmul.mubr.f32.gmra.mrb[0].mxu0 %v679
    %v747 = vpop.f32.mrb[0].mxu0
    %v748 = vadd.f32 0.0, %v747
    %v749 = vpop.f32.mrb[0].mxu0
    %750 = vdwg.mxu0
    %751 = vmatprep.subr.mxu0 0.0
    %752 = vmatpush1.msra.mxu0 %v69
    %753 = vmatprep.subr.mxu0 0.0
    %754 = vmatpush1.msra.mxu0 %v70
    %755 = vmatprep.subr.mxu0 0.0
    %756 = vmatpush1.msra.mxu0 %v71
    %757 = vmatprep.subr.mxu0 0.0
    %758 = vmatpush1.msra.mxu0 %v72
    %759 = vmatprep.subr.mxu0 0.0
    %760 = vmatpush1.msra.mxu0 0.0
    %761 = vmatprep.subr.mxu0 0.0
    %762 = vmatpush1.msra.mxu0 0.0
    %763 = vmatprep.subr.mxu0 0.0
    %764 = vmatpush1.msra.mxu0 0.0
    %765 = vmatprep.subr.mxu0 0.0
    %766 = vmatpush1.msra.mxu0 0.0
    %767 = vmatprep.subr.mxu0 0.0
    %768 = vmatpush1.msra.mxu0 0.0
    %769 = vmatprep.subr.mxu0 0.0
    %770 = vmatpush1.msra.mxu0 0.0
    %771 = vmatprep.subr.mxu0 0.0
    %772 = vmatpush1.msra.mxu0 0.0
    %773 = vmatprep.subr.mxu0 0.0
    %774 = vmatpush1.msra.mxu0 0.0
    %775 = vmatprep.subr.mxu0 0.0
    %776 = vmatpush1.msra.mxu0 0.0
    %777 = vmatprep.subr.mxu0 0.0
    %778 = vmatpush1.msra.mxu0 0.0
    %779 = vmatprep.subr.mxu0 0.0
    %780 = vmatpush1.msra.mxu0 0.0
    %781 = vmatprep.subr.mxu0 0.0
    %782 = vmatpush1.msra.mxu0 0.0
    %783 = vmatprep.subr.mxu0 0.0
    %784 = vmatpush1.msra.mxu0 0.0
    %785 = vmatprep.subr.mxu0 0.0
    %786 = vmatpush1.msra.mxu0 0.0
    %787 = vmatprep.subr.mxu0 0.0
    %788 = vmatpush1.msra.mxu0 0.0
    %789 = vmatprep.subr.mxu0 0.0
    %790 = vmatpush1.msra.mxu0 0.0
    %791 = vmatprep.subr.mxu0 0.0
    %792 = vmatpush1.msra.mxu0 0.0
    %793 = vmatprep.subr.mxu0 0.0
    %794 = vmatpush1.msra.mxu0 0.0
    %795 = vmatprep.subr.mxu0 0.0
    %796 = vmatpush1.msra.mxu0 0.0
    %797 = vmatprep.subr.mxu0 0.0
    %798 = vmatpush1.msra.mxu0 0.0
    %799 = vmatprep.subr.mxu0 0.0
    %800 = vmatpush1.msra.mxu0 0.0
    %801 = vmatprep.subr.mxu0 0.0
    %802 = vmatpush1.msra.mxu0 0.0
    %803 = vmatprep.subr.mxu0 0.0
    %804 = vmatpush1.msra.mxu0 0.0
    %805 = vmatprep.subr.mxu0 0.0
    %806 = vmatpush1.msra.mxu0 0.0
    %807 = vmatprep.subr.mxu0 0.0
    %808 = vmatpush1.msra.mxu0 0.0
    %809 = vmatprep.subr.mxu0 0.0
    %810 = vmatpush1.msra.mxu0 0.0
    %811 = vmatprep.subr.mxu0 0.0
    %812 = vmatpush1.msra.mxu0 0.0
    %813 = vmatprep.subr.mxu0 0.0
    %814 = vmatpush1.msra.mxu0 0.0
    %815 = vmatprep.mubr.f32.mxu0 0.0
    %816 = vmatmul.mubr.f32.gmra.mrb[0].mxu0 %v679
    %v817 = vpop.f32.mrb[0].mxu0
    %v818 = vadd.f32 0.0, %v817
    %v819 = vpop.f32.mrb[0].mxu0
    %820 = vdwg.mxu0
    %v822 = vsel %vm167, %v629, 0
    %v825 = vsel %vm167, %v630, 0
    %v828 = vsel %vm167, %v631, 0
    %v831 = vsel %vm167, %v632, 0
    %v834 = vsel %vm167, %v633, 0
    %v837 = vsel %vm167, %v634, 0
    %v840 = vsel %vm167, %v635, 0
    %v843 = vsel %vm167, %v636, 0
    %v846 = vsel %vm167, %v637, 0
    %v849 = vsel %vm167, %v638, 0
    %v852 = vsel %vm167, %v639, 0
    %v855 = vsel %vm167, %v640, 0
    %v858 = vsel %vm167, %v641, 0
    %v861 = vsel %vm167, %v642, 0
    %v864 = vsel %vm167, %v643, 0
    %v867 = vsel %vm167, %v644, 0
    %v870 = vsel %vm167, %v645, 0
    %v873 = vsel %vm167, %v646, 0
    %v876 = vsel %vm167, %v647, 0
    %v879 = vsel %vm167, %v648, 0
    %v882 = vsel %vm167, %v649, 0
    %v885 = vsel %vm167, %v650, 0
    %v888 = vsel %vm167, %v651, 0
    %v891 = vsel %vm167, %v652, 0
    %v894 = vsel %vm167, %v653, 0
    %v897 = vsel %vm167, %v654, 0
    %v900 = vsel %vm167, %v655, 0
    %v903 = vsel %vm167, %v656, 0
    %v906 = vsel %vm167, %v657, 0
    %v909 = vsel %vm167, %v658, 0
    %v912 = vsel %vm167, %v659, 0
    %v915 = vsel %vm167, %v660, 0
    %917 = vmatprep.subr.mxu0 0.0
    %918 = vmatpush1.msra.mxu0 %v69
    %919 = vmatprep.subr.mxu0 0.0
    %920 = vmatpush1.msra.mxu0 %v70
    %921 = vmatprep.subr.mxu0 0.0
    %922 = vmatpush1.msra.mxu0 %v71
    %923 = vmatprep.subr.mxu0 0.0
    %924 = vmatpush1.msra.mxu0 %v72
    %925 = vmatprep.subr.mxu0 0.0
    %926 = vmatpush1.msra.mxu0 0.0
    %927 = vmatprep.subr.mxu0 0.0
    %928 = vmatpush1.msra.mxu0 0.0
    %929 = vmatprep.subr.mxu0 0.0
    %930 = vmatpush1.msra.mxu0 0.0
    %931 = vmatprep.subr.mxu0 0.0
    %932 = vmatpush1.msra.mxu0 0.0
    %933 = vmatprep.subr.mxu0 0.0
    %934 = vmatpush1.msra.mxu0 0.0
    %935 = vmatprep.subr.mxu0 0.0
    %936 = vmatpush1.msra.mxu0 0.0
    %937 = vmatprep.subr.mxu0 0.0
    %938 = vmatpush1.msra.mxu0 0.0
    %939 = vmatprep.subr.mxu0 0.0
    %940 = vmatpush1.msra.mxu0 0.0
    %941 = vmatprep.subr.mxu0 0.0
    %942 = vmatpush1.msra.mxu0 0.0
    %943 = vmatprep.subr.mxu0 0.0
    %944 = vmatpush1.msra.mxu0 0.0
    %945 = vmatprep.subr.mxu0 0.0
    %946 = vmatpush1.msra.mxu0 0.0
    %947 = vmatprep.subr.mxu0 0.0
    %948 = vmatpush1.msra.mxu0 0.0
    %949 = vmatprep.subr.mxu0 0.0
    %950 = vmatpush1.msra.mxu0 0.0
    %951 = vmatprep.subr.mxu0 0.0
    %952 = vmatpush1.msra.mxu0 0.0
    %953 = vmatprep.subr.mxu0 0.0
    %954 = vmatpush1.msra.mxu0 0.0
    %955 = vmatprep.subr.mxu0 0.0
    %956 = vmatpush1.msra.mxu0 0.0
    %957 = vmatprep.subr.mxu0 0.0
    %958 = vmatpush1.msra.mxu0 0.0
    %959 = vmatprep.subr.mxu0 0.0
    %960 = vmatpush1.msra.mxu0 0.0
    %961 = vmatprep.subr.mxu0 0.0
    %962 = vmatpush1.msra.mxu0 0.0
    %963 = vmatprep.subr.mxu0 0.0
    %964 = vmatpush1.msra.mxu0 0.0
    %965 = vmatprep.subr.mxu0 0.0
    %966 = vmatpush1.msra.mxu0 0.0
    %967 = vmatprep.subr.mxu0 0.0
    %968 = vmatpush1.msra.mxu0 0.0
    %969 = vmatprep.subr.mxu0 0.0
    %970 = vmatpush1.msra.mxu0 0.0
    %971 = vmatprep.subr.mxu0 0.0
    %972 = vmatpush1.msra.mxu0 0.0
    %973 = vmatprep.subr.mxu0 0.0
    %974 = vmatpush1.msra.mxu0 0.0
    %975 = vmatprep.subr.mxu0 0.0
    %976 = vmatpush1.msra.mxu0 0.0
    %977 = vmatprep.subr.mxu0 0.0
    %978 = vmatpush1.msra.mxu0 0.0
    %979 = vmatprep.subr.mxu0 0.0
    %980 = vmatpush1.msra.mxu0 0.0
    %981 = vmatprep.mubr.f32.mxu0 0.0
    %982 = vmatmul.mubr.f32.gmra.mrb[0].mxu0 %v822
    %v983 = vpop.f32.mrb[0].mxu0
    %v984 = vadd.f32 0.0, %v983
    %v985 = vpop.f32.mrb[0].mxu0
    %986 = vmatprep.mubr.f32.mxu0 0.0
    %987 = vmatmul.mubr.f32.gmra.mrb[0].mxu0 %v825
    %v988 = vpop.f32.mrb[0].mxu0
    %v989 = vadd.f32 0.0, %v988
    %v990 = vpop.f32.mrb[0].mxu0
    %991 = vmatprep.mubr.f32.mxu0 0.0
    %992 = vmatmul.mubr.f32.gmra.mrb[0].mxu0 %v828
    %v993 = vpop.f32.mrb[0].mxu0
    %v994 = vadd.f32 0.0, %v993
    %v995 = vpop.f32.mrb[0].mxu0
    %996 = vmatprep.mubr.f32.mxu0 0.0
    %997 = vmatmul.mubr.f32.gmra.mrb[0].mxu0 %v831
    %v998 = vpop.f32.mrb[0].mxu0
    %v999 = vadd.f32 0.0, %v998
    %v1000 = vpop.f32.mrb[0].mxu0
    %1001 = vmatprep.mubr.f32.mxu0 0.0
    %1002 = vmatmul.mubr.f32.gmra.mrb[0].mxu0 %v834
    %v1003 = vpop.f32.mrb[0].mxu0
    %v1004 = vadd.f32 0.0, %v1003
    %v1005 = vpop.f32.mrb[0].mxu0
    %1006 = vmatprep.mubr.f32.mxu0 0.0
    %1007 = vmatmul.mubr.f32.gmra.mrb[0].mxu0 %v837
    %v1008 = vpop.f32.mrb[0].mxu0
    %v1009 = vadd.f32 0.0, %v1008
    %v1010 = vpop.f32.mrb[0].mxu0
    %1011 = vmatprep.mubr.f32.mxu0 0.0
    %1012 = vmatmul.mubr.f32.gmra.mrb[0].mxu0 %v840
    %v1013 = vpop.f32.mrb[0].mxu0
    %v1014 = vadd.f32 0.0, %v1013
    %v1015 = vpop.f32.mrb[0].mxu0
    %1016 = vmatprep.mubr.f32.mxu0 0.0
    %1017 = vmatmul.mubr.f32.gmra.mrb[0].mxu0 %v843
    %v1018 = vpop.f32.mrb[0].mxu0
    %v1019 = vadd.f32 0.0, %v1018
    %v1020 = vpop.f32.mrb[0].mxu0
    %1021 = vmatprep.mubr.f32.mxu0 0.0
    %1022 = vmatmul.mubr.f32.gmra.mrb[0].mxu0 %v846
    %v1023 = vpop.f32.mrb[0].mxu0
    %v1024 = vadd.f32 0.0, %v1023
    %v1025 = vpop.f32.mrb[0].mxu0
    %1026 = vmatprep.mubr.f32.mxu0 0.0
    %1027 = vmatmul.mubr.f32.gmra.mrb[0].mxu0 %v849
    %v1028 = vpop.f32.mrb[0].mxu0
    %v1029 = vadd.f32 0.0, %v1028
    %v1030 = vpop.f32.mrb[0].mxu0
    %1031 = vmatprep.mubr.f32.mxu0 0.0
    %1032 = vmatmul.mubr.f32.gmra.mrb[0].mxu0 %v852
    %v1033 = vpop.f32.mrb[0].mxu0
    %v1034 = vadd.f32 0.0, %v1033
    %v1035 = vpop.f32.mrb[0].mxu0
    %1036 = vmatprep.mubr.f32.mxu0 0.0
    %1037 = vmatmul.mubr.f32.gmra.mrb[0].mxu0 %v855
    %v1038 = vpop.f32.mrb[0].mxu0
    %v1039 = vadd.f32 0.0, %v1038
    %v1040 = vpop.f32.mrb[0].mxu0
    %1041 = vmatprep.mubr.f32.mxu0 0.0
    %1042 = vmatmul.mubr.f32.gmra.mrb[0].mxu0 %v858
    %v1043 = vpop.f32.mrb[0].mxu0
    %v1044 = vadd.f32 0.0, %v1043
    %v1045 = vpop.f32.mrb[0].mxu0
    %1046 = vmatprep.mubr.f32.mxu0 0.0
    %1047 = vmatmul.mubr.f32.gmra.mrb[0].mxu0 %v861
    %v1048 = vpop.f32.mrb[0].mxu0
    %v1049 = vadd.f32 0.0, %v1048
    %v1050 = vpop.f32.mrb[0].mxu0
    %1051 = vmatprep.mubr.f32.mxu0 0.0
    %1052 = vmatmul.mubr.f32.gmra.mrb[0].mxu0 %v864
    %v1053 = vpop.f32.mrb[0].mxu0
    %v1054 = vadd.f32 0.0, %v1053
    %v1055 = vpop.f32.mrb[0].mxu0
    %1056 = vmatprep.mubr.f32.mxu0 0.0
    %1057 = vmatmul.mubr.f32.gmra.mrb[0].mxu0 %v867
    %v1058 = vpop.f32.mrb[0].mxu0
    %v1059 = vadd.f32 0.0, %v1058
    %v1060 = vpop.f32.mrb[0].mxu0
    %1061 = vmatprep.mubr.f32.mxu0 0.0
    %1062 = vmatmul.mubr.f32.gmra.mrb[0].mxu0 %v870
    %v1063 = vpop.f32.mrb[0].mxu0
    %v1064 = vadd.f32 0.0, %v1063
    %v1065 = vpop.f32.mrb[0].mxu0
    %1066 = vmatprep.mubr.f32.mxu0 0.0
    %1067 = vmatmul.mubr.f32.gmra.mrb[0].mxu0 %v873
    %v1068 = vpop.f32.mrb[0].mxu0
    %v1069 = vadd.f32 0.0, %v1068
    %v1070 = vpop.f32.mrb[0].mxu0
    %1071 = vmatprep.mubr.f32.mxu0 0.0
    %1072 = vmatmul.mubr.f32.gmra.mrb[0].mxu0 %v876
    %v1073 = vpop.f32.mrb[0].mxu0
    %v1074 = vadd.f32 0.0, %v1073
    %v1075 = vpop.f32.mrb[0].mxu0
    %1076 = vmatprep.mubr.f32.mxu0 0.0
    %1077 = vmatmul.mubr.f32.gmra.mrb[0].mxu0 %v879
    %v1078 = vpop.f32.mrb[0].mxu0
    %v1079 = vadd.f32 0.0, %v1078
    %v1080 = vpop.f32.mrb[0].mxu0
    %1081 = vmatprep.mubr.f32.mxu0 0.0
    %1082 = vmatmul.mubr.f32.gmra.mrb[0].mxu0 %v882
    %v1083 = vpop.f32.mrb[0].mxu0
    %v1084 = vadd.f32 0.0, %v1083
    %v1085 = vpop.f32.mrb[0].mxu0
    %1086 = vmatprep.mubr.f32.mxu0 0.0
    %1087 = vmatmul.mubr.f32.gmra.mrb[0].mxu0 %v885
    %v1088 = vpop.f32.mrb[0].mxu0
    %v1089 = vadd.f32 0.0, %v1088
    %v1090 = vpop.f32.mrb[0].mxu0
    %1091 = vmatprep.mubr.f32.mxu0 0.0
    %1092 = vmatmul.mubr.f32.gmra.mrb[0].mxu0 %v888
    %v1093 = vpop.f32.mrb[0].mxu0
    %v1094 = vadd.f32 0.0, %v1093
    %v1095 = vpop.f32.mrb[0].mxu0
    %1096 = vmatprep.mubr.f32.mxu0 0.0
    %1097 = vmatmul.mubr.f32.gmra.mrb[0].mxu0 %v891
    %v1098 = vpop.f32.mrb[0].mxu0
    %v1099 = vadd.f32 0.0, %v1098
    %v1100 = vpop.f32.mrb[0].mxu0
    %1101 = vmatprep.mubr.f32.mxu0 0.0
    %1102 = vmatmul.mubr.f32.gmra.mrb[0].mxu0 %v894
    %v1103 = vpop.f32.mrb[0].mxu0
    %v1104 = vadd.f32 0.0, %v1103
    %v1105 = vpop.f32.mrb[0].mxu0
    %1106 = vmatprep.mubr.f32.mxu0 0.0
    %1107 = vmatmul.mubr.f32.gmra.mrb[0].mxu0 %v897
    %v1108 = vpop.f32.mrb[0].mxu0
    %v1109 = vadd.f32 0.0, %v1108
    %v1110 = vpop.f32.mrb[0].mxu0
    %1111 = vmatprep.mubr.f32.mxu0 0.0
    %1112 = vmatmul.mubr.f32.gmra.mrb[0].mxu0 %v900
    %v1113 = vpop.f32.mrb[0].mxu0
    %v1114 = vadd.f32 0.0, %v1113
    %v1115 = vpop.f32.mrb[0].mxu0
    %1116 = vmatprep.mubr.f32.mxu0 0.0
    %1117 = vmatmul.mubr.f32.gmra.mrb[0].mxu0 %v903
    %v1118 = vpop.f32.mrb[0].mxu0
    %v1119 = vadd.f32 0.0, %v1118
    %v1120 = vpop.f32.mrb[0].mxu0
    %1121 = vmatprep.mubr.f32.mxu0 0.0
    %1122 = vmatmul.mubr.f32.gmra.mrb[0].mxu0 %v906
    %v1123 = vpop.f32.mrb[0].mxu0
    %v1124 = vadd.f32 0.0, %v1123
    %v1125 = vpop.f32.mrb[0].mxu0
    %1126 = vmatprep.mubr.f32.mxu0 0.0
    %1127 = vmatmul.mubr.f32.gmra.mrb[0].mxu0 %v909
    %v1128 = vpop.f32.mrb[0].mxu0
    %v1129 = vadd.f32 0.0, %v1128
    %v1130 = vpop.f32.mrb[0].mxu0
    %1131 = vmatprep.mubr.f32.mxu0 0.0
    %1132 = vmatmul.mubr.f32.gmra.mrb[0].mxu0 %v912
    %v1133 = vpop.f32.mrb[0].mxu0
    %v1134 = vadd.f32 0.0, %v1133
    %v1135 = vpop.f32.mrb[0].mxu0
    %1136 = vmatprep.mubr.f32.mxu0 0.0
    %1137 = vmatmul.mubr.f32.gmra.mrb[0].mxu0 %v915
    %v1138 = vpop.f32.mrb[0].mxu0
    %v1139 = vadd.f32 0.0, %v1138
    %v1140 = vpop.f32.mrb[0].mxu0
    %1141 = vdwg.mxu0
    %vm1142 = vcmask 15360
    %v1144 = vsel %vm1142, %v98, 0
    %v1147 = vsel %vm1142, %v99, 0
    %v1150 = vsel %vm1142, %v100, 0
    %v1153 = vsel %vm1142, %v101, 0
    %v1156 = vsel %vm1142, %v102, 0
    %v1159 = vsel %vm1142, %v103, 0
    %v1162 = vsel %vm1142, %v104, 0
    %v1165 = vsel %vm1142, %v105, 0
    %v1168 = vsel %vm1142, %v106, 0
    %v1171 = vsel %vm1142, %v107, 0
    %v1174 = vsel %vm1142, %v108, 0
    %v1177 = vsel %vm1142, %v109, 0
    %v1180 = vsel %vm1142, %v110, 0
    %v1183 = vsel %vm1142, %v111, 0
    %v1186 = vsel %vm1142, %v112, 0
    %v1189 = vsel %vm1142, %v113, 0
    %v1192 = vsel %vm1142, %v114, 0
    %v1195 = vsel %vm1142, %v115, 0
    %v1198 = vsel %vm1142, %v116, 0
    %v1201 = vsel %vm1142, %v117, 0
    %v1204 = vsel %vm1142, %v118, 0
    %v1207 = vsel %vm1142, %v119, 0
    %v1210 = vsel %vm1142, %v120, 0
    %v1213 = vsel %vm1142, %v121, 0
    %v1216 = vsel %vm1142, %v122, 0
    %v1219 = vsel %vm1142, %v123, 0
    %v1222 = vsel %vm1142, %v124, 0
    %v1225 = vsel %vm1142, %v125, 0
    %v1228 = vsel %vm1142, %v126, 0
    %v1231 = vsel %vm1142, %v127, 0
    %v1234 = vsel %vm1142, %v128, 0
    %v1237 = vsel %vm1142, %v129, 0
    %vm1239 = vcmask 1041408
    %v1241 = vsel %vm1239, %v748, 0
    %1243 = vmatprep.subr.mxu0 0.0
    %1244 = vmatpush1.msra.mxu0 %v1241
    %1245 = vmatprep.subr.mxu0 0.0
    %1246 = vmatpush1.msra.mxu0 0.0
    %1247 = vmatprep.subr.mxu0 0.0
    %1248 = vmatpush1.msra.mxu0 0.0
    %1249 = vmatprep.subr.mxu0 0.0
    %1250 = vmatpush1.msra.mxu0 0.0
    %1251 = vmatprep.subr.mxu0 0.0
    %1252 = vmatpush1.msra.mxu0 0.0
    %1253 = vmatprep.subr.mxu0 0.0
    %1254 = vmatpush1.msra.mxu0 0.0
    %1255 = vmatprep.subr.mxu0 0.0
    %1256 = vmatpush1.msra.mxu0 0.0
    %1257 = vmatprep.subr.mxu0 0.0
    %1258 = vmatpush1.msra.mxu0 0.0
    %1259 = vmatprep.subr.mxu0 0.0
    %1260 = vmatpush1.msra.mxu0 0.0
    %1261 = vmatprep.subr.mxu0 0.0
    %1262 = vmatpush1.msra.mxu0 0.0
    %1263 = vmatprep.subr.mxu0 0.0
    %1264 = vmatpush1.msra.mxu0 0.0
    %1265 = vmatprep.subr.mxu0 0.0
    %1266 = vmatpush1.msra.mxu0 0.0
    %1267 = vmatprep.subr.mxu0 0.0
    %1268 = vmatpush1.msra.mxu0 0.0
    %1269 = vmatprep.subr.mxu0 0.0
    %1270 = vmatpush1.msra.mxu0 0.0
    %1271 = vmatprep.subr.mxu0 0.0
    %1272 = vmatpush1.msra.mxu0 0.0
    %1273 = vmatprep.subr.mxu0 0.0
    %1274 = vmatpush1.msra.mxu0 0.0
    %1275 = vmatprep.subr.mxu0 0.0
    %1276 = vmatpush1.msra.mxu0 0.0
    %1277 = vmatprep.subr.mxu0 0.0
    %1278 = vmatpush1.msra.mxu0 0.0
    %1279 = vmatprep.subr.mxu0 0.0
    %1280 = vmatpush1.msra.mxu0 0.0
    %1281 = vmatprep.subr.mxu0 0.0
    %1282 = vmatpush1.msra.mxu0 0.0
    %1283 = vmatprep.subr.mxu0 0.0
    %1284 = vmatpush1.msra.mxu0 0.0
    %1285 = vmatprep.subr.mxu0 0.0
    %1286 = vmatpush1.msra.mxu0 0.0
    %1287 = vmatprep.subr.mxu0 0.0
    %1288 = vmatpush1.msra.mxu0 0.0
    %1289 = vmatprep.subr.mxu0 0.0
    %1290 = vmatpush1.msra.mxu0 0.0
    %1291 = vmatprep.subr.mxu0 0.0
    %1292 = vmatpush1.msra.mxu0 0.0
    %1293 = vmatprep.subr.mxu0 0.0
    %1294 = vmatpush1.msra.mxu0 0.0
    %1295 = vmatprep.subr.mxu0 0.0
    %1296 = vmatpush1.msra.mxu0 0.0
    %1297 = vmatprep.subr.mxu0 0.0
    %1298 = vmatpush1.msra.mxu0 0.0
    %1299 = vmatprep.subr.mxu0 0.0
    %1300 = vmatpush1.msra.mxu0 0.0
    %1301 = vmatprep.subr.mxu0 0.0
    %1302 = vmatpush1.msra.mxu0 0.0
    %1303 = vmatprep.subr.mxu0 0.0
    %1304 = vmatpush1.msra.mxu0 0.0
    %1305 = vmatprep.subr.mxu0 0.0
    %1306 = vmatpush1.msra.mxu0 0.0
    %1307 = vmatprep.mubr.f32.mxu0 0.0
    %1308 = vmatmul.mubr.f32.gmra.mrb[0].mxu0 %v1144
    %v1309 = vpop.f32.mrb[0].mxu0
    %v1310 = vadd.f32 0.0, %v1309
    %v1311 = vpop.f32.mrb[0].mxu0
    %1312 = vmatprep.mubr.f32.mxu0 0.0
    %1313 = vmatmul.mubr.f32.gmra.mrb[0].mxu0 %v1147
    %v1314 = vpop.f32.mrb[0].mxu0
    %v1315 = vadd.f32 0.0, %v1314
    %v1316 = vpop.f32.mrb[0].mxu0
    %1317 = vmatprep.mubr.f32.mxu0 0.0
    %1318 = vmatmul.mubr.f32.gmra.mrb[0].mxu0 %v1150
    %v1319 = vpop.f32.mrb[0].mxu0
    %v1320 = vadd.f32 0.0, %v1319
    %v1321 = vpop.f32.mrb[0].mxu0
    %1322 = vmatprep.mubr.f32.mxu0 0.0
    %1323 = vmatmul.mubr.f32.gmra.mrb[0].mxu0 %v1153
    %v1324 = vpop.f32.mrb[0].mxu0
    %v1325 = vadd.f32 0.0, %v1324
    %v1326 = vpop.f32.mrb[0].mxu0
    %1327 = vmatprep.mubr.f32.mxu0 0.0
    %1328 = vmatmul.mubr.f32.gmra.mrb[0].mxu0 %v1156
    %v1329 = vpop.f32.mrb[0].mxu0
    %v1330 = vadd.f32 0.0, %v1329
    %v1331 = vpop.f32.mrb[0].mxu0
    %1332 = vmatprep.mubr.f32.mxu0 0.0
    %1333 = vmatmul.mubr.f32.gmra.mrb[0].mxu0 %v1159
    %v1334 = vpop.f32.mrb[0].mxu0
    %v1335 = vadd.f32 0.0, %v1334
    %v1336 = vpop.f32.mrb[0].mxu0
    %1337 = vmatprep.mubr.f32.mxu0 0.0
    %1338 = vmatmul.mubr.f32.gmra.mrb[0].mxu0 %v1162
    %v1339 = vpop.f32.mrb[0].mxu0
    %v1340 = vadd.f32 0.0, %v1339
    %v1341 = vpop.f32.mrb[0].mxu0
    %1342 = vmatprep.mubr.f32.mxu0 0.0
    %1343 = vmatmul.mubr.f32.gmra.mrb[0].mxu0 %v1165
    %v1344 = vpop.f32.mrb[0].mxu0
    %v1345 = vadd.f32 0.0, %v1344
    %v1346 = vpop.f32.mrb[0].mxu0
    %1347 = vmatprep.mubr.f32.mxu0 0.0
    %1348 = vmatmul.mubr.f32.gmra.mrb[0].mxu0 %v1168
    %v1349 = vpop.f32.mrb[0].mxu0
    %v1350 = vadd.f32 0.0, %v1349
    %v1351 = vpop.f32.mrb[0].mxu0
    %1352 = vmatprep.mubr.f32.mxu0 0.0
    %1353 = vmatmul.mubr.f32.gmra.mrb[0].mxu0 %v1171
    %v1354 = vpop.f32.mrb[0].mxu0
    %v1355 = vadd.f32 0.0, %v1354
    %v1356 = vpop.f32.mrb[0].mxu0
    %1357 = vmatprep.mubr.f32.mxu0 0.0
    %1358 = vmatmul.mubr.f32.gmra.mrb[0].mxu0 %v1174
    %v1359 = vpop.f32.mrb[0].mxu0
    %v1360 = vadd.f32 0.0, %v1359
    %v1361 = vpop.f32.mrb[0].mxu0
    %1362 = vmatprep.mubr.f32.mxu0 0.0
    %1363 = vmatmul.mubr.f32.gmra.mrb[0].mxu0 %v1177
    %v1364 = vpop.f32.mrb[0].mxu0
    %v1365 = vadd.f32 0.0, %v1364
    %v1366 = vpop.f32.mrb[0].mxu0
    %1367 = vmatprep.mubr.f32.mxu0 0.0
    %1368 = vmatmul.mubr.f32.gmra.mrb[0].mxu0 %v1180
    %v1369 = vpop.f32.mrb[0].mxu0
    %v1370 = vadd.f32 0.0, %v1369
    %v1371 = vpop.f32.mrb[0].mxu0
    %1372 = vmatprep.mubr.f32.mxu0 0.0
    %1373 = vmatmul.mubr.f32.gmra.mrb[0].mxu0 %v1183
    %v1374 = vpop.f32.mrb[0].mxu0
    %v1375 = vadd.f32 0.0, %v1374
    %v1376 = vpop.f32.mrb[0].mxu0
    %1377 = vmatprep.mubr.f32.mxu0 0.0
    %1378 = vmatmul.mubr.f32.gmra.mrb[0].mxu0 %v1186
    %v1379 = vpop.f32.mrb[0].mxu0
    %v1380 = vadd.f32 0.0, %v1379
    %v1381 = vpop.f32.mrb[0].mxu0
    %1382 = vmatprep.mubr.f32.mxu0 0.0
    %1383 = vmatmul.mubr.f32.gmra.mrb[0].mxu0 %v1189
    %v1384 = vpop.f32.mrb[0].mxu0
    %v1385 = vadd.f32 0.0, %v1384
    %v1386 = vpop.f32.mrb[0].mxu0
    %1387 = vmatprep.mubr.f32.mxu0 0.0
    %1388 = vmatmul.mubr.f32.gmra.mrb[0].mxu0 %v1192
    %v1389 = vpop.f32.mrb[0].mxu0
    %v1390 = vadd.f32 0.0, %v1389
    %v1391 = vpop.f32.mrb[0].mxu0
    %1392 = vmatprep.mubr.f32.mxu0 0.0
    %1393 = vmatmul.mubr.f32.gmra.mrb[0].mxu0 %v1195
    %v1394 = vpop.f32.mrb[0].mxu0
    %v1395 = vadd.f32 0.0, %v1394
    %v1396 = vpop.f32.mrb[0].mxu0
    %1397 = vmatprep.mubr.f32.mxu0 0.0
    %1398 = vmatmul.mubr.f32.gmra.mrb[0].mxu0 %v1198
    %v1399 = vpop.f32.mrb[0].mxu0
    %v1400 = vadd.f32 0.0, %v1399
    %v1401 = vpop.f32.mrb[0].mxu0
    %1402 = vmatprep.mubr.f32.mxu0 0.0
    %1403 = vmatmul.mubr.f32.gmra.mrb[0].mxu0 %v1201
    %v1404 = vpop.f32.mrb[0].mxu0
    %v1405 = vadd.f32 0.0, %v1404
    %v1406 = vpop.f32.mrb[0].mxu0
    %1407 = vmatprep.mubr.f32.mxu0 0.0
    %1408 = vmatmul.mubr.f32.gmra.mrb[0].mxu0 %v1204
    %v1409 = vpop.f32.mrb[0].mxu0
    %v1410 = vadd.f32 0.0, %v1409
    %v1411 = vpop.f32.mrb[0].mxu0
    %1412 = vmatprep.mubr.f32.mxu0 0.0
    %1413 = vmatmul.mubr.f32.gmra.mrb[0].mxu0 %v1207
    %v1414 = vpop.f32.mrb[0].mxu0
    %v1415 = vadd.f32 0.0, %v1414
    %v1416 = vpop.f32.mrb[0].mxu0
    %1417 = vmatprep.mubr.f32.mxu0 0.0
    %1418 = vmatmul.mubr.f32.gmra.mrb[0].mxu0 %v1210
    %v1419 = vpop.f32.mrb[0].mxu0
    %v1420 = vadd.f32 0.0, %v1419
    %v1421 = vpop.f32.mrb[0].mxu0
    %1422 = vmatprep.mubr.f32.mxu0 0.0
    %1423 = vmatmul.mubr.f32.gmra.mrb[0].mxu0 %v1213
    %v1424 = vpop.f32.mrb[0].mxu0
    %v1425 = vadd.f32 0.0, %v1424
    %v1426 = vpop.f32.mrb[0].mxu0
    %1427 = vmatprep.mubr.f32.mxu0 0.0
    %1428 = vmatmul.mubr.f32.gmra.mrb[0].mxu0 %v1216
    %v1429 = vpop.f32.mrb[0].mxu0
    %v1430 = vadd.f32 0.0, %v1429
    %v1431 = vpop.f32.mrb[0].mxu0
    %1432 = vmatprep.mubr.f32.mxu0 0.0
    %1433 = vmatmul.mubr.f32.gmra.mrb[0].mxu0 %v1219
    %v1434 = vpop.f32.mrb[0].mxu0
    %v1435 = vadd.f32 0.0, %v1434
    %v1436 = vpop.f32.mrb[0].mxu0
    %1437 = vmatprep.mubr.f32.mxu0 0.0
    %1438 = vmatmul.mubr.f32.gmra.mrb[0].mxu0 %v1222
    %v1439 = vpop.f32.mrb[0].mxu0
    %v1440 = vadd.f32 0.0, %v1439
    %v1441 = vpop.f32.mrb[0].mxu0
    %1442 = vmatprep.mubr.f32.mxu0 0.0
    %1443 = vmatmul.mubr.f32.gmra.mrb[0].mxu0 %v1225
    %v1444 = vpop.f32.mrb[0].mxu0
    %v1445 = vadd.f32 0.0, %v1444
    %v1446 = vpop.f32.mrb[0].mxu0
    %1447 = vmatprep.mubr.f32.mxu0 0.0
    %1448 = vmatmul.mubr.f32.gmra.mrb[0].mxu0 %v1228
    %v1449 = vpop.f32.mrb[0].mxu0
    %v1450 = vadd.f32 0.0, %v1449
    %v1451 = vpop.f32.mrb[0].mxu0
    %1452 = vmatprep.mubr.f32.mxu0 0.0
    %1453 = vmatmul.mubr.f32.gmra.mrb[0].mxu0 %v1231
    %v1454 = vpop.f32.mrb[0].mxu0
    %v1455 = vadd.f32 0.0, %v1454
    %v1456 = vpop.f32.mrb[0].mxu0
    %1457 = vmatprep.mubr.f32.mxu0 0.0
    %1458 = vmatmul.mubr.f32.gmra.mrb[0].mxu0 %v1234
    %v1459 = vpop.f32.mrb[0].mxu0
    %v1460 = vadd.f32 0.0, %v1459
    %v1461 = vpop.f32.mrb[0].mxu0
    %1462 = vmatprep.mubr.f32.mxu0 0.0
    %1463 = vmatmul.mubr.f32.gmra.mrb[0].mxu0 %v1237
    %v1464 = vpop.f32.mrb[0].mxu0
    %v1465 = vadd.f32 0.0, %v1464
    %v1466 = vpop.f32.mrb[0].mxu0
    %1467 = vdwg.mxu0
    %v1468 = vmul.f32 %v1310, %v984
    %v1469 = vmul.f32 %v1315, %v989
    %v1470 = vmul.f32 %v1320, %v994
    %v1471 = vmul.f32 %v1325, %v999
    %v1472 = vmul.f32 %v1330, %v1004
    %v1473 = vmul.f32 %v1335, %v1009
    %v1474 = vmul.f32 %v1340, %v1014
    %v1475 = vmul.f32 %v1345, %v1019
    %v1476 = vmul.f32 %v1350, %v1024
    %v1477 = vmul.f32 %v1355, %v1029
    %v1478 = vmul.f32 %v1360, %v1034
    %v1479 = vmul.f32 %v1365, %v1039
    %v1480 = vmul.f32 %v1370, %v1044
    %v1481 = vmul.f32 %v1375, %v1049
    %v1482 = vmul.f32 %v1380, %v1054
    %v1483 = vmul.f32 %v1385, %v1059
    %v1484 = vmul.f32 %v1390, %v1064
    %v1485 = vmul.f32 %v1395, %v1069
    %v1486 = vmul.f32 %v1400, %v1074
    %v1487 = vmul.f32 %v1405, %v1079
    %v1488 = vmul.f32 %v1410, %v1084
    %v1489 = vmul.f32 %v1415, %v1089
    %v1490 = vmul.f32 %v1420, %v1094
    %v1491 = vmul.f32 %v1425, %v1099
    %v1492 = vmul.f32 %v1430, %v1104
    %v1493 = vmul.f32 %v1435, %v1109
    %v1494 = vmul.f32 %v1440, %v1114
    %v1495 = vmul.f32 %v1445, %v1119
    %v1496 = vmul.f32 %v1450, %v1124
    %v1497 = vmul.f32 %v1455, %v1129
    %v1498 = vmul.f32 %v1460, %v1134
    %v1499 = vmul.f32 %v1465, %v1139
    %vm1500 = vcmask 523264
    %v1502 = vsel %vm1500, %v1468, 0
    %v1505 = vsel %vm1500, %v1469, 0
    %v1508 = vsel %vm1500, %v1470, 0
    %v1511 = vsel %vm1500, %v1471, 0
    %v1514 = vsel %vm1500, %v1472, 0
    %v1517 = vsel %vm1500, %v1473, 0
    %v1520 = vsel %vm1500, %v1474, 0
    %v1523 = vsel %vm1500, %v1475, 0
    %v1526 = vsel %vm1500, %v1476, 0
    %v1529 = vsel %vm1500, %v1477, 0
    %v1532 = vsel %vm1500, %v1478, 0
    %v1535 = vsel %vm1500, %v1479, 0
    %v1538 = vsel %vm1500, %v1480, 0
    %v1541 = vsel %vm1500, %v1481, 0
    %v1544 = vsel %vm1500, %v1482, 0
    %v1547 = vsel %vm1500, %v1483, 0
    %v1550 = vsel %vm1500, %v1484, 0
    %v1553 = vsel %vm1500, %v1485, 0
    %v1556 = vsel %vm1500, %v1486, 0
    %v1559 = vsel %vm1500, %v1487, 0
    %v1562 = vsel %vm1500, %v1488, 0
    %v1565 = vsel %vm1500, %v1489, 0
    %v1568 = vsel %vm1500, %v1490, 0
    %v1571 = vsel %vm1500, %v1491, 0
    %v1574 = vsel %vm1500, %v1492, 0
    %v1577 = vsel %vm1500, %v1493, 0
    %v1580 = vsel %vm1500, %v1494, 0
    %v1583 = vsel %vm1500, %v1495, 0
    %v1586 = vsel %vm1500, %v1496, 0
    %v1589 = vsel %vm1500, %v1497, 0
    %v1592 = vsel %vm1500, %v1498, 0
    %v1595 = vsel %vm1500, %v1499, 0
    %1597 = vmatprep.subr.mxu0 0.0
    %1598 = vmatpush1.msra.mxu0 %v82
    %1599 = vmatprep.subr.mxu0 0.0
    %1600 = vmatpush1.msra.mxu0 %v83
    %1601 = vmatprep.subr.mxu0 0.0
    %1602 = vmatpush1.msra.mxu0 %v84
    %1603 = vmatprep.subr.mxu0 0.0
    %1604 = vmatpush1.msra.mxu0 %v85
    %1605 = vmatprep.subr.mxu0 0.0
    %1606 = vmatpush1.msra.mxu0 %v86
    %1607 = vmatprep.subr.mxu0 0.0
    %1608 = vmatpush1.msra.mxu0 %v87
    %1609 = vmatprep.subr.mxu0 0.0
    %1610 = vmatpush1.msra.mxu0 %v88
    %1611 = vmatprep.subr.mxu0 0.0
    %1612 = vmatpush1.msra.mxu0 %v89
    %1613 = vmatprep.subr.mxu0 0.0
    %1614 = vmatpush1.msra.mxu0 0.0
    %1615 = vmatprep.subr.mxu0 0.0
    %1616 = vmatpush1.msra.mxu0 0.0
    %1617 = vmatprep.subr.mxu0 0.0
    %1618 = vmatpush1.msra.mxu0 0.0
    %1619 = vmatprep.subr.mxu0 0.0
    %1620 = vmatpush1.msra.mxu0 0.0
    %1621 = vmatprep.subr.mxu0 0.0
    %1622 = vmatpush1.msra.mxu0 0.0
    %1623 = vmatprep.subr.mxu0 0.0
    %1624 = vmatpush1.msra.mxu0 0.0
    %1625 = vmatprep.subr.mxu0 0.0
    %1626 = vmatpush1.msra.mxu0 0.0
    %1627 = vmatprep.subr.mxu0 0.0
    %1628 = vmatpush1.msra.mxu0 0.0
    %1629 = vmatprep.subr.mxu0 0.0
    %1630 = vmatpush1.msra.mxu0 0.0
    %1631 = vmatprep.subr.mxu0 0.0
    %1632 = vmatpush1.msra.mxu0 0.0
    %1633 = vmatprep.subr.mxu0 0.0
    %1634 = vmatpush1.msra.mxu0 0.0
    %1635 = vmatprep.subr.mxu0 0.0
    %1636 = vmatpush1.msra.mxu0 0.0
    %1637 = vmatprep.subr.mxu0 0.0
    %1638 = vmatpush1.msra.mxu0 0.0
    %1639 = vmatprep.subr.mxu0 0.0
    %1640 = vmatpush1.msra.mxu0 0.0
    %1641 = vmatprep.subr.mxu0 0.0
    %1642 = vmatpush1.msra.mxu0 0.0
    %1643 = vmatprep.subr.mxu0 0.0
    %1644 = vmatpush1.msra.mxu0 0.0
    %1645 = vmatprep.subr.mxu0 0.0
    %1646 = vmatpush1.msra.mxu0 0.0
    %1647 = vmatprep.subr.mxu0 0.0
    %1648 = vmatpush1.msra.mxu0 0.0
    %1649 = vmatprep.subr.mxu0 0.0
    %1650 = vmatpush1.msra.mxu0 0.0
    %1651 = vmatprep.subr.mxu0 0.0
    %1652 = vmatpush1.msra.mxu0 0.0
    %1653 = vmatprep.subr.mxu0 0.0
    %1654 = vmatpush1.msra.mxu0 0.0
    %1655 = vmatprep.subr.mxu0 0.0
    %1656 = vmatpush1.msra.mxu0 0.0
    %1657 = vmatprep.subr.mxu0 0.0
    %1658 = vmatpush1.msra.mxu0 0.0
    %1659 = vmatprep.subr.mxu0 0.0
    %1660 = vmatpush1.msra.mxu0 0.0
    %1661 = vmatprep.mubr.f32.mxu0 0.0
    %1662 = vmatmul.mubr.f32.gmra.mrb[0].mxu0 %v1502
    %v1663 = vpop.f32.mrb[0].mxu0
    %v1664 = vadd.f32 0.0, %v1663
    %v1665 = vpop.f32.mrb[0].mxu0
    %1666 = vmatprep.mubr.f32.mxu0 0.0
    %1667 = vmatmul.mubr.f32.gmra.mrb[0].mxu0 %v1505
    %v1668 = vpop.f32.mrb[0].mxu0
    %v1669 = vadd.f32 0.0, %v1668
    %v1670 = vpop.f32.mrb[0].mxu0
    %1671 = vmatprep.mubr.f32.mxu0 0.0
    %1672 = vmatmul.mubr.f32.gmra.mrb[0].mxu0 %v1508
    %v1673 = vpop.f32.mrb[0].mxu0
    %v1674 = vadd.f32 0.0, %v1673
    %v1675 = vpop.f32.mrb[0].mxu0
    %1676 = vmatprep.mubr.f32.mxu0 0.0
    %1677 = vmatmul.mubr.f32.gmra.mrb[0].mxu0 %v1511
    %v1678 = vpop.f32.mrb[0].mxu0
    %v1679 = vadd.f32 0.0, %v1678
    %v1680 = vpop.f32.mrb[0].mxu0
    %1681 = vmatprep.mubr.f32.mxu0 0.0
    %1682 = vmatmul.mubr.f32.gmra.mrb[0].mxu0 %v1514
    %v1683 = vpop.f32.mrb[0].mxu0
    %v1684 = vadd.f32 0.0, %v1683
    %v1685 = vpop.f32.mrb[0].mxu0
    %1686 = vmatprep.mubr.f32.mxu0 0.0
    %1687 = vmatmul.mubr.f32.gmra.mrb[0].mxu0 %v1517
    %v1688 = vpop.f32.mrb[0].mxu0
    %v1689 = vadd.f32 0.0, %v1688
    %v1690 = vpop.f32.mrb[0].mxu0
    %1691 = vmatprep.mubr.f32.mxu0 0.0
    %1692 = vmatmul.mubr.f32.gmra.mrb[0].mxu0 %v1520
    %v1693 = vpop.f32.mrb[0].mxu0
    %v1694 = vadd.f32 0.0, %v1693
    %v1695 = vpop.f32.mrb[0].mxu0
    %1696 = vmatprep.mubr.f32.mxu0 0.0
    %1697 = vmatmul.mubr.f32.gmra.mrb[0].mxu0 %v1523
    %v1698 = vpop.f32.mrb[0].mxu0
    %v1699 = vadd.f32 0.0, %v1698
    %v1700 = vpop.f32.mrb[0].mxu0
    %1701 = vmatprep.mubr.f32.mxu0 0.0
    %1702 = vmatmul.mubr.f32.gmra.mrb[0].mxu0 %v1526
    %v1703 = vpop.f32.mrb[0].mxu0
    %v1704 = vadd.f32 0.0, %v1703
    %v1705 = vpop.f32.mrb[0].mxu0
    %1706 = vmatprep.mubr.f32.mxu0 0.0
    %1707 = vmatmul.mubr.f32.gmra.mrb[0].mxu0 %v1529
    %v1708 = vpop.f32.mrb[0].mxu0
    %v1709 = vadd.f32 0.0, %v1708
    %v1710 = vpop.f32.mrb[0].mxu0
    %1711 = vmatprep.mubr.f32.mxu0 0.0
    %1712 = vmatmul.mubr.f32.gmra.mrb[0].mxu0 %v1532
    %v1713 = vpop.f32.mrb[0].mxu0
    %v1714 = vadd.f32 0.0, %v1713
    %v1715 = vpop.f32.mrb[0].mxu0
    %1716 = vmatprep.mubr.f32.mxu0 0.0
    %1717 = vmatmul.mubr.f32.gmra.mrb[0].mxu0 %v1535
    %v1718 = vpop.f32.mrb[0].mxu0
    %v1719 = vadd.f32 0.0, %v1718
    %v1720 = vpop.f32.mrb[0].mxu0
    %1721 = vmatprep.mubr.f32.mxu0 0.0
    %1722 = vmatmul.mubr.f32.gmra.mrb[0].mxu0 %v1538
    %v1723 = vpop.f32.mrb[0].mxu0
    %v1724 = vadd.f32 0.0, %v1723
    %v1725 = vpop.f32.mrb[0].mxu0
    %1726 = vmatprep.mubr.f32.mxu0 0.0
    %1727 = vmatmul.mubr.f32.gmra.mrb[0].mxu0 %v1541
    %v1728 = vpop.f32.mrb[0].mxu0
    %v1729 = vadd.f32 0.0, %v1728
    %v1730 = vpop.f32.mrb[0].mxu0
    %1731 = vmatprep.mubr.f32.mxu0 0.0
    %1732 = vmatmul.mubr.f32.gmra.mrb[0].mxu0 %v1544
    %v1733 = vpop.f32.mrb[0].mxu0
    %v1734 = vadd.f32 0.0, %v1733
    %v1735 = vpop.f32.mrb[0].mxu0
    %1736 = vmatprep.mubr.f32.mxu0 0.0
    %1737 = vmatmul.mubr.f32.gmra.mrb[0].mxu0 %v1547
    %v1738 = vpop.f32.mrb[0].mxu0
    %v1739 = vadd.f32 0.0, %v1738
    %v1740 = vpop.f32.mrb[0].mxu0
    %1741 = vmatprep.mubr.f32.mxu0 0.0
    %1742 = vmatmul.mubr.f32.gmra.mrb[0].mxu0 %v1550
    %v1743 = vpop.f32.mrb[0].mxu0
    %v1744 = vadd.f32 0.0, %v1743
    %v1745 = vpop.f32.mrb[0].mxu0
    %1746 = vmatprep.mubr.f32.mxu0 0.0
    %1747 = vmatmul.mubr.f32.gmra.mrb[0].mxu0 %v1553
    %v1748 = vpop.f32.mrb[0].mxu0
    %v1749 = vadd.f32 0.0, %v1748
    %v1750 = vpop.f32.mrb[0].mxu0
    %1751 = vmatprep.mubr.f32.mxu0 0.0
    %1752 = vmatmul.mubr.f32.gmra.mrb[0].mxu0 %v1556
    %v1753 = vpop.f32.mrb[0].mxu0
    %v1754 = vadd.f32 0.0, %v1753
    %v1755 = vpop.f32.mrb[0].mxu0
    %1756 = vmatprep.mubr.f32.mxu0 0.0
    %1757 = vmatmul.mubr.f32.gmra.mrb[0].mxu0 %v1559
    %v1758 = vpop.f32.mrb[0].mxu0
    %v1759 = vadd.f32 0.0, %v1758
    %v1760 = vpop.f32.mrb[0].mxu0
    %1761 = vmatprep.mubr.f32.mxu0 0.0
    %1762 = vmatmul.mubr.f32.gmra.mrb[0].mxu0 %v1562
    %v1763 = vpop.f32.mrb[0].mxu0
    %v1764 = vadd.f32 0.0, %v1763
    %v1765 = vpop.f32.mrb[0].mxu0
    %1766 = vmatprep.mubr.f32.mxu0 0.0
    %1767 = vmatmul.mubr.f32.gmra.mrb[0].mxu0 %v1565
    %v1768 = vpop.f32.mrb[0].mxu0
    %v1769 = vadd.f32 0.0, %v1768
    %v1770 = vpop.f32.mrb[0].mxu0
    %1771 = vmatprep.mubr.f32.mxu0 0.0
    %1772 = vmatmul.mubr.f32.gmra.mrb[0].mxu0 %v1568
    %v1773 = vpop.f32.mrb[0].mxu0
    %v1774 = vadd.f32 0.0, %v1773
    %v1775 = vpop.f32.mrb[0].mxu0
    %1776 = vmatprep.mubr.f32.mxu0 0.0
    %1777 = vmatmul.mubr.f32.gmra.mrb[0].mxu0 %v1571
    %v1778 = vpop.f32.mrb[0].mxu0
    %v1779 = vadd.f32 0.0, %v1778
    %v1780 = vpop.f32.mrb[0].mxu0
    %1781 = vmatprep.mubr.f32.mxu0 0.0
    %1782 = vmatmul.mubr.f32.gmra.mrb[0].mxu0 %v1574
    %v1783 = vpop.f32.mrb[0].mxu0
    %v1784 = vadd.f32 0.0, %v1783
    %v1785 = vpop.f32.mrb[0].mxu0
    %1786 = vmatprep.mubr.f32.mxu0 0.0
    %1787 = vmatmul.mubr.f32.gmra.mrb[0].mxu0 %v1577
    %v1788 = vpop.f32.mrb[0].mxu0
    %v1789 = vadd.f32 0.0, %v1788
    %v1790 = vpop.f32.mrb[0].mxu0
    %1791 = vmatprep.mubr.f32.mxu0 0.0
    %1792 = vmatmul.mubr.f32.gmra.mrb[0].mxu0 %v1580
    %v1793 = vpop.f32.mrb[0].mxu0
    %v1794 = vadd.f32 0.0, %v1793
    %v1795 = vpop.f32.mrb[0].mxu0
    %1796 = vmatprep.mubr.f32.mxu0 0.0
    %1797 = vmatmul.mubr.f32.gmra.mrb[0].mxu0 %v1583
    %v1798 = vpop.f32.mrb[0].mxu0
    %v1799 = vadd.f32 0.0, %v1798
    %v1800 = vpop.f32.mrb[0].mxu0
    %1801 = vmatprep.mubr.f32.mxu0 0.0
    %1802 = vmatmul.mubr.f32.gmra.mrb[0].mxu0 %v1586
    %v1803 = vpop.f32.mrb[0].mxu0
    %v1804 = vadd.f32 0.0, %v1803
    %v1805 = vpop.f32.mrb[0].mxu0
    %1806 = vmatprep.mubr.f32.mxu0 0.0
    %1807 = vmatmul.mubr.f32.gmra.mrb[0].mxu0 %v1589
    %v1808 = vpop.f32.mrb[0].mxu0
    %v1809 = vadd.f32 0.0, %v1808
    %v1810 = vpop.f32.mrb[0].mxu0
    %1811 = vmatprep.mubr.f32.mxu0 0.0
    %1812 = vmatmul.mubr.f32.gmra.mrb[0].mxu0 %v1592
    %v1813 = vpop.f32.mrb[0].mxu0
    %v1814 = vadd.f32 0.0, %v1813
    %v1815 = vpop.f32.mrb[0].mxu0
    %1816 = vmatprep.mubr.f32.mxu0 0.0
    %1817 = vmatmul.mubr.f32.gmra.mrb[0].mxu0 %v1595
    %v1818 = vpop.f32.mrb[0].mxu0
    %v1819 = vadd.f32 0.0, %v1818
    %v1820 = vpop.f32.mrb[0].mxu0
    %1821 = vdwg.mxu0
    %v1822 = vmul.f32 %v748, %v818
    %v1824 = vsel %vm1500, %v1822, 0
    %1826 = vmatprep.subr.mxu0 0.0
    %1827 = vmatpush1.msra.mxu0 %v82
    %1828 = vmatprep.subr.mxu0 0.0
    %1829 = vmatpush1.msra.mxu0 %v83
    %1830 = vmatprep.subr.mxu0 0.0
    %1831 = vmatpush1.msra.mxu0 %v84
    %1832 = vmatprep.subr.mxu0 0.0
    %1833 = vmatpush1.msra.mxu0 %v85
    %1834 = vmatprep.subr.mxu0 0.0
    %1835 = vmatpush1.msra.mxu0 %v86
    %1836 = vmatprep.subr.mxu0 0.0
    %1837 = vmatpush1.msra.mxu0 %v87
    %1838 = vmatprep.subr.mxu0 0.0
    %1839 = vmatpush1.msra.mxu0 %v88
    %1840 = vmatprep.subr.mxu0 0.0
    %1841 = vmatpush1.msra.mxu0 %v89
    %1842 = vmatprep.subr.mxu0 0.0
    %1843 = vmatpush1.msra.mxu0 0.0
    %1844 = vmatprep.subr.mxu0 0.0
    %1845 = vmatpush1.msra.mxu0 0.0
    %1846 = vmatprep.subr.mxu0 0.0
    %1847 = vmatpush1.msra.mxu0 0.0
    %1848 = vmatprep.subr.mxu0 0.0
    %1849 = vmatpush1.msra.mxu0 0.0
    %1850 = vmatprep.subr.mxu0 0.0
    %1851 = vmatpush1.msra.mxu0 0.0
    %1852 = vmatprep.subr.mxu0 0.0
    %1853 = vmatpush1.msra.mxu0 0.0
    %1854 = vmatprep.subr.mxu0 0.0
    %1855 = vmatpush1.msra.mxu0 0.0
    %1856 = vmatprep.subr.mxu0 0.0
    %1857 = vmatpush1.msra.mxu0 0.0
    %1858 = vmatprep.subr.mxu0 0.0
    %1859 = vmatpush1.msra.mxu0 0.0
    %1860 = vmatprep.subr.mxu0 0.0
    %1861 = vmatpush1.msra.mxu0 0.0
    %1862 = vmatprep.subr.mxu0 0.0
    %1863 = vmatpush1.msra.mxu0 0.0
    %1864 = vmatprep.subr.mxu0 0.0
    %1865 = vmatpush1.msra.mxu0 0.0
    %1866 = vmatprep.subr.mxu0 0.0
    %1867 = vmatpush1.msra.mxu0 0.0
    %1868 = vmatprep.subr.mxu0 0.0
    %1869 = vmatpush1.msra.mxu0 0.0
    %1870 = vmatprep.subr.mxu0 0.0
    %1871 = vmatpush1.msra.mxu0 0.0
    %1872 = vmatprep.subr.mxu0 0.0
    %1873 = vmatpush1.msra.mxu0 0.0
    %1874 = vmatprep.subr.mxu0 0.0
    %1875 = vmatpush1.msra.mxu0 0.0
    %1876 = vmatprep.subr.mxu0 0.0
    %1877 = vmatpush1.msra.mxu0 0.0
    %1878 = vmatprep.subr.mxu0 0.0
    %1879 = vmatpush1.msra.mxu0 0.0
    %1880 = vmatprep.subr.mxu0 0.0
    %1881 = vmatpush1.msra.mxu0 0.0
    %1882 = vmatprep.subr.mxu0 0.0
    %1883 = vmatpush1.msra.mxu0 0.0
    %1884 = vmatprep.subr.mxu0 0.0
    %1885 = vmatpush1.msra.mxu0 0.0
    %1886 = vmatprep.subr.mxu0 0.0
    %1887 = vmatpush1.msra.mxu0 0.0
    %1888 = vmatprep.subr.mxu0 0.0
    %1889 = vmatpush1.msra.mxu0 0.0
    %1890 = vmatprep.mubr.f32.mxu0 0.0
    %1891 = vmatmul.mubr.f32.gmra.mrb[0].mxu0 %v1824
    %v1892 = vpop.f32.mrb[0].mxu0
    %v1893 = vadd.f32 0.0, %v1892
    %v1894 = vpop.f32.mrb[0].mxu0
    %1895 = vdwg.mxu0
    %v1896 = vsel %vm1500, %v1664, -inf
    %v1897 = vsel %vm1500, %v1669, -inf
    %v1898 = vsel %vm1500, %v1674, -inf
    %v1899 = vsel %vm1500, %v1679, -inf
    %v1900 = vsel %vm1500, %v1684, -inf
    %v1901 = vmax.f32 %v1896, %v1900
    %v1902 = vsel %vm1500, %v1689, -inf
    %v1903 = vmax.f32 %v1897, %v1902
    %v1904 = vsel %vm1500, %v1694, -inf
    %v1905 = vmax.f32 %v1898, %v1904
    %v1906 = vsel %vm1500, %v1699, -inf
    %v1907 = vmax.f32 %v1899, %v1906
    %v1908 = vsel %vm1500, %v1704, -inf
    %v1909 = vmax.f32 %v1901, %v1908
    %v1910 = vsel %vm1500, %v1709, -inf
    %v1911 = vmax.f32 %v1903, %v1910
    %v1912 = vsel %vm1500, %v1714, -inf
    %v1913 = vmax.f32 %v1905, %v1912
    %v1914 = vsel %vm1500, %v1719, -inf
    %v1915 = vmax.f32 %v1907, %v1914
    %v1916 = vsel %vm1500, %v1724, -inf
    %v1917 = vmax.f32 %v1909, %v1916
    %v1918 = vsel %vm1500, %v1729, -inf
    %v1919 = vmax.f32 %v1911, %v1918
    %v1920 = vsel %vm1500, %v1734, -inf
    %v1921 = vmax.f32 %v1913, %v1920
    %v1922 = vsel %vm1500, %v1739, -inf
    %v1923 = vmax.f32 %v1915, %v1922
    %v1924 = vsel %vm1500, %v1744, -inf
    %v1925 = vmax.f32 %v1917, %v1924
    %v1926 = vsel %vm1500, %v1749, -inf
    %v1927 = vmax.f32 %v1919, %v1926
    %v1928 = vsel %vm1500, %v1754, -inf
    %v1929 = vmax.f32 %v1921, %v1928
    %v1930 = vsel %vm1500, %v1759, -inf
    %v1931 = vmax.f32 %v1923, %v1930
    %v1932 = vsel %vm1500, %v1764, -inf
    %v1933 = vmax.f32 %v1925, %v1932
    %v1934 = vsel %vm1500, %v1769, -inf
    %v1935 = vmax.f32 %v1927, %v1934
    %v1936 = vsel %vm1500, %v1774, -inf
    %v1937 = vmax.f32 %v1929, %v1936
    %v1938 = vsel %vm1500, %v1779, -inf
    %v1939 = vmax.f32 %v1931, %v1938
    %v1940 = vsel %vm1500, %v1784, -inf
    %v1941 = vmax.f32 %v1933, %v1940
    %v1942 = vsel %vm1500, %v1789, -inf
    %v1943 = vmax.f32 %v1935, %v1942
    %v1944 = vsel %vm1500, %v1794, -inf
    %v1945 = vmax.f32 %v1937, %v1944
    %v1946 = vsel %vm1500, %v1799, -inf
    %v1947 = vmax.f32 %v1939, %v1946
    %v1948 = vsel %vm1500, %v1804, -inf
    %v1949 = vmax.f32 %v1941, %v1948
    %v1950 = vsel %vm1500, %v1809, -inf
    %v1951 = vmax.f32 %v1943, %v1950
    %v1952 = vsel %vm1500, %v1814, -inf
    %v1953 = vmax.f32 %v1945, %v1952
    %v1954 = vsel %vm1500, %v1819, -inf
    %v1955 = vmax.f32 %v1947, %v1954
    %v1956 = vmax.f32 %v1949, %v1951
    %v1957 = vmax.f32 %v1953, %v1955
    %v1958 = vmax.f32 %v1956, %v1957
    %v1959 = vrot.slane %v1958, 4
    %v1960 = vmax.f32 %v1958, %v1959
    %v1961 = vrot.slane %v1960, 2
    %v1962 = vmax.f32 %v1960, %v1961
    %v1963 = vrot.slane %v1962, 1
    %v1964 = vmax.f32 %v1962, %v1963
    %vm1965 = vcmask 517120
    %v1966 = vsel %vm1965, %v1893, -inf
    %v1967 = vrot.slane %v1966, 4
    %v1968 = vmax.f32 %v1966, %v1967
    %v1969 = vrot.slane %v1968, 2
    %v1970 = vmax.f32 %v1968, %v1969
    %v1971 = vrot.slane %v1970, 1
    %v1972 = vmax.f32 %v1970, %v1971
    %v1973 = vmax.f32 %v1964, %v1972
    %v1974 = vsub.f32 %v1664, %v1973
    %v1975 = vsub.f32 %v1669, %v1973
    %v1976 = vsub.f32 %v1674, %v1973
    %v1977 = vsub.f32 %v1679, %v1973
    %v1978 = vsub.f32 %v1684, %v1973
    %v1979 = vsub.f32 %v1689, %v1973
    %v1980 = vsub.f32 %v1694, %v1973
    %v1981 = vsub.f32 %v1699, %v1973
    %v1982 = vsub.f32 %v1704, %v1973
    %v1983 = vsub.f32 %v1709, %v1973
    %v1984 = vsub.f32 %v1714, %v1973
    %v1985 = vsub.f32 %v1719, %v1973
    %v1986 = vsub.f32 %v1724, %v1973
    %v1987 = vsub.f32 %v1729, %v1973
    %v1988 = vsub.f32 %v1734, %v1973
    %v1989 = vsub.f32 %v1739, %v1973
    %v1990 = vsub.f32 %v1744, %v1973
    %v1991 = vsub.f32 %v1749, %v1973
    %v1992 = vsub.f32 %v1754, %v1973
    %v1993 = vsub.f32 %v1759, %v1973
    %v1994 = vsub.f32 %v1764, %v1973
    %v1995 = vsub.f32 %v1769, %v1973
    %v1996 = vsub.f32 %v1774, %v1973
    %v1997 = vsub.f32 %v1779, %v1973
    %v1998 = vsub.f32 %v1784, %v1973
    %v1999 = vsub.f32 %v1789, %v1973
    %v2000 = vsub.f32 %v1794, %v1973
    %v2001 = vsub.f32 %v1799, %v1973
    %v2002 = vsub.f32 %v1804, %v1973
    %v2003 = vsub.f32 %v1809, %v1973
    %v2004 = vsub.f32 %v1814, %v1973
    %v2005 = vsub.f32 %v1819, %v1973
    %v2006 = vmul.f32 %v1974, 1.442695
    %v2007 = vpow.pop %v2006
    %v2008 = vmul.f32 %v1975, 1.442695
    %v2009 = vpow.pop %v2008
    %v2010 = vmul.f32 %v1976, 1.442695
    %v2011 = vpow.pop %v2010
    %v2012 = vmul.f32 %v1977, 1.442695
    %v2013 = vpow.pop %v2012
    %v2014 = vmul.f32 %v1978, 1.442695
    %v2015 = vpow.pop %v2014
    %v2016 = vmul.f32 %v1979, 1.442695
    %v2017 = vpow.pop %v2016
    %v2018 = vmul.f32 %v1980, 1.442695
    %v2019 = vpow.pop %v2018
    %v2020 = vmul.f32 %v1981, 1.442695
    %v2021 = vpow.pop %v2020
    %v2022 = vmul.f32 %v1982, 1.442695
    %v2023 = vpow.pop %v2022
    %v2024 = vmul.f32 %v1983, 1.442695
    %v2025 = vpow.pop %v2024
    %v2026 = vmul.f32 %v1984, 1.442695
    %v2027 = vpow.pop %v2026
    %v2028 = vmul.f32 %v1985, 1.442695
    %v2029 = vpow.pop %v2028
    %v2030 = vmul.f32 %v1986, 1.442695
    %v2031 = vpow.pop %v2030
    %v2032 = vmul.f32 %v1987, 1.442695
    %v2033 = vpow.pop %v2032
    %v2034 = vmul.f32 %v1988, 1.442695
    %v2035 = vpow.pop %v2034
    %v2036 = vmul.f32 %v1989, 1.442695
    %v2037 = vpow.pop %v2036
    %v2038 = vmul.f32 %v1990, 1.442695
    %v2039 = vpow.pop %v2038
    %v2040 = vmul.f32 %v1991, 1.442695
    %v2041 = vpow.pop %v2040
    %v2042 = vmul.f32 %v1992, 1.442695
    %v2043 = vpow.pop %v2042
    %v2044 = vmul.f32 %v1993, 1.442695
    %v2045 = vpow.pop %v2044
    %v2046 = vmul.f32 %v1994, 1.442695
    %v2047 = vpow.pop %v2046
    %v2048 = vmul.f32 %v1995, 1.442695
    %v2049 = vpow.pop %v2048
    %v2050 = vmul.f32 %v1996, 1.442695
    %v2051 = vpow.pop %v2050
    %v2052 = vmul.f32 %v1997, 1.442695
    %v2053 = vpow.pop %v2052
    %v2054 = vmul.f32 %v1998, 1.442695
    %v2055 = vpow.pop %v2054
    %v2056 = vmul.f32 %v1999, 1.442695
    %v2057 = vpow.pop %v2056
    %v2058 = vmul.f32 %v2000, 1.442695
    %v2059 = vpow.pop %v2058
    %v2060 = vmul.f32 %v2001, 1.442695
    %v2061 = vpow.pop %v2060
    %v2062 = vmul.f32 %v2002, 1.442695
    %v2063 = vpow.pop %v2062
    %v2064 = vmul.f32 %v2003, 1.442695
    %v2065 = vpow.pop %v2064
    %v2066 = vmul.f32 %v2004, 1.442695
    %v2067 = vpow.pop %v2066
    %v2068 = vmul.f32 %v2005, 1.442695
    %v2069 = vpow.pop %v2068
    %v2070 = vsub.f32 %v1893, %v1973
    %v2071 = vmul.f32 %v2070, 1.442695
    %v2072 = vpow.pop %v2071
    %v2073 = vmul.f32 %v2007, %v984
    %v2074 = vmul.f32 %v2009, %v989
    %v2075 = vmul.f32 %v2011, %v994
    %v2076 = vmul.f32 %v2013, %v999
    %v2077 = vmul.f32 %v2015, %v1004
    %v2078 = vmul.f32 %v2017, %v1009
    %v2079 = vmul.f32 %v2019, %v1014
    %v2080 = vmul.f32 %v2021, %v1019
    %v2081 = vmul.f32 %v2023, %v1024
    %v2082 = vmul.f32 %v2025, %v1029
    %v2083 = vmul.f32 %v2027, %v1034
    %v2084 = vmul.f32 %v2029, %v1039
    %v2085 = vmul.f32 %v2031, %v1044
    %v2086 = vmul.f32 %v2033, %v1049
    %v2087 = vmul.f32 %v2035, %v1054
    %v2088 = vmul.f32 %v2037, %v1059
    %v2089 = vmul.f32 %v2039, %v1064
    %v2090 = vmul.f32 %v2041, %v1069
    %v2091 = vmul.f32 %v2043, %v1074
    %v2092 = vmul.f32 %v2045, %v1079
    %v2093 = vmul.f32 %v2047, %v1084
    %v2094 = vmul.f32 %v2049, %v1089
    %v2095 = vmul.f32 %v2051, %v1094
    %v2096 = vmul.f32 %v2053, %v1099
    %v2097 = vmul.f32 %v2055, %v1104
    %v2098 = vmul.f32 %v2057, %v1109
    %v2099 = vmul.f32 %v2059, %v1114
    %v2100 = vmul.f32 %v2061, %v1119
    %v2101 = vmul.f32 %v2063, %v1124
    %v2102 = vmul.f32 %v2065, %v1129
    %v2103 = vmul.f32 %v2067, %v1134
    %v2104 = vmul.f32 %v2069, %v1139
    %2137 = vrot.lane.b32.xlu0 %v2073, 64
    %v2138 = vpop.permute.xlu0 %2137
    %2139 = vrot.lane.b32.xlu0 %v2074, 64
    %v2140 = vpop.permute.xlu0 %2139
    %2141 = vrot.lane.b32.xlu0 %v2075, 64
    %v2142 = vpop.permute.xlu0 %2141
    %2143 = vrot.lane.b32.xlu0 %v2076, 64
    %v2144 = vpop.permute.xlu0 %2143
    %2145 = vrot.lane.b32.xlu0 %v2077, 64
    %v2146 = vpop.permute.xlu0 %2145
    %2147 = vrot.lane.b32.xlu0 %v2078, 64
    %v2148 = vpop.permute.xlu0 %2147
    %2149 = vrot.lane.b32.xlu0 %v2079, 64
    %v2150 = vpop.permute.xlu0 %2149
    %2151 = vrot.lane.b32.xlu0 %v2080, 64
    %v2152 = vpop.permute.xlu0 %2151
    %2153 = vrot.lane.b32.xlu0 %v2081, 64
    %v2154 = vpop.permute.xlu0 %2153
    %2155 = vrot.lane.b32.xlu0 %v2082, 64
    %v2156 = vpop.permute.xlu0 %2155
    %2157 = vrot.lane.b32.xlu0 %v2083, 64
    %v2158 = vpop.permute.xlu0 %2157
    %2159 = vrot.lane.b32.xlu0 %v2084, 64
    %v2160 = vpop.permute.xlu0 %2159
    %2161 = vrot.lane.b32.xlu0 %v2085, 64
    %v2162 = vpop.permute.xlu0 %2161
    %2163 = vrot.lane.b32.xlu0 %v2086, 64
    %v2164 = vpop.permute.xlu0 %2163
    %2165 = vrot.lane.b32.xlu0 %v2087, 64
    %v2166 = vpop.permute.xlu0 %2165
    %2167 = vrot.lane.b32.xlu0 %v2088, 64
    %v2168 = vpop.permute.xlu0 %2167
    %2169 = vrot.lane.b32.xlu0 %v2089, 64
    %v2170 = vpop.permute.xlu0 %2169
    %2171 = vrot.lane.b32.xlu0 %v2090, 64
    %v2172 = vpop.permute.xlu0 %2171
    %2173 = vrot.lane.b32.xlu0 %v2091, 64
    %v2174 = vpop.permute.xlu0 %2173
    %2175 = vrot.lane.b32.xlu0 %v2092, 64
    %v2176 = vpop.permute.xlu0 %2175
    %2177 = vrot.lane.b32.xlu0 %v2093, 64
    %v2178 = vpop.permute.xlu0 %2177
    %2179 = vrot.lane.b32.xlu0 %v2094, 64
    %v2180 = vpop.permute.xlu0 %2179
    %2181 = vrot.lane.b32.xlu0 %v2095, 64
    %v2182 = vpop.permute.xlu0 %2181
    %2183 = vrot.lane.b32.xlu0 %v2096, 64
    %v2184 = vpop.permute.xlu0 %2183
    %2185 = vrot.lane.b32.xlu0 %v2097, 64
    %v2186 = vpop.permute.xlu0 %2185
    %2187 = vrot.lane.b32.xlu0 %v2098, 64
    %v2188 = vpop.permute.xlu0 %2187
    %2189 = vrot.lane.b32.xlu0 %v2099, 64
    %v2190 = vpop.permute.xlu0 %2189
    %2191 = vrot.lane.b32.xlu0 %v2100, 64
    %v2192 = vpop.permute.xlu0 %2191
    %2193 = vrot.lane.b32.xlu0 %v2101, 64
    %v2194 = vpop.permute.xlu0 %2193
    %2195 = vrot.lane.b32.xlu0 %v2102, 64
    %v2196 = vpop.permute.xlu0 %2195
    %2197 = vrot.lane.b32.xlu0 %v2103, 64
    %v2198 = vpop.permute.xlu0 %2197
    %2199 = vrot.lane.b32.xlu0 %v2104, 64
    %v2200 = vpop.permute.xlu0 %2199
    %v2233 = vsel %vm1500, %v2007, %v2138
    %v2234 = vsel %vm1500, %v2009, %v2140
    %v2235 = vsel %vm1500, %v2011, %v2142
    %v2236 = vsel %vm1500, %v2013, %v2144
    %v2237 = vsel %vm1500, %v2015, %v2146
    %v2238 = vsel %vm1500, %v2017, %v2148
    %v2239 = vsel %vm1500, %v2019, %v2150
    %v2240 = vsel %vm1500, %v2021, %v2152
    %v2241 = vsel %vm1500, %v2023, %v2154
    %v2242 = vsel %vm1500, %v2025, %v2156
    %v2243 = vsel %vm1500, %v2027, %v2158
    %v2244 = vsel %vm1500, %v2029, %v2160
    %v2245 = vsel %vm1500, %v2031, %v2162
    %v2246 = vsel %vm1500, %v2033, %v2164
    %v2247 = vsel %vm1500, %v2035, %v2166
    %v2248 = vsel %vm1500, %v2037, %v2168
    %v2249 = vsel %vm1500, %v2039, %v2170
    %v2250 = vsel %vm1500, %v2041, %v2172
    %v2251 = vsel %vm1500, %v2043, %v2174
    %v2252 = vsel %vm1500, %v2045, %v2176
    %v2253 = vsel %vm1500, %v2047, %v2178
    %v2254 = vsel %vm1500, %v2049, %v2180
    %v2255 = vsel %vm1500, %v2051, %v2182
    %v2256 = vsel %vm1500, %v2053, %v2184
    %v2257 = vsel %vm1500, %v2055, %v2186
    %v2258 = vsel %vm1500, %v2057, %v2188
    %v2259 = vsel %vm1500, %v2059, %v2190
    %v2260 = vsel %vm1500, %v2061, %v2192
    %v2261 = vsel %vm1500, %v2063, %v2194
    %v2262 = vsel %vm1500, %v2065, %v2196
    %v2263 = vsel %vm1500, %v2067, %v2198
    %v2264 = vsel %vm1500, %v2069, %v2200
    %v2265 = vmul.f32 %v2072, %v818
    %2267 = vrot.lane.b32.xlu0 %v2265, 64
    %v2268 = vpop.permute.xlu0 %2267
    %v2270 = vsel %vm1500, %v2072, %v2268
    %v2272 = vsel %vm1142, %v130, 0
    %v2275 = vsel %vm1142, %v131, 0
    %v2278 = vsel %vm1142, %v132, 0
    %v2281 = vsel %vm1142, %v133, 0
    %v2284 = vsel %vm1239, %v2270, 0
    %2286 = vmatprep.subr.mxu0 0.0
    %2287 = vmatpush1.msra.mxu0 %v2284
    %2288 = vmatprep.subr.mxu0 0.0
    %2289 = vmatpush1.msra.mxu0 0.0
    %2290 = vmatprep.subr.mxu0 0.0
    %2291 = vmatpush1.msra.mxu0 0.0
    %2292 = vmatprep.subr.mxu0 0.0
    %2293 = vmatpush1.msra.mxu0 0.0
    %2294 = vmatprep.subr.mxu0 0.0
    %2295 = vmatpush1.msra.mxu0 0.0
    %2296 = vmatprep.subr.mxu0 0.0
    %2297 = vmatpush1.msra.mxu0 0.0
    %2298 = vmatprep.subr.mxu0 0.0
    %2299 = vmatpush1.msra.mxu0 0.0
    %2300 = vmatprep.subr.mxu0 0.0
    %2301 = vmatpush1.msra.mxu0 0.0
    %2302 = vmatprep.subr.mxu0 0.0
    %2303 = vmatpush1.msra.mxu0 0.0
    %2304 = vmatprep.subr.mxu0 0.0
    %2305 = vmatpush1.msra.mxu0 0.0
    %2306 = vmatprep.subr.mxu0 0.0
    %2307 = vmatpush1.msra.mxu0 0.0
    %2308 = vmatprep.subr.mxu0 0.0
    %2309 = vmatpush1.msra.mxu0 0.0
    %2310 = vmatprep.subr.mxu0 0.0
    %2311 = vmatpush1.msra.mxu0 0.0
    %2312 = vmatprep.subr.mxu0 0.0
    %2313 = vmatpush1.msra.mxu0 0.0
    %2314 = vmatprep.subr.mxu0 0.0
    %2315 = vmatpush1.msra.mxu0 0.0
    %2316 = vmatprep.subr.mxu0 0.0
    %2317 = vmatpush1.msra.mxu0 0.0
    %2318 = vmatprep.subr.mxu0 0.0
    %2319 = vmatpush1.msra.mxu0 0.0
    %2320 = vmatprep.subr.mxu0 0.0
    %2321 = vmatpush1.msra.mxu0 0.0
    %2322 = vmatprep.subr.mxu0 0.0
    %2323 = vmatpush1.msra.mxu0 0.0
    %2324 = vmatprep.subr.mxu0 0.0
    %2325 = vmatpush1.msra.mxu0 0.0
    %2326 = vmatprep.subr.mxu0 0.0
    %2327 = vmatpush1.msra.mxu0 0.0
    %2328 = vmatprep.subr.mxu0 0.0
    %2329 = vmatpush1.msra.mxu0 0.0
    %2330 = vmatprep.subr.mxu0 0.0
    %2331 = vmatpush1.msra.mxu0 0.0
    %2332 = vmatprep.subr.mxu0 0.0
    %2333 = vmatpush1.msra.mxu0 0.0
    %2334 = vmatprep.subr.mxu0 0.0
    %2335 = vmatpush1.msra.mxu0 0.0
    %2336 = vmatprep.subr.mxu0 0.0
    %2337 = vmatpush1.msra.mxu0 0.0
    %2338 = vmatprep.subr.mxu0 0.0
    %2339 = vmatpush1.msra.mxu0 0.0
    %2340 = vmatprep.subr.mxu0 0.0
    %2341 = vmatpush1.msra.mxu0 0.0
    %2342 = vmatprep.subr.mxu0 0.0
    %2343 = vmatpush1.msra.mxu0 0.0
    %2344 = vmatprep.subr.mxu0 0.0
    %2345 = vmatpush1.msra.mxu0 0.0
    %2346 = vmatprep.subr.mxu0 0.0
    %2347 = vmatpush1.msra.mxu0 0.0
    %2348 = vmatprep.subr.mxu0 0.0
    %2349 = vmatpush1.msra.mxu0 0.0
    %2350 = vmatprep.mubr.f32.mxu0 0.0
    %2351 = vmatmul.mubr.f32.gmra.mrb[0].mxu0 %v2272
    %v2352 = vpop.f32.mrb[0].mxu0
    %v2353 = vadd.f32 0.0, %v2352
    %v2354 = vpop.f32.mrb[0].mxu0
    %2355 = vmatprep.mubr.f32.mxu0 0.0
    %2356 = vmatmul.mubr.f32.gmra.mrb[0].mxu0 %v2275
    %v2357 = vpop.f32.mrb[0].mxu0
    %v2358 = vadd.f32 0.0, %v2357
    %v2359 = vpop.f32.mrb[0].mxu0
    %2360 = vmatprep.mubr.f32.mxu0 0.0
    %2361 = vmatmul.mubr.f32.gmra.mrb[0].mxu0 %v2278
    %v2362 = vpop.f32.mrb[0].mxu0
    %v2363 = vadd.f32 0.0, %v2362
    %v2364 = vpop.f32.mrb[0].mxu0
    %2365 = vmatprep.mubr.f32.mxu0 0.0
    %2366 = vmatmul.mubr.f32.gmra.mrb[0].mxu0 %v2281
    %v2367 = vpop.f32.mrb[0].mxu0
    %v2368 = vadd.f32 0.0, %v2367
    %v2369 = vpop.f32.mrb[0].mxu0
    %2370 = vdwg.mxu0
    %2371 = vmatprep.subr.mxu0 0.0
    %2372 = vmatpush1.msra.mxu0 %v2233
    %2373 = vmatprep.subr.mxu0 0.0
    %2374 = vmatpush1.msra.mxu0 %v2234
    %2375 = vmatprep.subr.mxu0 0.0
    %2376 = vmatpush1.msra.mxu0 %v2235
    %2377 = vmatprep.subr.mxu0 0.0
    %2378 = vmatpush1.msra.mxu0 %v2236
    %2379 = vmatprep.subr.mxu0 0.0
    %2380 = vmatpush1.msra.mxu0 %v2237
    %2381 = vmatprep.subr.mxu0 0.0
    %2382 = vmatpush1.msra.mxu0 %v2238
    %2383 = vmatprep.subr.mxu0 0.0
    %2384 = vmatpush1.msra.mxu0 %v2239
    %2385 = vmatprep.subr.mxu0 0.0
    %2386 = vmatpush1.msra.mxu0 %v2240
    %2387 = vmatprep.subr.mxu0 0.0
    %2388 = vmatpush1.msra.mxu0 %v2241
    %2389 = vmatprep.subr.mxu0 0.0
    %2390 = vmatpush1.msra.mxu0 %v2242
    %2391 = vmatprep.subr.mxu0 0.0
    %2392 = vmatpush1.msra.mxu0 %v2243
    %2393 = vmatprep.subr.mxu0 0.0
    %2394 = vmatpush1.msra.mxu0 %v2244
    %2395 = vmatprep.subr.mxu0 0.0
    %2396 = vmatpush1.msra.mxu0 %v2245
    %2397 = vmatprep.subr.mxu0 0.0
    %2398 = vmatpush1.msra.mxu0 %v2246
    %2399 = vmatprep.subr.mxu0 0.0
    %2400 = vmatpush1.msra.mxu0 %v2247
    %2401 = vmatprep.subr.mxu0 0.0
    %2402 = vmatpush1.msra.mxu0 %v2248
    %2403 = vmatprep.subr.mxu0 0.0
    %2404 = vmatpush1.msra.mxu0 %v2249
    %2405 = vmatprep.subr.mxu0 0.0
    %2406 = vmatpush1.msra.mxu0 %v2250
    %2407 = vmatprep.subr.mxu0 0.0
    %2408 = vmatpush1.msra.mxu0 %v2251
    %2409 = vmatprep.subr.mxu0 0.0
    %2410 = vmatpush1.msra.mxu0 %v2252
    %2411 = vmatprep.subr.mxu0 0.0
    %2412 = vmatpush1.msra.mxu0 %v2253
    %2413 = vmatprep.subr.mxu0 0.0
    %2414 = vmatpush1.msra.mxu0 %v2254
    %2415 = vmatprep.subr.mxu0 0.0
    %2416 = vmatpush1.msra.mxu0 %v2255
    %2417 = vmatprep.subr.mxu0 0.0
    %2418 = vmatpush1.msra.mxu0 %v2256
    %2419 = vmatprep.subr.mxu0 0.0
    %2420 = vmatpush1.msra.mxu0 %v2257
    %2421 = vmatprep.subr.mxu0 0.0
    %2422 = vmatpush1.msra.mxu0 %v2258
    %2423 = vmatprep.subr.mxu0 0.0
    %2424 = vmatpush1.msra.mxu0 %v2259
    %2425 = vmatprep.subr.mxu0 0.0
    %2426 = vmatpush1.msra.mxu0 %v2260
    %2427 = vmatprep.subr.mxu0 0.0
    %2428 = vmatpush1.msra.mxu0 %v2261
    %2429 = vmatprep.subr.mxu0 0.0
    %2430 = vmatpush1.msra.mxu0 %v2262
    %2431 = vmatprep.subr.mxu0 0.0
    %2432 = vmatpush1.msra.mxu0 %v2263
    %2433 = vmatprep.subr.mxu0 0.0
    %2434 = vmatpush1.msra.mxu0 %v2264
    %2435 = vmatprep.mubr.f32.mxu0 %v91
    %2436 = vmatmul.mubr.f32.gmra.mrb[0].mxu0 %v90
    %v2437 = vpop.f32.mrb[0].mxu0
    %v2438 = vadd.f32 %v2353, %v2437
    %v2439 = vpop.f32.mrb[0].mxu0
    %2440 = vmatprep.mubr.f32.mxu0 %v93
    %2441 = vmatmul.mubr.f32.gmra.mrb[0].mxu0 %v92
    %v2442 = vpop.f32.mrb[0].mxu0
    %v2443 = vadd.f32 %v2358, %v2442
    %v2444 = vpop.f32.mrb[0].mxu0
    %2445 = vmatprep.mubr.f32.mxu0 %v95
    %2446 = vmatmul.mubr.f32.gmra.mrb[0].mxu0 %v94
    %v2447 = vpop.f32.mrb[0].mxu0
    %v2448 = vadd.f32 %v2363, %v2447
    %v2449 = vpop.f32.mrb[0].mxu0
    %2450 = vmatprep.mubr.f32.mxu0 %v97
    %2451 = vmatmul.mubr.f32.gmra.mrb[0].mxu0 %v96
    %v2452 = vpop.f32.mrb[0].mxu0
    %v2453 = vadd.f32 %v2368, %v2452
    %v2454 = vpop.f32.mrb[0].mxu0
    %2455 = vdwg.mxu0
    %v2456 = vrcp.pop %v2438
    %v2457 = vrcp.pop %v2443
    %v2458 = vrcp.pop %v2448
    %v2459 = vrcp.pop %v2453
    %2464 = vrot.lane.b32.xlu0 %v2456, 64
    %v2465 = vpop.permute.xlu0 %2464
    %2466 = vrot.lane.b32.xlu0 %v2457, 64
    %v2467 = vpop.permute.xlu0 %2466
    %2468 = vrot.lane.b32.xlu0 %v2458, 64
    %v2469 = vpop.permute.xlu0 %2468
    %2470 = vrot.lane.b32.xlu0 %v2459, 64
    %v2471 = vpop.permute.xlu0 %2470
    %v2476 = vmul.f32 %v2438, %v2465
    %v2477 = vmul.f32 %v2443, %v2467
    %v2478 = vmul.f32 %v2448, %v2469
    %v2479 = vmul.f32 %v2453, %v2471
    %2484 = vrot.lane.b32.xlu0 %v2476, 64
    %v2485 = vpop.permute.xlu0 %2484
    %2486 = vrot.lane.b32.xlu0 %v2477, 64
    %v2487 = vpop.permute.xlu0 %2486
    %2488 = vrot.lane.b32.xlu0 %v2478, 64
    %v2489 = vpop.permute.xlu0 %2488
    %2490 = vrot.lane.b32.xlu0 %v2479, 64
    %v2491 = vpop.permute.xlu0 %2490
    %v2497 = vsel %vm167, %v134, 0
    %2499 = vmatprep.subr.mxu0 0.0
    %2500 = vmatpush1.msra.mxu0 %v2485
    %2501 = vmatprep.subr.mxu0 0.0
    %2502 = vmatpush1.msra.mxu0 %v2487
    %2503 = vmatprep.subr.mxu0 0.0
    %2504 = vmatpush1.msra.mxu0 %v2489
    %2505 = vmatprep.subr.mxu0 0.0
    %2506 = vmatpush1.msra.mxu0 %v2491
    %2507 = vmatprep.subr.mxu0 0.0
    %2508 = vmatpush1.msra.mxu0 0.0
    %2509 = vmatprep.subr.mxu0 0.0
    %2510 = vmatpush1.msra.mxu0 0.0
    %2511 = vmatprep.subr.mxu0 0.0
    %2512 = vmatpush1.msra.mxu0 0.0
    %2513 = vmatprep.subr.mxu0 0.0
    %2514 = vmatpush1.msra.mxu0 0.0
    %2515 = vmatprep.subr.mxu0 0.0
    %2516 = vmatpush1.msra.mxu0 0.0
    %2517 = vmatprep.subr.mxu0 0.0
    %2518 = vmatpush1.msra.mxu0 0.0
    %2519 = vmatprep.subr.mxu0 0.0
    %2520 = vmatpush1.msra.mxu0 0.0
    %2521 = vmatprep.subr.mxu0 0.0
    %2522 = vmatpush1.msra.mxu0 0.0
    %2523 = vmatprep.subr.mxu0 0.0
    %2524 = vmatpush1.msra.mxu0 0.0
    %2525 = vmatprep.subr.mxu0 0.0
    %2526 = vmatpush1.msra.mxu0 0.0
    %2527 = vmatprep.subr.mxu0 0.0
    %2528 = vmatpush1.msra.mxu0 0.0
    %2529 = vmatprep.subr.mxu0 0.0
    %2530 = vmatpush1.msra.mxu0 0.0
    %2531 = vmatprep.subr.mxu0 0.0
    %2532 = vmatpush1.msra.mxu0 0.0
    %2533 = vmatprep.subr.mxu0 0.0
    %2534 = vmatpush1.msra.mxu0 0.0
    %2535 = vmatprep.subr.mxu0 0.0
    %2536 = vmatpush1.msra.mxu0 0.0
    %2537 = vmatprep.subr.mxu0 0.0
    %2538 = vmatpush1.msra.mxu0 0.0
    %2539 = vmatprep.subr.mxu0 0.0
    %2540 = vmatpush1.msra.mxu0 0.0
    %2541 = vmatprep.subr.mxu0 0.0
    %2542 = vmatpush1.msra.mxu0 0.0
    %2543 = vmatprep.subr.mxu0 0.0
    %2544 = vmatpush1.msra.mxu0 0.0
    %2545 = vmatprep.subr.mxu0 0.0
    %2546 = vmatpush1.msra.mxu0 0.0
    %2547 = vmatprep.subr.mxu0 0.0
    %2548 = vmatpush1.msra.mxu0 0.0
    %2549 = vmatprep.subr.mxu0 0.0
    %2550 = vmatpush1.msra.mxu0 0.0
    %2551 = vmatprep.subr.mxu0 0.0
    %2552 = vmatpush1.msra.mxu0 0.0
    %2553 = vmatprep.subr.mxu0 0.0
    %2554 = vmatpush1.msra.mxu0 0.0
    %2555 = vmatprep.subr.mxu0 0.0
    %2556 = vmatpush1.msra.mxu0 0.0
    %2557 = vmatprep.subr.mxu0 0.0
    %2558 = vmatpush1.msra.mxu0 0.0
    %2559 = vmatprep.subr.mxu0 0.0
    %2560 = vmatpush1.msra.mxu0 0.0
    %2561 = vmatprep.subr.mxu0 0.0
    %2562 = vmatpush1.msra.mxu0 0.0
    %2563 = vmatprep.mubr.f32.mxu0 0.0
    %2564 = vmatmul.mubr.f32.gmra.mrb[0].mxu0 %v2497
    %v2565 = vpop.f32.mrb[0].mxu0
    %v2566 = vadd.f32 0.0, %v2565
    %v2567 = vpop.f32.mrb[0].mxu0
    %2568 = vdwg.mxu0
    %v2570 = vlaneseq
    %v2571 = vshrl.u32 %v2570, 7
    %v2572 = vsub.s32 0, %v2571
    %v2573 = vrot.slane %v81, %v2572
    %v2576 = vsel %vm1500, %v2566, 0
    %2578 = vmatprep.subr.mxu0 0.0
    %2579 = vmatpush1.msra.mxu0 %v73
    %2580 = vmatprep.subr.mxu0 0.0
    %2581 = vmatpush1.msra.mxu0 %v74
    %2582 = vmatprep.subr.mxu0 0.0
    %2583 = vmatpush1.msra.mxu0 %v75
    %2584 = vmatprep.subr.mxu0 0.0
    %2585 = vmatpush1.msra.mxu0 %v76
    %2586 = vmatprep.subr.mxu0 0.0
    %2587 = vmatpush1.msra.mxu0 %v77
    %2588 = vmatprep.subr.mxu0 0.0
    %2589 = vmatpush1.msra.mxu0 %v78
    %2590 = vmatprep.subr.mxu0 0.0
    %2591 = vmatpush1.msra.mxu0 %v79
    %2592 = vmatprep.subr.mxu0 0.0
    %2593 = vmatpush1.msra.mxu0 %v80
    %2594 = vmatprep.subr.mxu0 0.0
    %2595 = vmatpush1.msra.mxu0 0.0
    %2596 = vmatprep.subr.mxu0 0.0
    %2597 = vmatpush1.msra.mxu0 0.0
    %2598 = vmatprep.subr.mxu0 0.0
    %2599 = vmatpush1.msra.mxu0 0.0
    %2600 = vmatprep.subr.mxu0 0.0
    %2601 = vmatpush1.msra.mxu0 0.0
    %2602 = vmatprep.subr.mxu0 0.0
    %2603 = vmatpush1.msra.mxu0 0.0
    %2604 = vmatprep.subr.mxu0 0.0
    %2605 = vmatpush1.msra.mxu0 0.0
    %2606 = vmatprep.subr.mxu0 0.0
    %2607 = vmatpush1.msra.mxu0 0.0
    %2608 = vmatprep.subr.mxu0 0.0
    %2609 = vmatpush1.msra.mxu0 0.0
    %2610 = vmatprep.subr.mxu0 0.0
    %2611 = vmatpush1.msra.mxu0 0.0
    %2612 = vmatprep.subr.mxu0 0.0
    %2613 = vmatpush1.msra.mxu0 0.0
    %2614 = vmatprep.subr.mxu0 0.0
    %2615 = vmatpush1.msra.mxu0 0.0
    %2616 = vmatprep.subr.mxu0 0.0
    %2617 = vmatpush1.msra.mxu0 0.0
    %2618 = vmatprep.subr.mxu0 0.0
    %2619 = vmatpush1.msra.mxu0 0.0
    %2620 = vmatprep.subr.mxu0 0.0
    %2621 = vmatpush1.msra.mxu0 0.0
    %2622 = vmatprep.subr.mxu0 0.0
    %2623 = vmatpush1.msra.mxu0 0.0
    %2624 = vmatprep.subr.mxu0 0.0
    %2625 = vmatpush1.msra.mxu0 0.0
    %2626 = vmatprep.subr.mxu0 0.0
    %2627 = vmatpush1.msra.mxu0 0.0
    %2628 = vmatprep.subr.mxu0 0.0
    %2629 = vmatpush1.msra.mxu0 0.0
    %2630 = vmatprep.subr.mxu0 0.0
    %2631 = vmatpush1.msra.mxu0 0.0
    %2632 = vmatprep.subr.mxu0 0.0
    %2633 = vmatpush1.msra.mxu0 0.0
    %2634 = vmatprep.subr.mxu0 0.0
    %2635 = vmatpush1.msra.mxu0 0.0
    %2636 = vmatprep.subr.mxu0 0.0
    %2637 = vmatpush1.msra.mxu0 0.0
    %2638 = vmatprep.subr.mxu0 0.0
    %2639 = vmatpush1.msra.mxu0 0.0
    %2640 = vmatprep.subr.mxu0 0.0
    %2641 = vmatpush1.msra.mxu0 0.0
    %2642 = vmatprep.mubr.f32.mxu0 0.0
    %2643 = vmatmul.mubr.f32.gmra.mrb[0].mxu0 %v2576
    %v2644 = vpop.f32.mrb[0].mxu0
    %v2645 = vadd.f32 %v2573, %v2644
    %v2646 = vpop.f32.mrb[0].mxu0
    %2647 = vdwg.mxu0
    %v2648 = vadd.f32 %v661, %v2645
    %v2649 = vld [vmem:[%s8] sm:$0x1]
    %v2650 = vld [vmem:[%s9] sm:$0x1]
    %v2651 = vsel %vm662, %v2648, 0.0
    %2652 = vadd.xlane.f32.xlu0 %v2651
    %v2653 = vpop.xlane.xlu0 %2652
    %v2654 = vmul.f32 %v2653, %v264
    %v2655 = vsub.f32 %v2648, %v2654
    %v2656 = vmul.f32 %v2655, %v2655
    %v2657 = vsel %vm662, %v2656, 0.0
    %2658 = vadd.xlane.f32.xlu0 %v2657
    %v2659 = vpop.xlane.xlu0 %2658
    %v2660 = vmul.f32 %v2659, %v264
    %v2661 = vadd.f32 %v2660, 1e-05
    %v2662 = vrsqrt.pop %v2661
    %v2663 = vmul.f32 %v2655, %v2662
    %v2665 = vlaneseq
    %v2666 = vshrl.u32 %v2665, 7
    %v2667 = vsub.s32 0, %v2666
    %v2668 = vrot.slane %v2649, %v2667
    %v2670 = vmul.f32 %v2663, %v2668
    %v2672 = vlaneseq
    %v2673 = vshrl.u32 %v2672, 7
    %v2674 = vsub.s32 0, %v2673
    %v2675 = vrot.slane %v2650, %v2674
    %v2677 = vadd.f32 %v2670, %v2675
    %v2678 = vld [vmem:[%s10] sm:$0xff]
    %v2679 = vld [vmem:[%s10 + $0x8] sm:$0xff]
    %v2680 = vld [vmem:[%s10 + $0x10] sm:$0xff]
    %v2681 = vld [vmem:[%s10 + $0x18] sm:$0xff]
    %v2682 = vld [vmem:[%s11] sm:$0x1]
    %v2684 = vlaneseq
    %v2685 = vshrl.u32 %v2684, 7
    %v2686 = vsub.s32 0, %v2685
    %v2687 = vrot.slane %v2682, %v2686
    %v2690 = vsel %vm167, %v2677, 0
    %2692 = vmatprep.subr.mxu0 0.0
    %2693 = vmatpush1.msra.mxu0 %v2678
    %2694 = vmatprep.subr.mxu0 0.0
    %2695 = vmatpush1.msra.mxu0 %v2679
    %2696 = vmatprep.subr.mxu0 0.0
    %2697 = vmatpush1.msra.mxu0 %v2680
    %2698 = vmatprep.subr.mxu0 0.0
    %2699 = vmatpush1.msra.mxu0 %v2681
    %2700 = vmatprep.subr.mxu0 0.0
    %2701 = vmatpush1.msra.mxu0 0.0
    %2702 = vmatprep.subr.mxu0 0.0
    %2703 = vmatpush1.msra.mxu0 0.0
    %2704 = vmatprep.subr.mxu0 0.0
    %2705 = vmatpush1.msra.mxu0 0.0
    %2706 = vmatprep.subr.mxu0 0.0
    %2707 = vmatpush1.msra.mxu0 0.0
    %2708 = vmatprep.subr.mxu0 0.0
    %2709 = vmatpush1.msra.mxu0 0.0
    %2710 = vmatprep.subr.mxu0 0.0
    %2711 = vmatpush1.msra.mxu0 0.0
    %2712 = vmatprep.subr.mxu0 0.0
    %2713 = vmatpush1.msra.mxu0 0.0
    %2714 = vmatprep.subr.mxu0 0.0
    %2715 = vmatpush1.msra.mxu0 0.0
    %2716 = vmatprep.subr.mxu0 0.0
    %2717 = vmatpush1.msra.mxu0 0.0
    %2718 = vmatprep.subr.mxu0 0.0
    %2719 = vmatpush1.msra.mxu0 0.0
    %2720 = vmatprep.subr.mxu0 0.0
    %2721 = vmatpush1.msra.mxu0 0.0
    %2722 = vmatprep.subr.mxu0 0.0
    %2723 = vmatpush1.msra.mxu0 0.0
    %2724 = vmatprep.subr.mxu0 0.0
    %2725 = vmatpush1.msra.mxu0 0.0
    %2726 = vmatprep.subr.mxu0 0.0
    %2727 = vmatpush1.msra.mxu0 0.0
    %2728 = vmatprep.subr.mxu0 0.0
    %2729 = vmatpush1.msra.mxu0 0.0
    %2730 = vmatprep.subr.mxu0 0.0
    %2731 = vmatpush1.msra.mxu0 0.0
    %2732 = vmatprep.subr.mxu0 0.0
    %2733 = vmatpush1.msra.mxu0 0.0
    %2734 = vmatprep.subr.mxu0 0.0
    %2735 = vmatpush1.msra.mxu0 0.0
    %2736 = vmatprep.subr.mxu0 0.0
    %2737 = vmatpush1.msra.mxu0 0.0
    %2738 = vmatprep.subr.mxu0 0.0
    %2739 = vmatpush1.msra.mxu0 0.0
    %2740 = vmatprep.subr.mxu0 0.0
    %2741 = vmatpush1.msra.mxu0 0.0
    %2742 = vmatprep.subr.mxu0 0.0
    %2743 = vmatpush1.msra.mxu0 0.0
    %2744 = vmatprep.subr.mxu0 0.0
    %2745 = vmatpush1.msra.mxu0 0.0
    %2746 = vmatprep.subr.mxu0 0.0
    %2747 = vmatpush1.msra.mxu0 0.0
    %2748 = vmatprep.subr.mxu0 0.0
    %2749 = vmatpush1.msra.mxu0 0.0
    %2750 = vmatprep.subr.mxu0 0.0
    %2751 = vmatpush1.msra.mxu0 0.0
    %2752 = vmatprep.subr.mxu0 0.0
    %2753 = vmatpush1.msra.mxu0 0.0
    %2754 = vmatprep.subr.mxu0 0.0
    %2755 = vmatpush1.msra.mxu0 0.0
    %2756 = vmatprep.mubr.f32.mxu0 0.0
    %2757 = vmatmul.mubr.f32.gmra.mrb[0].mxu0 %v2690
    %v2758 = vpop.f32.mrb[0].mxu0
    %v2759 = vadd.f32 %v2687, %v2758
    %v2760 = vpop.f32.mrb[0].mxu0
    %2761 = vdwg.mxu0
    %v2762 = vmul.f32 %v2759, 0.5
    %v2763 = vmul.f32 %v2759, 0.70710677
    %v2764 = verf.f32.pop %v2763
    %v2765 = vadd.f32 %v2764, 1.0
    %v2766 = vmul.f32 %v2762, %v2765
    %v2767 = vld [vmem:[%s12] sm:$0xff]
    %v2768 = vld [vmem:[%s12 + $0x8] sm:$0xff]
    %v2769 = vld [vmem:[%s12 + $0x10] sm:$0xff]
    %v2770 = vld [vmem:[%s12 + $0x18] sm:$0xff]
    %v2771 = vld [vmem:[%s12 + $0x20] sm:$0xff]
    %v2772 = vld [vmem:[%s12 + $0x28] sm:$0xff]
    %v2773 = vld [vmem:[%s12 + $0x30] sm:$0xff]
    %v2774 = vld [vmem:[%s12 + $0x38] sm:$0xff]
    %v2775 = vld [vmem:[%s12 + $0x40] sm:$0xff]
    %v2776 = vld [vmem:[%s12 + $0x48] sm:$0xff]
    %v2777 = vld [vmem:[%s12 + $0x50] sm:$0xff]
    %v2778 = vld [vmem:[%s12 + $0x58] sm:$0xff]
    %v2779 = vld [vmem:[%s12 + $0x60] sm:$0xff]
    %v2780 = vld [vmem:[%s12 + $0x68] sm:$0xff]
    %v2781 = vld [vmem:[%s12 + $0x70] sm:$0xff]
    %v2782 = vld [vmem:[%s12 + $0x78] sm:$0xff]
    %v2783 = vld [vmem:[%s13] sm:$0x1]
    %v2785 = vlaneseq
    %v2786 = vshrl.u32 %v2785, 7
    %v2787 = vsub.s32 0, %v2786
    %v2788 = vrot.slane %v2783, %v2787
    %2790 = vmatprep.subr.mxu0 0.0
    %2791 = vmatpush1.msra.mxu0 %v2767
    %2792 = vmatprep.subr.mxu0 0.0
    %2793 = vmatpush1.msra.mxu0 %v2768
    %2794 = vmatprep.subr.mxu0 0.0
    %2795 = vmatpush1.msra.mxu0 %v2769
    %2796 = vmatprep.subr.mxu0 0.0
    %2797 = vmatpush1.msra.mxu0 %v2770
    %2798 = vmatprep.subr.mxu0 0.0
    %2799 = vmatpush1.msra.mxu0 %v2771
    %2800 = vmatprep.subr.mxu0 0.0
    %2801 = vmatpush1.msra.mxu0 %v2772
    %2802 = vmatprep.subr.mxu0 0.0
    %2803 = vmatpush1.msra.mxu0 %v2773
    %2804 = vmatprep.subr.mxu0 0.0
    %2805 = vmatpush1.msra.mxu0 %v2774
    %2806 = vmatprep.subr.mxu0 0.0
    %2807 = vmatpush1.msra.mxu0 %v2775
    %2808 = vmatprep.subr.mxu0 0.0
    %2809 = vmatpush1.msra.mxu0 %v2776
    %2810 = vmatprep.subr.mxu0 0.0
    %2811 = vmatpush1.msra.mxu0 %v2777
    %2812 = vmatprep.subr.mxu0 0.0
    %2813 = vmatpush1.msra.mxu0 %v2778
    %2814 = vmatprep.subr.mxu0 0.0
    %2815 = vmatpush1.msra.mxu0 %v2779
    %2816 = vmatprep.subr.mxu0 0.0
    %2817 = vmatpush1.msra.mxu0 %v2780
    %2818 = vmatprep.subr.mxu0 0.0
    %2819 = vmatpush1.msra.mxu0 %v2781
    %2820 = vmatprep.subr.mxu0 0.0
    %2821 = vmatpush1.msra.mxu0 %v2782
    %2822 = vmatprep.subr.mxu0 0.0
    %2823 = vmatpush1.msra.mxu0 0.0
    %2824 = vmatprep.subr.mxu0 0.0
    %2825 = vmatpush1.msra.mxu0 0.0
    %2826 = vmatprep.subr.mxu0 0.0
    %2827 = vmatpush1.msra.mxu0 0.0
    %2828 = vmatprep.subr.mxu0 0.0
    %2829 = vmatpush1.msra.mxu0 0.0
    %2830 = vmatprep.subr.mxu0 0.0
    %2831 = vmatpush1.msra.mxu0 0.0
    %2832 = vmatprep.subr.mxu0 0.0
    %2833 = vmatpush1.msra.mxu0 0.0
    %2834 = vmatprep.subr.mxu0 0.0
    %2835 = vmatpush1.msra.mxu0 0.0
    %2836 = vmatprep.subr.mxu0 0.0
    %2837 = vmatpush1.msra.mxu0 0.0
    %2838 = vmatprep.subr.mxu0 0.0
    %2839 = vmatpush1.msra.mxu0 0.0
    %2840 = vmatprep.subr.mxu0 0.0
    %2841 = vmatpush1.msra.mxu0 0.0
    %2842 = vmatprep.subr.mxu0 0.0
    %2843 = vmatpush1.msra.mxu0 0.0
    %2844 = vmatprep.subr.mxu0 0.0
    %2845 = vmatpush1.msra.mxu0 0.0
    %2846 = vmatprep.subr.mxu0 0.0
    %2847 = vmatpush1.msra.mxu0 0.0
    %2848 = vmatprep.subr.mxu0 0.0
    %2849 = vmatpush1.msra.mxu0 0.0
    %2850 = vmatprep.subr.mxu0 0.0
    %2851 = vmatpush1.msra.mxu0 0.0
    %2852 = vmatprep.subr.mxu0 0.0
    %2853 = vmatpush1.msra.mxu0 0.0
    %2854 = vmatprep.mubr.f32.mxu0 0.0
    %2855 = vmatmul.mubr.f32.gmra.mrb[0].mxu0 %v2766
    %v2856 = vpop.f32.mrb[0].mxu0
    %v2857 = vadd.f32 %v2788, %v2856
    %v2858 = vpop.f32.mrb[0].mxu0
    %2859 = vdwg.mxu0
    %v2860 = vadd.f32 %v2648, %v2857
    %2861 = vst.msk [vmem:[#allocation2] sm:$0x3] %vm662, %v2860
    // Predicated region
    $region78: #{tpu_custom_call.1} parent=1 // pred_check
      _
    $region79: #{tpu_custom_call.1} parent=1 // pred_check_branch
      %2863 = sbr.rel (0) target = $region81
    $region80: #{tpu_custom_call.1} parent=1 // pred_region
      %s2865 = ssub.s32 32, 32
      %2866 = vsyncadd [#allocation3], %s2865
      %s2868 = sshll.u32 [#allocation2], 4
      %s2869 = int_to_ptr.vmem [resolvable:$true] %s2868
      %2871 = dma.vmem_to_hbm [thread:$0]  %s2869, 32, %s19, [#allocation3]
    $region81: #{tpu_custom_call.1} parent=1 // pred_fallthru
      _
    // Predicated region
    $region82: #{tpu_custom_call.1} parent=1 // pred_check
      _
    $region83: #{tpu_custom_call.1} parent=1 // pred_check_branch
      %2873 = sbr.rel (0) target = $region85
    $region84: #{tpu_custom_call.1} parent=1 // pred_region
      %2874 = dma.done [#allocation3], 32
    $region85: #{tpu_custom_call.1} parent=1 // pred_fallthru
      _
    %2875 = vsyncpa [#allocation3], 1

</llo_original>
